<compile_context>
chip_gen: v7x
topology: tpu7x:2x2x1
jax: 0.10.0
libtpu: 0.0.40
codegen_flags: <defaults>
</compile_context>

<pallas_src>
import math
import functools

import jax
import jax.numpy as jnp
from jax import lax
from jax.experimental import pallas as pl
from jax.experimental.pallas import tpu as pltpu


def _mha_kernel(q_ref, k_ref, v_ref,
                wq_ref, bq_ref, wk_ref, bk_ref,
                wv_ref, bv_ref, wo_ref, bo_ref,
                o_ref,
                k_proj, v_proj, x_cat,
                *, h: int, d_k: int):
    """One grid step = (batch b, query tile qi).

    k_proj / v_proj : bf16 VMEM scratch [S, D] (lane-dense, heads contiguous
        along lanes). Filled once per batch element (qi == 0) with full-width
        [S, D] @ [D, D] projections and reused for every query tile.
        NOTE: this carry relies on grid=(B, nq) with the qi axis innermost and
        marked "arbitrary"; do NOT mark qi "parallel" or reorder the grid.
    x_cat : bf16 VMEM scratch [TQ, D] — per-head outputs are written at static
        lane offsets so the output projection is one full-width GEMM.
    """
    # ---- K / V projection, once per batch element, full-width MXU GEMMs ----
    @pl.when(pl.program_id(1) == 0)
    def _():
        k_proj[...] = (jnp.dot(k_ref[0], wk_ref[...],
                               preferred_element_type=jnp.float32)
                       + bk_ref[...]).astype(jnp.bfloat16)
        v_proj[...] = (jnp.dot(v_ref[0], wv_ref[...],
                               preferred_element_type=jnp.float32)
                       + bv_ref[...]).astype(jnp.bfloat16)

    # ---- Q projection for this tile (1/sqrt(d_k) folded into wq / bq) ----
    q_proj = (jnp.dot(q_ref[0], wq_ref[...],
                      preferred_element_type=jnp.float32)
              + bq_ref[...]).astype(jnp.bfloat16)                     # [TQ, D]

    # ---- per-head attention, fused into the [TQ, D] concat buffer ----
    # Static Python head loop: slice offsets are compile-time constants.
    # TODO(synk): for very long sequences (S >= ~2K) add a KV-tile inner loop
    # with online softmax so the [TQ, S] score block stops scaling with S.
    for hi in range(h):
        lo = hi * d_k
        qh = q_proj[:, lo:lo + d_k]                                   # [TQ, d_k]
        kh = k_proj[:, lo:lo + d_k]                                   # [S, d_k]
        vh = v_proj[:, lo:lo + d_k]                                   # [S, d_k]

        # scores = qh @ kh^T  (contract d_k; MXU-native rhs-transposed form)
        scores = lax.dot_general(qh, kh, (((1,), (1,)), ((), ())),
                                 preferred_element_type=jnp.float32)  # [TQ, S]

        # f32 softmax statistics; normalize AFTER the PV matmul so the
        # broadcast multiply is [TQ, d_k] instead of [TQ, S].
        m = jnp.max(scores, axis=-1, keepdims=True)
        e = jnp.exp(scores - m)                                       # [TQ, S]
        l = jnp.sum(e, axis=-1, keepdims=True)                        # [TQ, 1]

        head_out = jnp.dot(e.astype(jnp.bfloat16), vh,
                           preferred_element_type=jnp.float32)        # [TQ, d_k]
        head_out = head_out * pl.reciprocal(l, approx=True)

        x_cat[:, lo:lo + d_k] = head_out.astype(jnp.bfloat16)

    # ---- single full-width output projection ----
    out = jnp.dot(x_cat[...], wo_ref[...],
                  preferred_element_type=jnp.float32) + bo_ref[...]
    o_ref[0] = out.astype(o_ref.dtype)


def multi_headed_attention(query, key, value, params, *, h: int,
                           tq: int | None = None, out_dtype=None):
    """query/key/value: [B, S, d_model]. params: dict of W/b for the 4 linears
    (stored so that y = x @ W + b, i.e. W = W_torch.T)."""
    B, S, D = query.shape
    assert D % h == 0
    d_k = D // h
    # Lane-dense layout: output / projection blocks are multiples of 128 lanes.
    assert D % 128 == 0, "pick d_model as a multiple of 128"

    if tq is None:
        tq = min(S, 128)
    assert S % tq == 0 and (tq % 8 == 0 or tq == S)
    nq = S // tq

    if out_dtype is None:
        out_dtype = query.dtype

    inv_sqrt_dk = 1.0 / math.sqrt(d_k)

    # bf16 activations on the HBM<->VMEM path (kernel computes in bf16 anyway).
    q_bf = query.astype(jnp.bfloat16)
    k_bf = key.astype(jnp.bfloat16)
    v_bf = value.astype(jnp.bfloat16)

    # Weights stay [D, D] so every projection is a full-width MXU GEMM; the
    # 1/sqrt(d_k) scale is folded into the query projection. Biases stay f32.
    wq = (params["wq"] * inv_sqrt_dk).astype(jnp.bfloat16)
    wk = params["wk"].astype(jnp.bfloat16)
    wv = params["wv"].astype(jnp.bfloat16)
    wo = params["wo"].astype(jnp.bfloat16)
    bq = (params["bq"] * inv_sqrt_dk).astype(jnp.float32)
    bk = params["bk"].astype(jnp.float32)
    bv = params["bv"].astype(jnp.float32)
    bo = params["bo"].astype(jnp.float32)

    kernel = functools.partial(_mha_kernel, h=h, d_k=d_k)

    # Constant-index weight / bias blocks: DMA'd once, single-buffered.
    def const_spec(shape):
        return pl.BlockSpec(shape, lambda b, qi: (0,) * len(shape),
                            pipeline_mode=pl.Buffered(1))

    q_spec = pl.BlockSpec((1, tq, D), lambda b, qi: (b, qi, 0))
    kv_spec = pl.BlockSpec((1, S, D), lambda b, qi: (b, 0, 0))
    w_spec = const_spec((D, D))
    b_spec = const_spec((1, D))
    out_spec = pl.BlockSpec((1, tq, D), lambda b, qi: (b, qi, 0))

    # ---- VMEM budget (review: budget explicitly; v7x has 64 MiB physical) ----
    out_bpe = jnp.dtype(out_dtype).itemsize
    vmem_est = (
        2 * tq * D * 2                 # q block, double-buffered, bf16
        + 2 * 2 * S * D * 2            # k, v blocks, double-buffered, bf16
        + 2 * tq * D * out_bpe         # out block, double-buffered
        + 4 * D * D * 2                # weights, single-buffered, bf16
        + 4 * 8 * D * 4                # biases (sublane-padded), f32
        + 2 * S * D * 2                # projected K / V scratch, bf16
        + tq * D * 2                   # head concat scratch, bf16
    )
    vmem_limit = int(min(max(2 * vmem_est, 32 * 1024 * 1024), 100 * 1024 * 1024))

    flops = B * (8 * S * D * D + 4 * S * S * D)        # 4 projections + QK^T + PV
    transcendentals = B * h * S * S                    # exp in softmax
    bytes_accessed = (3 * B * S * D * 2                # q, k, v in (bf16)
                      + B * S * D * out_bpe            # output
                      + 4 * D * D * 2                  # bf16 weights
                      + 4 * D * 4)                     # biases

    return pl.pallas_call(
        kernel,
        out_shape=jax.ShapeDtypeStruct((B, S, D), out_dtype),
        grid_spec=pltpu.PrefetchScalarGridSpec(
            num_scalar_prefetch=0,
            grid=(B, nq),
            in_specs=[q_spec, kv_spec, kv_spec,
                      w_spec, b_spec,
                      w_spec, b_spec,
                      w_spec, b_spec,
                      w_spec, b_spec],
            out_specs=out_spec,
            scratch_shapes=[pltpu.VMEM((S, D), jnp.bfloat16),    # projected K
                            pltpu.VMEM((S, D), jnp.bfloat16),    # projected V
                            pltpu.VMEM((tq, D), jnp.bfloat16)],  # head concat
        ),
        compiler_params=pltpu.CompilerParams(
            # batch parallel (megacore); q-tile axis carries the K/V scratch,
            # so it MUST stay "arbitrary" (see kernel docstring).
            dimension_semantics=("parallel", "arbitrary"),
            vmem_limit_bytes=vmem_limit),
        cost_estimate=pl.CostEstimate(
            flops=flops,
            transcendentals=transcendentals,
            bytes_accessed=bytes_accessed),
    )(q_bf, k_bf, v_bf, wq, bq, wk, bk, wv, bv, wo, bo)


def init_params(key, d_model):
    """Deterministic init mimicking nn.Linear (uniform(-1/sqrt(D), 1/sqrt(D)))."""
    bound = 1.0 / math.sqrt(d_model)
    names = ["q", "k", "v", "o"]
    params = {}
    keys = jax.random.split(key, 2 * len(names))
    for i, n in enumerate(names):
        w = jax.random.uniform(keys[2 * i], (d_model, d_model),
                               minval=-bound, maxval=bound, dtype=jnp.float32)
        b = jax.random.uniform(keys[2 * i + 1], (1, d_model),
                               minval=-bound, maxval=bound, dtype=jnp.float32)
        params["w" + n] = w   # stored so that y = x @ w + b
        params["b" + n] = b
    return params


def reference_mha(query, key, value, params, *, h: int):
    """Pure-JAX f32 reference matching the PyTorch forward (dropout in eval mode)."""
    B, S, D = query.shape
    d_k = D // h

    def lin(x, w, b):
        return x @ w + b

    def split_heads(x):
        return x.reshape(B, S, h, d_k).transpose(0, 2, 1, 3)   # [B,h,S,d_k]

    q = split_heads(lin(query, params["wq"], params["bq"]))
    k = split_heads(lin(key, params["wk"], params["bk"]))
    v = split_heads(lin(value, params["wv"], params["bv"]))

    scores = jnp.einsum("bhqd,bhkd->bhqk", q, k) / math.sqrt(d_k)
    p = jax.nn.softmax(scores, axis=-1)
    x = jnp.einsum("bhqk,bhkd->bhqd", p, v)
    x = x.transpose(0, 2, 1, 3).reshape(B, S, D)
    return lin(x, params["wo"], params["bo"])


if __name__ == "__main__":
    # Small, lane-dense demo shapes (d_model multiple of 128, two q-tiles).
    B, S, d_model, h = 2, 256, 128, 4

    root = jax.random.PRNGKey(0)
    kq, kk, kv, kp = jax.random.split(root, 4)
    query = jax.random.normal(kq, (B, S, d_model), dtype=jnp.float32)
    key_ = jax.random.normal(kk, (B, S, d_model), dtype=jnp.float32)
    value = jax.random.normal(kv, (B, S, d_model), dtype=jnp.float32)
    params = init_params(kp, d_model)

    out = multi_headed_attention(query, key_, value, params, h=h)
    out = jax.block_until_ready(out)

    with jax.default_matmul_precision("float32"):
        ref = reference_mha(query, key_, value, params, h=h)
    ref = jax.block_until_ready(ref)

    # bf16 activations/weights with f32 accumulation vs f32 reference.
    err = float(jnp.max(jnp.abs(out.astype(jnp.float32) - ref)))
    assert err < 2e-2, f"mismatch vs reference: max abs err {err}"

    print("KERNEL_OK")
</pallas_src>

<mosaic_0001>
module attributes {stable_mosaic.version = 11 : i64} {
  func.func @_mha_kernel(%arg0: i32, %arg1: i32, %arg2: memref<1x128x128xbf16, #tpu.memory_space<vmem>>, %arg3: memref<1x256x128xbf16, #tpu.memory_space<vmem>>, %arg4: memref<1x256x128xbf16, #tpu.memory_space<vmem>>, %arg5: memref<128x128xbf16, #tpu.memory_space<vmem>>, %arg6: memref<1x128xf32, #tpu.memory_space<vmem>>, %arg7: memref<128x128xbf16, #tpu.memory_space<vmem>>, %arg8: memref<1x128xf32, #tpu.memory_space<vmem>>, %arg9: memref<128x128xbf16, #tpu.memory_space<vmem>>, %arg10: memref<1x128xf32, #tpu.memory_space<vmem>>, %arg11: memref<128x128xbf16, #tpu.memory_space<vmem>>, %arg12: memref<1x128xf32, #tpu.memory_space<vmem>>, %arg13: memref<1x128x128xf32, #tpu.memory_space<vmem>>, %arg14: memref<256x128xbf16, #tpu.memory_space<vmem>>, %arg15: memref<256x128xbf16, #tpu.memory_space<vmem>>, %arg16: memref<128x128xbf16, #tpu.memory_space<vmem>>) attributes {dimension_semantics = [#tpu.dimension_semantics<parallel>, #tpu.dimension_semantics<arbitrary>], iteration_bounds = array<i64: 2, 2>, scalar_prefetch = 0 : i64, scratch_operands = 3 : i64, tpu.core_type = #tpu.core_type<tc>, window_params = [{transform_indices = @transform_0, window_bounds = array<i64: 1, 128, 128>}, {transform_indices = @transform_1, window_bounds = array<i64: 1, 256, 128>}, {transform_indices = @transform_2, window_bounds = array<i64: 1, 256, 128>}, {pipeline_mode = #tpu.pipeline_mode<synchronous>, transform_indices = @transform_3, window_bounds = array<i64: 128, 128>}, {pipeline_mode = #tpu.pipeline_mode<synchronous>, transform_indices = @transform_4, window_bounds = array<i64: 1, 128>}, {pipeline_mode = #tpu.pipeline_mode<synchronous>, transform_indices = @transform_5, window_bounds = array<i64: 128, 128>}, {pipeline_mode = #tpu.pipeline_mode<synchronous>, transform_indices = @transform_6, window_bounds = array<i64: 1, 128>}, {pipeline_mode = #tpu.pipeline_mode<synchronous>, transform_indices = @transform_7, window_bounds = array<i64: 128, 128>}, {pipeline_mode = #tpu.pipeline_mode<synchronous>, transform_indices = @transform_8, window_bounds = array<i64: 1, 128>}, {pipeline_mode = #tpu.pipeline_mode<synchronous>, transform_indices = @transform_9, window_bounds = array<i64: 128, 128>}, {pipeline_mode = #tpu.pipeline_mode<synchronous>, transform_indices = @transform_10, window_bounds = array<i64: 1, 128>}, {transform_indices = @transform_11, window_bounds = array<i64: 1, 128, 128>}]} {
    %c0_i32 = arith.constant 0 : i32
    %0 = arith.cmpi eq, %arg1, %c0_i32 : i32
    %1 = arith.extui %0 : i1 to i32
    %c0_i32_0 = arith.constant 0 : i32
    %2 = arith.cmpi ne, %1, %c0_i32_0 : i32
    scf.if %2 {
      %c0_54 = arith.constant 0 : index
      %c0_55 = arith.constant 0 : index
      %c0_56 = arith.constant 0 : index
      %92 = vector.load %arg3[%c0_54, %c0_55, %c0_56] : memref<1x256x128xbf16, #tpu.memory_space<vmem>>, vector<1x256x128xbf16>
      %93 = vector.shape_cast %92 : vector<1x256x128xbf16> to vector<256x128xbf16>
      %c0_57 = arith.constant 0 : index
      %c0_58 = arith.constant 0 : index
      %94 = vector.load %arg7[%c0_57, %c0_58] : memref<128x128xbf16, #tpu.memory_space<vmem>>, vector<128x128xbf16>
      %cst_59 = arith.constant dense<0.000000e+00> : vector<256x128xf32>
      %95 = tpu.matmul %93, %94, %cst_59 {dimension_numbers = #tpu.dot_dimension_numbers<[1], [0], [0], [1], [0, 0, 1, 1], [], []>} : vector<256x128xbf16>, vector<128x128xbf16>, vector<256x128xf32> -> vector<256x128xf32>
      %c0_60 = arith.constant 0 : index
      %c0_61 = arith.constant 0 : index
      %96 = vector.load %arg8[%c0_60, %c0_61] : memref<1x128xf32, #tpu.memory_space<vmem>>, vector<1x128xf32>
      %97 = vector.broadcast %96 : vector<1x128xf32> to vector<256x128xf32>
      %98 = arith.addf %95, %97 : vector<256x128xf32>
      %99 = arith.truncf %98 : vector<256x128xf32> to vector<256x128xbf16>
      %c0_62 = arith.constant 0 : index
      %c0_63 = arith.constant 0 : index
      %100 = vector.load %arg14[%c0_62, %c0_63] : memref<256x128xbf16, #tpu.memory_space<vmem>>, vector<256x128xbf16>
      tpu.vector_store %arg14[%c0_62, %c0_63], %99 {strides = array<i32>} : memref<256x128xbf16, #tpu.memory_space<vmem>>, vector<256x128xbf16>,
      %c0_64 = arith.constant 0 : index
      %c0_65 = arith.constant 0 : index
      %c0_66 = arith.constant 0 : index
      %101 = vector.load %arg4[%c0_64, %c0_65, %c0_66] : memref<1x256x128xbf16, #tpu.memory_space<vmem>>, vector<1x256x128xbf16>
      %102 = vector.shape_cast %101 : vector<1x256x128xbf16> to vector<256x128xbf16>
      %c0_67 = arith.constant 0 : index
      %c0_68 = arith.constant 0 : index
      %103 = vector.load %arg9[%c0_67, %c0_68] : memref<128x128xbf16, #tpu.memory_space<vmem>>, vector<128x128xbf16>
      %cst_69 = arith.constant dense<0.000000e+00> : vector<256x128xf32>
      %104 = tpu.matmul %102, %103, %cst_69 {dimension_numbers = #tpu.dot_dimension_numbers<[1], [0], [0], [1], [0, 0, 1, 1], [], []>} : vector<256x128xbf16>, vector<128x128xbf16>, vector<256x128xf32> -> vector<256x128xf32>
      %c0_70 = arith.constant 0 : index
      %c0_71 = arith.constant 0 : index
      %105 = vector.load %arg10[%c0_70, %c0_71] : memref<1x128xf32, #tpu.memory_space<vmem>>, vector<1x128xf32>
      %106 = vector.broadcast %105 : vector<1x128xf32> to vector<256x128xf32>
      %107 = arith.addf %104, %106 : vector<256x128xf32>
      %108 = arith.truncf %107 : vector<256x128xf32> to vector<256x128xbf16>
      %c0_72 = arith.constant 0 : index
      %c0_73 = arith.constant 0 : index
      %109 = vector.load %arg15[%c0_72, %c0_73] : memref<256x128xbf16, #tpu.memory_space<vmem>>, vector<256x128xbf16>
      tpu.vector_store %arg15[%c0_72, %c0_73], %108 {strides = array<i32>} : memref<256x128xbf16, #tpu.memory_space<vmem>>, vector<256x128xbf16>,
    } else {
    }
    %c0 = arith.constant 0 : index
    %c0_1 = arith.constant 0 : index
    %c0_2 = arith.constant 0 : index
    %3 = vector.load %arg2[%c0, %c0_1, %c0_2] : memref<1x128x128xbf16, #tpu.memory_space<vmem>>, vector<1x128x128xbf16>
    %4 = vector.shape_cast %3 : vector<1x128x128xbf16> to vector<128x128xbf16>
    %c0_3 = arith.constant 0 : index
    %c0_4 = arith.constant 0 : index
    %5 = vector.load %arg5[%c0_3, %c0_4] : memref<128x128xbf16, #tpu.memory_space<vmem>>, vector<128x128xbf16>
    %cst = arith.constant dense<0.000000e+00> : vector<128x128xf32>
    %6 = tpu.matmul %4, %5, %cst {dimension_numbers = #tpu.dot_dimension_numbers<[1], [0], [0], [1], [0, 0, 1, 1], [], []>} : vector<128x128xbf16>, vector<128x128xbf16>, vector<128x128xf32> -> vector<128x128xf32>
    %c0_5 = arith.constant 0 : index
    %c0_6 = arith.constant 0 : index
    %7 = vector.load %arg6[%c0_5, %c0_6] : memref<1x128xf32, #tpu.memory_space<vmem>>, vector<1x128xf32>
    %8 = vector.broadcast %7 : vector<1x128xf32> to vector<128x128xf32>
    %9 = arith.addf %6, %8 : vector<128x128xf32>
    %10 = arith.truncf %9 : vector<128x128xf32> to vector<128x128xbf16>
    %11 = vector.extract_strided_slice %10 {offsets = [0, 0], sizes = [128, 32], strides = [1, 1]} : vector<128x128xbf16> to vector<128x32xbf16>
    %c0_7 = arith.constant 0 : index
    %c0_8 = arith.constant 0 : index
    %12 = vector.load %arg14[%c0_7, %c0_8] : memref<256x128xbf16, #tpu.memory_space<vmem>>, vector<256x32xbf16>
    %c0_9 = arith.constant 0 : index
    %c0_10 = arith.constant 0 : index
    %13 = vector.load %arg15[%c0_9, %c0_10] : memref<256x128xbf16, #tpu.memory_space<vmem>>, vector<256x32xbf16>
    %cst_11 = arith.constant dense<0.000000e+00> : vector<128x256xf32>
    %14 = tpu.matmul %11, %12, %cst_11 {dimension_numbers = #tpu.dot_dimension_numbers<[1], [1], [0], [0], [0, 0, 1, 0], [], []>} : vector<128x32xbf16>, vector<256x32xbf16>, vector<128x256xf32> -> vector<128x256xf32>
    %cst_12 = arith.constant dense<0xFF800000> : vector<128xf32>
    %15 = vector.multi_reduction <maximumf>, %14, %cst_12 [1] : vector<128x256xf32> to vector<128xf32>
    %16 = vector.shape_cast %15 : vector<128xf32> to vector<128x1xf32>
    %17 = vector.broadcast %16 : vector<128x1xf32> to vector<128x256xf32>
    %18 = arith.subf %14, %17 : vector<128x256xf32>
    %19 = math.exp %18 : vector<128x256xf32>
    %cst_13 = arith.constant dense<0.000000e+00> : vector<128xf32>
    %20 = vector.multi_reduction <add>, %19, %cst_13 [1] : vector<128x256xf32> to vector<128xf32>
    %21 = vector.shape_cast %20 : vector<128xf32> to vector<128x1xf32>
    %22 = arith.truncf %19 : vector<128x256xf32> to vector<128x256xbf16>
    %cst_14 = arith.constant dense<0.000000e+00> : vector<128x32xf32>
    %23 = tpu.matmul %22, %13, %cst_14 {dimension_numbers = #tpu.dot_dimension_numbers<[1], [0], [0], [1], [0, 0, 1, 1], [], []>} : vector<128x256xbf16>, vector<256x32xbf16>, vector<128x32xf32> -> vector<128x32xf32>
    %24 = tpu.reciprocal %21 {approx = true} : vector<128x1xf32> -> vector<128x1xf32>
    %25 = vector.broadcast %24 : vector<128x1xf32> to vector<128x32xf32>
    %26 = arith.mulf %23, %25 : vector<128x32xf32>
    %27 = arith.truncf %26 : vector<128x32xf32> to vector<128x32xbf16>
    %c0_15 = arith.constant 0 : index
    %c0_16 = arith.constant 0 : index
    %28 = vector.load %arg16[%c0_15, %c0_16] : memref<128x128xbf16, #tpu.memory_space<vmem>>, vector<128x32xbf16>
    tpu.vector_store %arg16[%c0_15, %c0_16], %27 {strides = array<i32>} : memref<128x128xbf16, #tpu.memory_space<vmem>>, vector<128x32xbf16>,
    %29 = vector.extract_strided_slice %10 {offsets = [0, 32], sizes = [128, 32], strides = [1, 1]} : vector<128x128xbf16> to vector<128x32xbf16>
    %c0_17 = arith.constant 0 : index
    %c32 = arith.constant 32 : index
    %30 = vector.load %arg14[%c0_17, %c32] : memref<256x128xbf16, #tpu.memory_space<vmem>>, vector<256x32xbf16>
    %c0_18 = arith.constant 0 : index
    %c32_19 = arith.constant 32 : index
    %31 = vector.load %arg15[%c0_18, %c32_19] : memref<256x128xbf16, #tpu.memory_space<vmem>>, vector<256x32xbf16>
    %cst_20 = arith.constant dense<0.000000e+00> : vector<128x256xf32>
    %32 = tpu.matmul %29, %30, %cst_20 {dimension_numbers = #tpu.dot_dimension_numbers<[1], [1], [0], [0], [0, 0, 1, 0], [], []>} : vector<128x32xbf16>, vector<256x32xbf16>, vector<128x256xf32> -> vector<128x256xf32>
    %cst_21 = arith.constant dense<0xFF800000> : vector<128xf32>
    %33 = vector.multi_reduction <maximumf>, %32, %cst_21 [1] : vector<128x256xf32> to vector<128xf32>
    %34 = vector.shape_cast %33 : vector<128xf32> to vector<128x1xf32>
    %35 = vector.broadcast %34 : vector<128x1xf32> to vector<128x256xf32>
    %36 = arith.subf %32, %35 : vector<128x256xf32>
    %37 = math.exp %36 : vector<128x256xf32>
    %cst_22 = arith.constant dense<0.000000e+00> : vector<128xf32>
    %38 = vector.multi_reduction <add>, %37, %cst_22 [1] : vector<128x256xf32> to vector<128xf32>
    %39 = vector.shape_cast %38 : vector<128xf32> to vector<128x1xf32>
    %40 = arith.truncf %37 : vector<128x256xf32> to vector<128x256xbf16>
    %cst_23 = arith.constant dense<0.000000e+00> : vector<128x32xf32>
    %41 = tpu.matmul %40, %31, %cst_23 {dimension_numbers = #tpu.dot_dimension_numbers<[1], [0], [0], [1], [0, 0, 1, 1], [], []>} : vector<128x256xbf16>, vector<256x32xbf16>, vector<128x32xf32> -> vector<128x32xf32>
    %42 = tpu.reciprocal %39 {approx = true} : vector<128x1xf32> -> vector<128x1xf32>
    %43 = vector.broadcast %42 : vector<128x1xf32> to vector<128x32xf32>
    %44 = arith.mulf %41, %43 : vector<128x32xf32>
    %45 = arith.truncf %44 : vector<128x32xf32> to vector<128x32xbf16>
    %c0_24 = arith.constant 0 : index
    %c32_25 = arith.constant 32 : index
    %46 = vector.load %arg16[%c0_24, %c32_25] : memref<128x128xbf16, #tpu.memory_space<vmem>>, vector<128x32xbf16>
    tpu.vector_store %arg16[%c0_24, %c32_25], %45 {strides = array<i32>} : memref<128x128xbf16, #tpu.memory_space<vmem>>, vector<128x32xbf16>,
    %47 = vector.extract_strided_slice %10 {offsets = [0, 64], sizes = [128, 32], strides = [1, 1]} : vector<128x128xbf16> to vector<128x32xbf16>
    %c0_26 = arith.constant 0 : index
    %c64 = arith.constant 64 : index
    %48 = vector.load %arg14[%c0_26, %c64] : memref<256x128xbf16, #tpu.memory_space<vmem>>, vector<256x32xbf16>
    %c0_27 = arith.constant 0 : index
    %c64_28 = arith.constant 64 : index
    %49 = vector.load %arg15[%c0_27, %c64_28] : memref<256x128xbf16, #tpu.memory_space<vmem>>, vector<256x32xbf16>
    %cst_29 = arith.constant dense<0.000000e+00> : vector<128x256xf32>
    %50 = tpu.matmul %47, %48, %cst_29 {dimension_numbers = #tpu.dot_dimension_numbers<[1], [1], [0], [0], [0, 0, 1, 0], [], []>} : vector<128x32xbf16>, vector<256x32xbf16>, vector<128x256xf32> -> vector<128x256xf32>
    %cst_30 = arith.constant dense<0xFF800000> : vector<128xf32>
    %51 = vector.multi_reduction <maximumf>, %50, %cst_30 [1] : vector<128x256xf32> to vector<128xf32>
    %52 = vector.shape_cast %51 : vector<128xf32> to vector<128x1xf32>
    %53 = vector.broadcast %52 : vector<128x1xf32> to vector<128x256xf32>
    %54 = arith.subf %50, %53 : vector<128x256xf32>
    %55 = math.exp %54 : vector<128x256xf32>
    %cst_31 = arith.constant dense<0.000000e+00> : vector<128xf32>
    %56 = vector.multi_reduction <add>, %55, %cst_31 [1] : vector<128x256xf32> to vector<128xf32>
    %57 = vector.shape_cast %56 : vector<128xf32> to vector<128x1xf32>
    %58 = arith.truncf %55 : vector<128x256xf32> to vector<128x256xbf16>
    %cst_32 = arith.constant dense<0.000000e+00> : vector<128x32xf32>
    %59 = tpu.matmul %58, %49, %cst_32 {dimension_numbers = #tpu.dot_dimension_numbers<[1], [0], [0], [1], [0, 0, 1, 1], [], []>} : vector<128x256xbf16>, vector<256x32xbf16>, vector<128x32xf32> -> vector<128x32xf32>
    %60 = tpu.reciprocal %57 {approx = true} : vector<128x1xf32> -> vector<128x1xf32>
    %61 = vector.broadcast %60 : vector<128x1xf32> to vector<128x32xf32>
    %62 = arith.mulf %59, %61 : vector<128x32xf32>
    %63 = arith.truncf %62 : vector<128x32xf32> to vector<128x32xbf16>
    %c0_33 = arith.constant 0 : index
    %c64_34 = arith.constant 64 : index
    %64 = vector.load %arg16[%c0_33, %c64_34] : memref<128x128xbf16, #tpu.memory_space<vmem>>, vector<128x32xbf16>
    tpu.vector_store %arg16[%c0_33, %c64_34], %63 {strides = array<i32>} : memref<128x128xbf16, #tpu.memory_space<vmem>>, vector<128x32xbf16>,
    %65 = vector.extract_strided_slice %10 {offsets = [0, 96], sizes = [128, 32], strides = [1, 1]} : vector<128x128xbf16> to vector<128x32xbf16>
    %c0_35 = arith.constant 0 : index
    %c96 = arith.constant 96 : index
    %66 = vector.load %arg14[%c0_35, %c96] : memref<256x128xbf16, #tpu.memory_space<vmem>>, vector<256x32xbf16>
    %c0_36 = arith.constant 0 : index
    %c96_37 = arith.constant 96 : index
    %67 = vector.load %arg15[%c0_36, %c96_37] : memref<256x128xbf16, #tpu.memory_space<vmem>>, vector<256x32xbf16>
    %cst_38 = arith.constant dense<0.000000e+00> : vector<128x256xf32>
    %68 = tpu.matmul %65, %66, %cst_38 {dimension_numbers = #tpu.dot_dimension_numbers<[1], [1], [0], [0], [0, 0, 1, 0], [], []>} : vector<128x32xbf16>, vector<256x32xbf16>, vector<128x256xf32> -> vector<128x256xf32>
    %cst_39 = arith.constant dense<0xFF800000> : vector<128xf32>
    %69 = vector.multi_reduction <maximumf>, %68, %cst_39 [1] : vector<128x256xf32> to vector<128xf32>
    %70 = vector.shape_cast %69 : vector<128xf32> to vector<128x1xf32>
    %71 = vector.broadcast %70 : vector<128x1xf32> to vector<128x256xf32>
    %72 = arith.subf %68, %71 : vector<128x256xf32>
    %73 = math.exp %72 : vector<128x256xf32>
    %cst_40 = arith.constant dense<0.000000e+00> : vector<128xf32>
    %74 = vector.multi_reduction <add>, %73, %cst_40 [1] : vector<128x256xf32> to vector<128xf32>
    %75 = vector.shape_cast %74 : vector<128xf32> to vector<128x1xf32>
    %76 = arith.truncf %73 : vector<128x256xf32> to vector<128x256xbf16>
    %cst_41 = arith.constant dense<0.000000e+00> : vector<128x32xf32>
    %77 = tpu.matmul %76, %67, %cst_41 {dimension_numbers = #tpu.dot_dimension_numbers<[1], [0], [0], [1], [0, 0, 1, 1], [], []>} : vector<128x256xbf16>, vector<256x32xbf16>, vector<128x32xf32> -> vector<128x32xf32>
    %78 = tpu.reciprocal %75 {approx = true} : vector<128x1xf32> -> vector<128x1xf32>
    %79 = vector.broadcast %78 : vector<128x1xf32> to vector<128x32xf32>
    %80 = arith.mulf %77, %79 : vector<128x32xf32>
    %81 = arith.truncf %80 : vector<128x32xf32> to vector<128x32xbf16>
    %c0_42 = arith.constant 0 : index
    %c96_43 = arith.constant 96 : index
    %82 = vector.load %arg16[%c0_42, %c96_43] : memref<128x128xbf16, #tpu.memory_space<vmem>>, vector<128x32xbf16>
    tpu.vector_store %arg16[%c0_42, %c96_43], %81 {strides = array<i32>} : memref<128x128xbf16, #tpu.memory_space<vmem>>, vector<128x32xbf16>,
    %c0_44 = arith.constant 0 : index
    %c0_45 = arith.constant 0 : index
    %83 = vector.load %arg16[%c0_44, %c0_45] : memref<128x128xbf16, #tpu.memory_space<vmem>>, vector<128x128xbf16>
    %c0_46 = arith.constant 0 : index
    %c0_47 = arith.constant 0 : index
    %84 = vector.load %arg11[%c0_46, %c0_47] : memref<128x128xbf16, #tpu.memory_space<vmem>>, vector<128x128xbf16>
    %cst_48 = arith.constant dense<0.000000e+00> : vector<128x128xf32>
    %85 = tpu.matmul %83, %84, %cst_48 {dimension_numbers = #tpu.dot_dimension_numbers<[1], [0], [0], [1], [0, 0, 1, 1], [], []>} : vector<128x128xbf16>, vector<128x128xbf16>, vector<128x128xf32> -> vector<128x128xf32>
    %c0_49 = arith.constant 0 : index
    %c0_50 = arith.constant 0 : index
    %86 = vector.load %arg12[%c0_49, %c0_50] : memref<1x128xf32, #tpu.memory_space<vmem>>, vector<1x128xf32>
    %87 = vector.broadcast %86 : vector<1x128xf32> to vector<128x128xf32>
    %88 = arith.addf %85, %87 : vector<128x128xf32>
    %c0_51 = arith.constant 0 : index
    %c0_52 = arith.constant 0 : index
    %c0_53 = arith.constant 0 : index
    %89 = vector.load %arg13[%c0_51, %c0_52, %c0_53] : memref<1x128x128xf32, #tpu.memory_space<vmem>>, vector<1x128x128xf32>
    %90 = vector.shape_cast %89 : vector<1x128x128xf32> to vector<128x128xf32>
    %91 = vector.shape_cast %88 : vector<128x128xf32> to vector<1x128x128xf32>
    tpu.vector_store %arg13[%c0_51, %c0_52, %c0_53], %91 {strides = array<i32>} : memref<1x128x128xf32, #tpu.memory_space<vmem>>, vector<1x128x128xf32>,
    return
  }
  func.func @transform_0(%arg0: i32, %arg1: i32) -> (i32, i32, i32) {
    %c0_i32 = arith.constant 0 : i32
    %c0_i32_0 = arith.constant 0 : i32
    return %arg0, %arg1, %c0_i32 : i32, i32, i32
  }
  func.func @transform_1(%arg0: i32, %arg1: i32) -> (i32, i32, i32) {
    %c0_i32 = arith.constant 0 : i32
    %c0_i32_0 = arith.constant 0 : i32
    %c0_i32_1 = arith.constant 0 : i32
    return %arg0, %c0_i32, %c0_i32_0 : i32, i32, i32
  }
  func.func @transform_2(%arg0: i32, %arg1: i32) -> (i32, i32, i32) {
    %c0_i32 = arith.constant 0 : i32
    %c0_i32_0 = arith.constant 0 : i32
    %c0_i32_1 = arith.constant 0 : i32
    return %arg0, %c0_i32, %c0_i32_0 : i32, i32, i32
  }
  func.func @transform_3(%arg0: i32, %arg1: i32) -> (i32, i32) {
    %c0_i32 = arith.constant 0 : i32
    %c0_i32_0 = arith.constant 0 : i32
    %c0_i32_1 = arith.constant 0 : i32
    return %c0_i32, %c0_i32_0 : i32, i32
  }
  func.func @transform_4(%arg0: i32, %arg1: i32) -> (i32, i32) {
    %c0_i32 = arith.constant 0 : i32
    %c0_i32_0 = arith.constant 0 : i32
    %c0_i32_1 = arith.constant 0 : i32
    return %c0_i32, %c0_i32_0 : i32, i32
  }
  func.func @transform_5(%arg0: i32, %arg1: i32) -> (i32, i32) {
    %c0_i32 = arith.constant 0 : i32
    %c0_i32_0 = arith.constant 0 : i32
    %c0_i32_1 = arith.constant 0 : i32
    return %c0_i32, %c0_i32_0 : i32, i32
  }
  func.func @transform_6(%arg0: i32, %arg1: i32) -> (i32, i32) {
    %c0_i32 = arith.constant 0 : i32
    %c0_i32_0 = arith.constant 0 : i32
    %c0_i32_1 = arith.constant 0 : i32
    return %c0_i32, %c0_i32_0 : i32, i32
  }
  func.func @transform_7(%arg0: i32, %arg1: i32) -> (i32, i32) {
    %c0_i32 = arith.constant 0 : i32
    %c0_i32_0 = arith.constant 0 : i32
    %c0_i32_1 = arith.constant 0 : i32
    return %c0_i32, %c0_i32_0 : i32, i32
  }
  func.func @transform_8(%arg0: i32, %arg1: i32) -> (i32, i32) {
    %c0_i32 = arith.constant 0 : i32
    %c0_i32_0 = arith.constant 0 : i32
    %c0_i32_1 = arith.constant 0 : i32
    return %c0_i32, %c0_i32_0 : i32, i32
  }
  func.func @transform_9(%arg0: i32, %arg1: i32) -> (i32, i32) {
    %c0_i32 = arith.constant 0 : i32
    %c0_i32_0 = arith.constant 0 : i32
    %c0_i32_1 = arith.constant 0 : i32
    return %c0_i32, %c0_i32_0 : i32, i32
  }
  func.func @transform_10(%arg0: i32, %arg1: i32) -> (i32, i32) {
    %c0_i32 = arith.constant 0 : i32
    %c0_i32_0 = arith.constant 0 : i32
    %c0_i32_1 = arith.constant 0 : i32
    return %c0_i32, %c0_i32_0 : i32, i32
  }
  func.func @transform_11(%arg0: i32, %arg1: i32) -> (i32, i32, i32) {
    %c0_i32 = arith.constant 0 : i32
    %c0_i32_0 = arith.constant 0 : i32
    return %arg0, %arg1, %c0_i32 : i32, i32, i32
  }
}

</mosaic_0001>

<llo_original>
// kernel: tpu_custom_call.1
$region0: #{tpu_custom_call.1}
  #allocation0 [shape = 'u32[]', space=smem, size = 0x4, offset = 0x4, fixed_abs, tag = 'smem constant byte address 0x4 - core index']
  #allocation1 [shape = 'u32[144,128]{1,0:T(1,128)}', space=vmem, size = 0x12000, scoped, tag = 'internal scratch']
  #allocation2 [shape = 'bf16[256,128]{1,0:T(16,128)(2,1)}', space=vmem, size = 0x10000, scoped, tag = 'scratch operand']
  #allocation3 [shape = 'bf16[256,128]{1,0:T(16,128)(2,1)}', space=vmem, size = 0x10000, scoped, tag = 'scratch operand']
  #allocation4 [shape = 'bf16[128,128]{1,0:T(16,128)(2,1)}', space=vmem, size = 0x8000, scoped, tag = 'scratch operand']
  %s0 = inlined_call_operand.hbm [shape: bf16[2,256,128], index: 0, kind: input, shape index: {}]
  %s1 = inlined_call_operand.hbm [shape: bf16[2,256,128], index: 1, kind: input, shape index: {}]
  %s2 = inlined_call_operand.hbm [shape: bf16[2,256,128], index: 2, kind: input, shape index: {}]
  %s3 = inlined_call_operand.hbm [shape: bf16[128,128], index: 3, kind: input, shape index: {}]
  %s4 = inlined_call_operand.vmem [shape: f32[1,128], index: 4, kind: input, shape index: {}]
  %s5 = inlined_call_operand.hbm [shape: bf16[128,128], index: 5, kind: input, shape index: {}]
  %s6 = inlined_call_operand.vmem [shape: f32[1,128], index: 6, kind: input, shape index: {}]
  %s7 = inlined_call_operand.hbm [shape: bf16[128,128], index: 7, kind: input, shape index: {}]
  %s8 = inlined_call_operand.vmem [shape: f32[1,128], index: 8, kind: input, shape index: {}]
  %s9 = inlined_call_operand.hbm [shape: bf16[128,128], index: 9, kind: input, shape index: {}]
  %s10 = inlined_call_operand.vmem [shape: f32[1,128], index: 10, kind: input, shape index: {}]
  %s11 = inlined_call_operand.hbm [shape: f32[2,256,128], index: 11, kind: output, shape index: {}]
  %s12 = sld [smem:[#allocation0]]
  $region109: #{tpu_custom_call.1} parent=0
    _
  %s14 = ssub.s32 1, %s12
  %s15 = scalar_select 0, %s14, %s12
  $region1: #{tpu_custom_call.1} parent=0
    #allocation5 [shape = 'u8[65536]{0}', space=vmem, size = 0x10000, scoped, tag = 'input window, operand 0']
    #allocation6 [shape = 's32[2]{0}', space=sflag, size = 0x8, scoped, tag = 'scoped memory for tpu_custom_call.1']
    #allocation7 [shape = 's32[2]{0}', space=sflag, size = 0x8, scoped, tag = 'scoped memory for tpu_custom_call.1']
    #allocation8 [shape = 'u8[131072]{0}', space=vmem, size = 0x20000, scoped, tag = 'input window, operand 1']
    #allocation9 [shape = 's32[2]{0}', space=sflag, size = 0x8, scoped, tag = 'scoped memory for tpu_custom_call.1']
    #allocation10 [shape = 'u8[131072]{0}', space=vmem, size = 0x20000, scoped, tag = 'input window, operand 2']
    #allocation11 [shape = 'u8[32768]{0}', space=vmem, size = 0x8000, scoped, tag = 'input window, operand 3, single buffered']
    #allocation12 [shape = 's32[1]{0}', space=sflag, size = 0x4, scoped, tag = 'scoped memory for tpu_custom_call.1']
    #allocation13 [shape = 'u8[32768]{0}', space=vmem, size = 0x8000, scoped, tag = 'input window, operand 5, single buffered']
    #allocation14 [shape = 'u8[32768]{0}', space=vmem, size = 0x8000, scoped, tag = 'input window, operand 7, single buffered']
    #allocation15 [shape = 's32[1]{0}', space=sflag, size = 0x4, scoped, tag = 'scoped memory for tpu_custom_call.1']
    #allocation16 [shape = 'u8[32768]{0}', space=vmem, size = 0x8000, scoped, tag = 'input window, operand 9, single buffered']
    #allocation17 [shape = 'u8[131072]{0}', space=vmem, size = 0x20000, scoped, tag = 'output window, operand 0']
    %16 = vsyncpa [#allocation6], 0
    %s17 = scalar_lea.sflag [#allocation6], 1
    %18 = vsyncpa %s17, 0
    %19 = vsyncpa [#allocation9], 0
    %s20 = scalar_lea.sflag [#allocation9], 1
    %21 = vsyncpa %s20, 0
    %22 = vsyncpa [#allocation12], 0
    %23 = vsyncpa [#allocation15], 0
    %24 = vsyncpa [#allocation7], 0
    %s25 = scalar_lea.sflag [#allocation7], 1
    %26 = vsyncpa %s25, 0
    loop: start=0, step=1, limit=6
    $region2: #{tpu_custom_call.1} parent=1 // loop_pre_header
      _
    $region3: #{tpu_custom_call.1} parent=1 // loop_header
      %s28 = sphi 0, %s32
      %p29 = scmp.ge.s32.totalorder %s28, 6
      %s35 = sphi 0, %s47
      %s36 = sphi 0, %s43
      %s37 = sphi 0, %s35
      %s38 = sphi 0, %s36
      %s39 = sphi 0, %s37
      %s40 = sphi 0, %s38
      %s52 = sphi 0, %s54
      %s55 = sphi 0, %s52
      %s56 = sphi 0, %s55
      %s72 = sphi 0, %s56
      %s78 = sphi 0, %s80
      %s81 = sphi 0, %s78
      %s82 = sphi 0, %s81
      %s98 = sphi 0, %s82
      %s104 = sphi 0, %s106
      %s107 = sphi 0, %s104
      %s108 = sphi 0, %s107
      %s124 = sphi 0, %s108
      %s128 = sphi 0, %s128
      %s130 = sphi 0, %s128
      %s131 = sphi 0, %s130
      %s145 = sphi 0, %s131
      %s149 = sphi 0, %s149
      %s151 = sphi 0, %s149
      %s152 = sphi 0, %s151
      %s166 = sphi 0, %s152
      %s170 = sphi 0, %s170
      %s172 = sphi 0, %s170
      %s173 = sphi 0, %s172
      %s187 = sphi 0, %s173
      %s191 = sphi 0, %s191
      %s193 = sphi 0, %s191
      %s194 = sphi 0, %s193
      %s208 = sphi 0, %s194
      %s212 = sphi 0, %s212
      %s214 = sphi 0, %s212
      %s215 = sphi 0, %s214
      %s229 = sphi 0, %s215
      %s233 = sphi 0, %s233
      %s235 = sphi 0, %s233
      %s236 = sphi 0, %s235
      %s250 = sphi 0, %s236
      %s254 = sphi 0, %s254
      %s256 = sphi 0, %s254
      %s257 = sphi 0, %s256
      %s271 = sphi 0, %s257
      %s275 = sphi 0, %s275
      %s277 = sphi 0, %s275
      %s278 = sphi 0, %s277
      %s292 = sphi 0, %s278
      %s300 = sphi 0, %s302
      %s303 = sphi 0, %s300
      %s304 = sphi 0, %s303
      %s320 = sphi 0, %s304
    $region4: #{tpu_custom_call.1} parent=1 // loop_header_branch
      %31 = sbr.rel (%p29) target = $region8
    $region5: #{tpu_custom_call.1} parent=1 // loop_body
      %s33 = ssub.s32 %s28, 1
      %s34 = ssub.s32 %s28, 2
      %s41 = sadd.s32 1, %s36
      %p42 = scmp.ge.s32.totalorder %s41, 2
      %s43 = scalar_select %p42, 0, %s41
      %s44 = sadd.s32 1, %s35
      %s45 = scalar_select %p42, %s44, %s35
      %p46 = scmp.ge.s32.totalorder %s45, 2
      %s47 = scalar_select %p46, 0, %s45
      %s48 = ssub.s32 %s35, %s47
      %s49 = ssub.s32 %s36, %s43
      %s50 = sor.u32 %s48, %s49
      %p51 = scmp.eq.s32.totalorder %s50, 0
      %s53 = sadd.s32 %s52, 1
      %s54 = scalar_select %p51, %s52, %s53
      %p57 = pneg %p51
      %p58 = scmp.eq.s32.totalorder %s28, 3
      %p59 = por %p57, %p58
      %p60 = scmp.ne.s32.totalorder %s52, %s55
      %p61 = scmp.eq.s32.totalorder %s28, 0
      %p62 = por %p60, %p61
      %p63 = scmp.ne.s32.totalorder %s52, %s55
      %p64 = scmp.eq.s32.totalorder %s33, 3
      %p65 = por %p63, %p64
      %p66 = scmp.ne.s32.totalorder %s55, %s56
      %p67 = scmp.eq.s32.totalorder %s33, 0
      %p68 = por %p66, %p67
      %p69 = scmp.ne.s32.totalorder %s55, %s56
      %p70 = scmp.eq.s32.totalorder %s34, 3
      %p71 = por %p69, %p70
      %p73 = scmp.ne.s32.totalorder %s56, %s72
      %p74 = scmp.eq.s32.totalorder %s34, 0
      %p75 = por %p73, %p74
      %s76 = ssub.s32 %s35, %s47
      %p77 = scmp.eq.s32.totalorder %s76, 0
      %s79 = sadd.s32 %s78, 1
      %s80 = scalar_select %p77, %s78, %s79
      %p83 = pneg %p77
      %p84 = scmp.eq.s32.totalorder %s28, 3
      %p85 = por %p83, %p84
      %p86 = scmp.ne.s32.totalorder %s78, %s81
      %p87 = scmp.eq.s32.totalorder %s28, 0
      %p88 = por %p86, %p87
      %p89 = scmp.ne.s32.totalorder %s78, %s81
      %p90 = scmp.eq.s32.totalorder %s33, 3
      %p91 = por %p89, %p90
      %p92 = scmp.ne.s32.totalorder %s81, %s82
      %p93 = scmp.eq.s32.totalorder %s33, 0
      %p94 = por %p92, %p93
      %p95 = scmp.ne.s32.totalorder %s81, %s82
      %p96 = scmp.eq.s32.totalorder %s34, 3
      %p97 = por %p95, %p96
      %p99 = scmp.ne.s32.totalorder %s82, %s98
      %p100 = scmp.eq.s32.totalorder %s34, 0
      %p101 = por %p99, %p100
      %s102 = ssub.s32 %s35, %s47
      %p103 = scmp.eq.s32.totalorder %s102, 0
      %s105 = sadd.s32 %s104, 1
      %s106 = scalar_select %p103, %s104, %s105
      %p109 = pneg %p103
      %p110 = scmp.eq.s32.totalorder %s28, 3
      %p111 = por %p109, %p110
      %p112 = scmp.ne.s32.totalorder %s104, %s107
      %p113 = scmp.eq.s32.totalorder %s28, 0
      %p114 = por %p112, %p113
      %p115 = scmp.ne.s32.totalorder %s104, %s107
      %p116 = scmp.eq.s32.totalorder %s33, 3
      %p117 = por %p115, %p116
      %p118 = scmp.ne.s32.totalorder %s107, %s108
      %p119 = scmp.eq.s32.totalorder %s33, 0
      %p120 = por %p118, %p119
      %p121 = scmp.ne.s32.totalorder %s107, %s108
      %p122 = scmp.eq.s32.totalorder %s34, 3
      %p123 = por %p121, %p122
      %p125 = scmp.ne.s32.totalorder %s108, %s124
      %p126 = scmp.eq.s32.totalorder %s34, 0
      %p127 = por %p125, %p126
      %s129 = sadd.s32 %s128, 1
      %p132 = scmp.eq.s32.totalorder %s28, 3
      %p133 = scmp.ne.s32.totalorder %s128, %s130
      %p134 = scmp.eq.s32.totalorder %s28, 0
      %p135 = por %p133, %p134
      %p136 = scmp.ne.s32.totalorder %s128, %s130
      %p137 = scmp.eq.s32.totalorder %s33, 3
      %p138 = por %p136, %p137
      %p139 = scmp.ne.s32.totalorder %s130, %s131
      %p140 = scmp.eq.s32.totalorder %s33, 0
      %p141 = por %p139, %p140
      %p142 = scmp.ne.s32.totalorder %s130, %s131
      %p143 = scmp.eq.s32.totalorder %s34, 3
      %p144 = por %p142, %p143
      %p146 = scmp.ne.s32.totalorder %s131, %s145
      %p147 = scmp.eq.s32.totalorder %s34, 0
      %p148 = por %p146, %p147
      %s150 = sadd.s32 %s149, 1
      %p153 = scmp.eq.s32.totalorder %s28, 3
      %p154 = scmp.ne.s32.totalorder %s149, %s151
      %p155 = scmp.eq.s32.totalorder %s28, 0
      %p156 = por %p154, %p155
      %p157 = scmp.ne.s32.totalorder %s149, %s151
      %p158 = scmp.eq.s32.totalorder %s33, 3
      %p159 = por %p157, %p158
      %p160 = scmp.ne.s32.totalorder %s151, %s152
      %p161 = scmp.eq.s32.totalorder %s33, 0
      %p162 = por %p160, %p161
      %p163 = scmp.ne.s32.totalorder %s151, %s152
      %p164 = scmp.eq.s32.totalorder %s34, 3
      %p165 = por %p163, %p164
      %p167 = scmp.ne.s32.totalorder %s152, %s166
      %p168 = scmp.eq.s32.totalorder %s34, 0
      %p169 = por %p167, %p168
      %s171 = sadd.s32 %s170, 1
      %p174 = scmp.eq.s32.totalorder %s28, 3
      %p175 = scmp.ne.s32.totalorder %s170, %s172
      %p176 = scmp.eq.s32.totalorder %s28, 0
      %p177 = por %p175, %p176
      %p178 = scmp.ne.s32.totalorder %s170, %s172
      %p179 = scmp.eq.s32.totalorder %s33, 3
      %p180 = por %p178, %p179
      %p181 = scmp.ne.s32.totalorder %s172, %s173
      %p182 = scmp.eq.s32.totalorder %s33, 0
      %p183 = por %p181, %p182
      %p184 = scmp.ne.s32.totalorder %s172, %s173
      %p185 = scmp.eq.s32.totalorder %s34, 3
      %p186 = por %p184, %p185
      %p188 = scmp.ne.s32.totalorder %s173, %s187
      %p189 = scmp.eq.s32.totalorder %s34, 0
      %p190 = por %p188, %p189
      %s192 = sadd.s32 %s191, 1
      %p195 = scmp.eq.s32.totalorder %s28, 3
      %p196 = scmp.ne.s32.totalorder %s191, %s193
      %p197 = scmp.eq.s32.totalorder %s28, 0
      %p198 = por %p196, %p197
      %p199 = scmp.ne.s32.totalorder %s191, %s193
      %p200 = scmp.eq.s32.totalorder %s33, 3
      %p201 = por %p199, %p200
      %p202 = scmp.ne.s32.totalorder %s193, %s194
      %p203 = scmp.eq.s32.totalorder %s33, 0
      %p204 = por %p202, %p203
      %p205 = scmp.ne.s32.totalorder %s193, %s194
      %p206 = scmp.eq.s32.totalorder %s34, 3
      %p207 = por %p205, %p206
      %p209 = scmp.ne.s32.totalorder %s194, %s208
      %p210 = scmp.eq.s32.totalorder %s34, 0
      %p211 = por %p209, %p210
      %s213 = sadd.s32 %s212, 1
      %p216 = scmp.eq.s32.totalorder %s28, 3
      %p217 = scmp.ne.s32.totalorder %s212, %s214
      %p218 = scmp.eq.s32.totalorder %s28, 0
      %p219 = por %p217, %p218
      %p220 = scmp.ne.s32.totalorder %s212, %s214
      %p221 = scmp.eq.s32.totalorder %s33, 3
      %p222 = por %p220, %p221
      %p223 = scmp.ne.s32.totalorder %s214, %s215
      %p224 = scmp.eq.s32.totalorder %s33, 0
      %p225 = por %p223, %p224
      %p226 = scmp.ne.s32.totalorder %s214, %s215
      %p227 = scmp.eq.s32.totalorder %s34, 3
      %p228 = por %p226, %p227
      %p230 = scmp.ne.s32.totalorder %s215, %s229
      %p231 = scmp.eq.s32.totalorder %s34, 0
      %p232 = por %p230, %p231
      %s234 = sadd.s32 %s233, 1
      %p237 = scmp.eq.s32.totalorder %s28, 3
      %p238 = scmp.ne.s32.totalorder %s233, %s235
      %p239 = scmp.eq.s32.totalorder %s28, 0
      %p240 = por %p238, %p239
      %p241 = scmp.ne.s32.totalorder %s233, %s235
      %p242 = scmp.eq.s32.totalorder %s33, 3
      %p243 = por %p241, %p242
      %p244 = scmp.ne.s32.totalorder %s235, %s236
      %p245 = scmp.eq.s32.totalorder %s33, 0
      %p246 = por %p244, %p245
      %p247 = scmp.ne.s32.totalorder %s235, %s236
      %p248 = scmp.eq.s32.totalorder %s34, 3
      %p249 = por %p247, %p248
      %p251 = scmp.ne.s32.totalorder %s236, %s250
      %p252 = scmp.eq.s32.totalorder %s34, 0
      %p253 = por %p251, %p252
      %s255 = sadd.s32 %s254, 1
      %p258 = scmp.eq.s32.totalorder %s28, 3
      %p259 = scmp.ne.s32.totalorder %s254, %s256
      %p260 = scmp.eq.s32.totalorder %s28, 0
      %p261 = por %p259, %p260
      %p262 = scmp.ne.s32.totalorder %s254, %s256
      %p263 = scmp.eq.s32.totalorder %s33, 3
      %p264 = por %p262, %p263
      %p265 = scmp.ne.s32.totalorder %s256, %s257
      %p266 = scmp.eq.s32.totalorder %s33, 0
      %p267 = por %p265, %p266
      %p268 = scmp.ne.s32.totalorder %s256, %s257
      %p269 = scmp.eq.s32.totalorder %s34, 3
      %p270 = por %p268, %p269
      %p272 = scmp.ne.s32.totalorder %s257, %s271
      %p273 = scmp.eq.s32.totalorder %s34, 0
      %p274 = por %p272, %p273
      %s276 = sadd.s32 %s275, 1
      %p279 = scmp.eq.s32.totalorder %s28, 3
      %p280 = scmp.ne.s32.totalorder %s275, %s277
      %p281 = scmp.eq.s32.totalorder %s28, 0
      %p282 = por %p280, %p281
      %p283 = scmp.ne.s32.totalorder %s275, %s277
      %p284 = scmp.eq.s32.totalorder %s33, 3
      %p285 = por %p283, %p284
      %p286 = scmp.ne.s32.totalorder %s277, %s278
      %p287 = scmp.eq.s32.totalorder %s33, 0
      %p288 = por %p286, %p287
      %p289 = scmp.ne.s32.totalorder %s277, %s278
      %p290 = scmp.eq.s32.totalorder %s34, 3
      %p291 = por %p289, %p290
      %p293 = scmp.ne.s32.totalorder %s278, %s292
      %p294 = scmp.eq.s32.totalorder %s34, 0
      %p295 = por %p293, %p294
      %s296 = ssub.s32 %s35, %s47
      %s297 = ssub.s32 %s36, %s43
      %s298 = sor.u32 %s296, %s297
      %p299 = scmp.eq.s32.totalorder %s298, 0
      %s301 = sadd.s32 %s300, 1
      %s302 = scalar_select %p299, %s300, %s301
      %p305 = pneg %p299
      %p306 = scmp.eq.s32.totalorder %s28, 3
      %p307 = por %p305, %p306
      %p308 = scmp.ne.s32.totalorder %s300, %s303
      %p309 = scmp.eq.s32.totalorder %s28, 0
      %p310 = por %p308, %p309
      %p311 = scmp.ne.s32.totalorder %s300, %s303
      %p312 = scmp.eq.s32.totalorder %s33, 3
      %p313 = por %p311, %p312
      %p314 = scmp.ne.s32.totalorder %s303, %s304
      %p315 = scmp.eq.s32.totalorder %s33, 0
      %p316 = por %p314, %p315
      %p317 = scmp.ne.s32.totalorder %s303, %s304
      %p318 = scmp.eq.s32.totalorder %s34, 3
      %p319 = por %p317, %p318
      %p321 = scmp.ne.s32.totalorder %s304, %s320
      %p322 = scmp.eq.s32.totalorder %s34, 0
      %p323 = por %p321, %p322
      %p324 = scmp.le.s32.totalorder 1, %s28
      %p325 = scmp.lt.s32.totalorder %s28, 5
      %p326 = pnand %p324, %p325
      %p327 = pneg %p326
      // Predicated region
      $region9: #{tpu_custom_call.1} parent=5 // pred_check
        _
      $region10: #{tpu_custom_call.1} parent=5 // pred_check_branch
        %329 = sbr.rel (%p326) target = $region12
      $region11: #{tpu_custom_call.1} parent=5 // pred_region
        %s330 = ssub.s32 %s28, 1
        // Predicated region
        $region13: #{tpu_custom_call.1} parent=11 // pred_check
          %p331 = pneg %p141
        $region14: #{tpu_custom_call.1} parent=11 // pred_check_branch
          %333 = sbr.rel (%p331) target = $region16
        $region15: #{tpu_custom_call.1} parent=11 // pred_region
          %s335 = ssub.s32 1024, 1024
          %336 = vsyncadd [#allocation12], %s335
          %s337 = sshll.u32 [#allocation11], 4
          %s338 = int_to_ptr.vmem [resolvable:$true] %s337
          %343 = dma.hbm_to_vmem [thread:$0]  %s3, 1024, %s338, [#allocation12], 64, 64, 4
        $region16: #{tpu_custom_call.1} parent=11 // pred_fallthru
          _
        // Predicated region
        $region17: #{tpu_custom_call.1} parent=11 // pred_check
          %p344 = pneg %p162
        $region18: #{tpu_custom_call.1} parent=11 // pred_check_branch
          %346 = sbr.rel (%p344) target = $region20
        $region19: #{tpu_custom_call.1} parent=11 // pred_region
          _
        $region20: #{tpu_custom_call.1} parent=11 // pred_fallthru
          _
        // Predicated region
        $region21: #{tpu_custom_call.1} parent=11 // pred_check
          %p347 = pneg %p183
        $region22: #{tpu_custom_call.1} parent=11 // pred_check_branch
          %349 = sbr.rel (%p347) target = $region24
        $region23: #{tpu_custom_call.1} parent=11 // pred_region
          %s351 = ssub.s32 1024, 1024
          %352 = vsyncadd [#allocation12], %s351
          %s353 = sshll.u32 [#allocation13], 4
          %s354 = int_to_ptr.vmem [resolvable:$true] %s353
          %359 = dma.hbm_to_vmem [thread:$0]  %s5, 1024, %s354, [#allocation12], 64, 64, 4
        $region24: #{tpu_custom_call.1} parent=11 // pred_fallthru
          _
        // Predicated region
        $region25: #{tpu_custom_call.1} parent=11 // pred_check
          %p360 = pneg %p204
        $region26: #{tpu_custom_call.1} parent=11 // pred_check_branch
          %362 = sbr.rel (%p360) target = $region28
        $region27: #{tpu_custom_call.1} parent=11 // pred_region
          _
        $region28: #{tpu_custom_call.1} parent=11 // pred_fallthru
          _
        // Predicated region
        $region29: #{tpu_custom_call.1} parent=11 // pred_check
          %p363 = pneg %p225
        $region30: #{tpu_custom_call.1} parent=11 // pred_check_branch
          %365 = sbr.rel (%p363) target = $region32
        $region31: #{tpu_custom_call.1} parent=11 // pred_region
          %s367 = ssub.s32 1024, 1024
          %368 = vsyncadd [#allocation15], %s367
          %s369 = sshll.u32 [#allocation14], 4
          %s370 = int_to_ptr.vmem [resolvable:$true] %s369
          %375 = dma.hbm_to_vmem [thread:$0]  %s7, 1024, %s370, [#allocation15], 64, 64, 4
        $region32: #{tpu_custom_call.1} parent=11 // pred_fallthru
          _
        // Predicated region
        $region33: #{tpu_custom_call.1} parent=11 // pred_check
          %p376 = pneg %p246
        $region34: #{tpu_custom_call.1} parent=11 // pred_check_branch
          %378 = sbr.rel (%p376) target = $region36
        $region35: #{tpu_custom_call.1} parent=11 // pred_region
          _
        $region36: #{tpu_custom_call.1} parent=11 // pred_fallthru
          _
        // Predicated region
        $region37: #{tpu_custom_call.1} parent=11 // pred_check
          %p379 = pneg %p267
        $region38: #{tpu_custom_call.1} parent=11 // pred_check_branch
          %381 = sbr.rel (%p379) target = $region40
        $region39: #{tpu_custom_call.1} parent=11 // pred_region
          %s383 = ssub.s32 1024, 1024
          %384 = vsyncadd [#allocation15], %s383
          %s385 = sshll.u32 [#allocation16], 4
          %s386 = int_to_ptr.vmem [resolvable:$true] %s385
          %391 = dma.hbm_to_vmem [thread:$0]  %s9, 1024, %s386, [#allocation15], 64, 64, 4
        $region40: #{tpu_custom_call.1} parent=11 // pred_fallthru
          _
        // Predicated region
        $region41: #{tpu_custom_call.1} parent=11 // pred_check
          %p392 = pneg %p288
        $region42: #{tpu_custom_call.1} parent=11 // pred_check_branch
          %394 = sbr.rel (%p392) target = $region44
        $region43: #{tpu_custom_call.1} parent=11 // pred_region
          _
        $region44: #{tpu_custom_call.1} parent=11 // pred_fallthru
          _
      $region12: #{tpu_custom_call.1} parent=5 // pred_fallthru
        _
      %p395 = scmp.lt.s32.totalorder %s28, 4
      // Predicated region
      $region45: #{tpu_custom_call.1} parent=5 // pred_check
        %p396 = pneg %p395
      $region46: #{tpu_custom_call.1} parent=5 // pred_check_branch
        %398 = sbr.rel (%p396) target = $region48
      $region47: #{tpu_custom_call.1} parent=5 // pred_region
        // Predicated region
        $region49: #{tpu_custom_call.1} parent=47 // pred_check
          %p399 = pneg %p62
        $region50: #{tpu_custom_call.1} parent=47 // pred_check_branch
          %401 = sbr.rel (%p399) target = $region52
        $region51: #{tpu_custom_call.1} parent=47 // pred_region
          %s402 = sand.u32 %s52, 1
          %s403 = scalar_lea.sflag [#allocation6], %s402
          %s404 = sand.u32 %s52, 1
          %s405 = smul.addr %s404, 64
          %s406 = scalar_lea.vmem [#allocation5], %s405
          %s407 = smul.u32 16, %s36
          %s409 = ssub.s32 1024, 1024
          %410 = vsyncadd %s403, %s409
          %s411 = smul.addr %s35, 32
          %s412 = sadd.s32 %s407, %s411
          %s413 = smul.addr %s412, 64
          %s414 = scalar_lea.hbm %s0, %s413
          %s415 = sshll.u32 %s406, 4
          %s416 = int_to_ptr.vmem [resolvable:$true] %s415
          %421 = dma.hbm_to_vmem [thread:$0]  %s414, 1024, %s416, %s403, 64, 64, 4
        $region52: #{tpu_custom_call.1} parent=47 // pred_fallthru
          _
        // Predicated region
        $region53: #{tpu_custom_call.1} parent=47 // pred_check
          %p422 = pneg %p88
        $region54: #{tpu_custom_call.1} parent=47 // pred_check_branch
          %424 = sbr.rel (%p422) target = $region56
        $region55: #{tpu_custom_call.1} parent=47 // pred_region
          %s425 = sand.u32 %s28, 1
          %s426 = scalar_lea.sflag [#allocation9], %s425
          %s427 = sand.u32 %s78, 1
          %s428 = smul.addr %s427, 128
          %s429 = scalar_lea.vmem [#allocation8], %s428
          %s431 = ssub.s32 2048, 2048
          %432 = vsyncadd %s426, %s431
          %s433 = smul.addr %s35, 32
          %s434 = smul.addr %s433, 64
          %s435 = scalar_lea.hbm %s1, %s434
          %s436 = sshll.u32 %s429, 4
          %s437 = int_to_ptr.vmem [resolvable:$true] %s436
          %442 = dma.hbm_to_vmem [thread:$0]  %s435, 2048, %s437, %s426, 64, 64, 4
        $region56: #{tpu_custom_call.1} parent=47 // pred_fallthru
          _
        // Predicated region
        $region57: #{tpu_custom_call.1} parent=47 // pred_check
          %p443 = pneg %p114
        $region58: #{tpu_custom_call.1} parent=47 // pred_check_branch
          %445 = sbr.rel (%p443) target = $region60
        $region59: #{tpu_custom_call.1} parent=47 // pred_region
          %s446 = sand.u32 %s28, 1
          %s447 = scalar_lea.sflag [#allocation9], %s446
          %s448 = sand.u32 %s104, 1
          %s449 = smul.addr %s448, 128
          %s450 = scalar_lea.vmem [#allocation10], %s449
          %s452 = ssub.s32 2048, 2048
          %453 = vsyncadd %s447, %s452
          %s454 = smul.addr %s35, 32
          %s455 = smul.addr %s454, 64
          %s456 = scalar_lea.hbm %s2, %s455
          %s457 = sshll.u32 %s450, 4
          %s458 = int_to_ptr.vmem [resolvable:$true] %s457
          %463 = dma.hbm_to_vmem [thread:$0]  %s456, 2048, %s458, %s447, 64, 64, 4
        $region60: #{tpu_custom_call.1} parent=47 // pred_fallthru
          _
      $region48: #{tpu_custom_call.1} parent=5 // pred_fallthru
        _
      %p464 = scmp.le.s32.totalorder 1, %s28
      %p465 = scmp.lt.s32.totalorder %s28, 5
      %p466 = pnand %p464, %p465
      %p467 = pneg %p466
      // Predicated region
      $region61: #{tpu_custom_call.1} parent=5 // pred_check
        _
      $region62: #{tpu_custom_call.1} parent=5 // pred_check_branch
        %469 = sbr.rel (%p466) target = $region64
      $region63: #{tpu_custom_call.1} parent=5 // pred_region
        %s470 = ssub.s32 %s28, 1
        %s471 = sand.u32 %s55, 1
        %s472 = scalar_lea.sflag [#allocation6], %s471
        %s473 = sand.u32 %s55, 1
        %s474 = smul.addr %s473, 64
        %s475 = scalar_lea.vmem [#allocation5], %s474
        // Predicated region
        $region65: #{tpu_custom_call.1} parent=63 // pred_check
          %p476 = pneg %p68
        $region66: #{tpu_custom_call.1} parent=63 // pred_check_branch
          %478 = sbr.rel (%p476) target = $region68
        $region67: #{tpu_custom_call.1} parent=63 // pred_region
          %479 = dma.done %s472, 1024
        $region68: #{tpu_custom_call.1} parent=63 // pred_fallthru
          _
        %s480 = sand.u32 %s33, 1
        %s481 = scalar_lea.sflag [#allocation9], %s480
        %s482 = sand.u32 %s81, 1
        %s483 = smul.addr %s482, 128
        %s484 = scalar_lea.vmem [#allocation8], %s483
        // Predicated region
        $region69: #{tpu_custom_call.1} parent=63 // pred_check
          %p485 = pneg %p94
        $region70: #{tpu_custom_call.1} parent=63 // pred_check_branch
          %487 = sbr.rel (%p485) target = $region72
        $region71: #{tpu_custom_call.1} parent=63 // pred_region
          %488 = dma.done %s481, 2048
        $region72: #{tpu_custom_call.1} parent=63 // pred_fallthru
          _
        %s489 = sand.u32 %s33, 1
        %s490 = scalar_lea.sflag [#allocation9], %s489
        %s491 = sand.u32 %s107, 1
        %s492 = smul.addr %s491, 128
        %s493 = scalar_lea.vmem [#allocation10], %s492
        // Predicated region
        $region73: #{tpu_custom_call.1} parent=63 // pred_check
          %p494 = pneg %p120
        $region74: #{tpu_custom_call.1} parent=63 // pred_check_branch
          %496 = sbr.rel (%p494) target = $region76
        $region75: #{tpu_custom_call.1} parent=63 // pred_region
          %497 = dma.done %s490, 2048
        $region76: #{tpu_custom_call.1} parent=63 // pred_fallthru
          _
        // Predicated region
        $region77: #{tpu_custom_call.1} parent=63 // pred_check
          %p498 = pneg %p141
        $region78: #{tpu_custom_call.1} parent=63 // pred_check_branch
          %500 = sbr.rel (%p498) target = $region80
        $region79: #{tpu_custom_call.1} parent=63 // pred_region
          %501 = dma.done [#allocation12], 1024
        $region80: #{tpu_custom_call.1} parent=63 // pred_fallthru
          _
        // Predicated region
        $region81: #{tpu_custom_call.1} parent=63 // pred_check
          %p502 = pneg %p183
        $region82: #{tpu_custom_call.1} parent=63 // pred_check_branch
          %504 = sbr.rel (%p502) target = $region84
        $region83: #{tpu_custom_call.1} parent=63 // pred_region
          %505 = dma.done [#allocation12], 1024
        $region84: #{tpu_custom_call.1} parent=63 // pred_fallthru
          _
        // Predicated region
        $region85: #{tpu_custom_call.1} parent=63 // pred_check
          %p506 = pneg %p225
        $region86: #{tpu_custom_call.1} parent=63 // pred_check_branch
          %508 = sbr.rel (%p506) target = $region88
        $region87: #{tpu_custom_call.1} parent=63 // pred_region
          %509 = dma.done [#allocation15], 1024
        $region88: #{tpu_custom_call.1} parent=63 // pred_fallthru
          _
        // Predicated region
        $region89: #{tpu_custom_call.1} parent=63 // pred_check
          %p510 = pneg %p267
        $region90: #{tpu_custom_call.1} parent=63 // pred_check_branch
          %512 = sbr.rel (%p510) target = $region92
        $region91: #{tpu_custom_call.1} parent=63 // pred_region
          %513 = dma.done [#allocation15], 1024
        $region92: #{tpu_custom_call.1} parent=63 // pred_fallthru
          _
        %s514 = sand.u32 %s55, 1
        %s515 = scalar_lea.sflag [#allocation6], %s514
        %s516 = sand.u32 %s55, 1
        %s517 = smul.addr %s516, 64
        %s518 = scalar_lea.vmem [#allocation5], %s517
        %p519 = pneg %p68
        %p520 = pneg %p65
        %s521 = sand.u32 %s33, 1
        %s522 = scalar_lea.sflag [#allocation9], %s521
        %s523 = sand.u32 %s81, 1
        %s524 = smul.addr %s523, 128
        %s525 = scalar_lea.vmem [#allocation8], %s524
        %p526 = pneg %p94
        %p527 = pneg %p91
        %s528 = sand.u32 %s33, 1
        %s529 = scalar_lea.sflag [#allocation9], %s528
        %s530 = sand.u32 %s107, 1
        %s531 = smul.addr %s530, 128
        %s532 = scalar_lea.vmem [#allocation10], %s531
        %p533 = pneg %p120
        %p534 = pneg %p117
        %p535 = pneg %p141
        %p536 = pneg %p138
        %p537 = pneg %p162
        %p538 = pneg %p159
        %p539 = pneg %p183
        %p540 = pneg %p180
        %p541 = pneg %p204
        %p542 = pneg %p201
        %p543 = pneg %p225
        %p544 = pneg %p222
        %p545 = pneg %p246
        %p546 = pneg %p243
        %p547 = pneg %p267
        %p548 = pneg %p264
        %p549 = pneg %p288
        %p550 = pneg %p285
        %p551 = pneg %p316
        %p552 = pneg %p313
        %s553 = sand.u32 %s303, 1
        %s554 = scalar_lea.sflag [#allocation7], %s553
        %s555 = sand.u32 %s303, 1
        %s556 = smul.addr %s555, 128
        %s557 = scalar_lea.vmem [#allocation17], %s556
        %s558 = smul.u32 16, %s38
        %s559 = smul.u32 16, %s38
        %p561 = scmp.eq.s32.totalorder %s38, 0
        // Predicated region
        $region93: #{tpu_custom_call.1} parent=63 // pred_check
          %p562 = pneg %p561
        $region94: #{tpu_custom_call.1} parent=63 // pred_check_branch
          %564 = sbr.rel (%p562) target = $region96
        $region95: #{tpu_custom_call.1} parent=63 // pred_region
          %v565 = vld [vmem:[%s484] sm:$0xf]
          %v566 = vld [vmem:[%s484 + $0x4] sm:$0xf]
          %v567 = vld [vmem:[%s484 + $0x8] sm:$0xf]
          %v568 = vld [vmem:[%s484 + $0xc] sm:$0xf]
          %v569 = vld [vmem:[%s484 + $0x10] sm:$0xf]
          %v570 = vld [vmem:[%s484 + $0x14] sm:$0xf]
          %v571 = vld [vmem:[%s484 + $0x18] sm:$0xf]
          %v572 = vld [vmem:[%s484 + $0x1c] sm:$0xf]
          %v573 = vld [vmem:[%s484 + $0x20] sm:$0xf]
          %v574 = vld [vmem:[%s484 + $0x24] sm:$0xf]
          %v575 = vld [vmem:[%s484 + $0x28] sm:$0xf]
          %v576 = vld [vmem:[%s484 + $0x2c] sm:$0xf]
          %v577 = vld [vmem:[%s484 + $0x30] sm:$0xf]
          %v578 = vld [vmem:[%s484 + $0x34] sm:$0xf]
          %v579 = vld [vmem:[%s484 + $0x38] sm:$0xf]
          %v580 = vld [vmem:[%s484 + $0x3c] sm:$0xf]
          %v581 = vld [vmem:[%s484 + $0x40] sm:$0xf]
          %v582 = vld [vmem:[%s484 + $0x44] sm:$0xf]
          %v583 = vld [vmem:[%s484 + $0x48] sm:$0xf]
          %v584 = vld [vmem:[%s484 + $0x4c] sm:$0xf]
          %v585 = vld [vmem:[%s484 + $0x50] sm:$0xf]
          %v586 = vld [vmem:[%s484 + $0x54] sm:$0xf]
          %v587 = vld [vmem:[%s484 + $0x58] sm:$0xf]
          %v588 = vld [vmem:[%s484 + $0x5c] sm:$0xf]
          %v589 = vld [vmem:[%s484 + $0x60] sm:$0xf]
          %v590 = vld [vmem:[%s484 + $0x64] sm:$0xf]
          %v591 = vld [vmem:[%s484 + $0x68] sm:$0xf]
          %v592 = vld [vmem:[%s484 + $0x6c] sm:$0xf]
          %v593 = vld [vmem:[%s484 + $0x70] sm:$0xf]
          %v594 = vld [vmem:[%s484 + $0x74] sm:$0xf]
          %v595 = vld [vmem:[%s484 + $0x78] sm:$0xf]
          %v596 = vld [vmem:[%s484 + $0x7c] sm:$0xf]
          %v597 = vld [vmem:[#allocation13] sm:$0xf]
          %v598 = vld [vmem:[#allocation13 + $0x4] sm:$0xf]
          %v599 = vld [vmem:[#allocation13 + $0x8] sm:$0xf]
          %v600 = vld [vmem:[#allocation13 + $0xc] sm:$0xf]
          %v601 = vld [vmem:[#allocation13 + $0x10] sm:$0xf]
          %v602 = vld [vmem:[#allocation13 + $0x14] sm:$0xf]
          %v603 = vld [vmem:[#allocation13 + $0x18] sm:$0xf]
          %v604 = vld [vmem:[#allocation13 + $0x1c] sm:$0xf]
          %v605 = vld [vmem:[#allocation13 + $0x20] sm:$0xf]
          %v606 = vld [vmem:[#allocation13 + $0x24] sm:$0xf]
          %v607 = vld [vmem:[#allocation13 + $0x28] sm:$0xf]
          %v608 = vld [vmem:[#allocation13 + $0x2c] sm:$0xf]
          %v609 = vld [vmem:[#allocation13 + $0x30] sm:$0xf]
          %v610 = vld [vmem:[#allocation13 + $0x34] sm:$0xf]
          %v611 = vld [vmem:[#allocation13 + $0x38] sm:$0xf]
          %v612 = vld [vmem:[#allocation13 + $0x3c] sm:$0xf]
          %v613 = vld [vmem:[%s6] sm:$0x1]
          %v615 = vlaneseq
          %v616 = vshrl.u32 %v615, 7
          %v617 = vsub.s32 0, %v616
          %v618 = vrot.slane %v613, %v617
          %v652 = vunpack.c.l.b16 %v565
          %v653 = vunpack.c.l.b16 %v566
          %v654 = vunpack.c.l.b16 %v567
          %v655 = vunpack.c.l.b16 %v568
          %v656 = vunpack.c.l.b16 %v569
          %v657 = vunpack.c.l.b16 %v570
          %v658 = vunpack.c.l.b16 %v571
          %v659 = vunpack.c.l.b16 %v572
          %v660 = vunpack.c.l.b16 %v573
          %v661 = vunpack.c.l.b16 %v574
          %v662 = vunpack.c.l.b16 %v575
          %v663 = vunpack.c.l.b16 %v576
          %v664 = vunpack.c.l.b16 %v577
          %v665 = vunpack.c.l.b16 %v578
          %v666 = vunpack.c.l.b16 %v579
          %v667 = vunpack.c.l.b16 %v580
          %v668 = vunpack.c.l.b16 %v581
          %v669 = vunpack.c.l.b16 %v582
          %v670 = vunpack.c.l.b16 %v583
          %v671 = vunpack.c.l.b16 %v584
          %v672 = vunpack.c.l.b16 %v585
          %v673 = vunpack.c.l.b16 %v586
          %v674 = vunpack.c.l.b16 %v587
          %v675 = vunpack.c.l.b16 %v588
          %v676 = vunpack.c.l.b16 %v589
          %v677 = vunpack.c.l.b16 %v590
          %v678 = vunpack.c.l.b16 %v591
          %v679 = vunpack.c.l.b16 %v592
          %v680 = vunpack.c.l.b16 %v593
          %v681 = vunpack.c.l.b16 %v594
          %v682 = vunpack.c.l.b16 %v595
          %v683 = vunpack.c.l.b16 %v596
          %v684 = vpack.c.b16 %v653, %v652
          %v685 = vpack.c.b16 %v655, %v654
          %v686 = vpack.c.b16 %v657, %v656
          %v687 = vpack.c.b16 %v659, %v658
          %v688 = vpack.c.b16 %v661, %v660
          %v689 = vpack.c.b16 %v663, %v662
          %v690 = vpack.c.b16 %v665, %v664
          %v691 = vpack.c.b16 %v667, %v666
          %v692 = vpack.c.b16 %v669, %v668
          %v693 = vpack.c.b16 %v671, %v670
          %v694 = vpack.c.b16 %v673, %v672
          %v695 = vpack.c.b16 %v675, %v674
          %v696 = vpack.c.b16 %v677, %v676
          %v697 = vpack.c.b16 %v679, %v678
          %v698 = vpack.c.b16 %v681, %v680
          %v699 = vpack.c.b16 %v683, %v682
          %v732 = vunpack.c.l.b16 %v597
          %v733 = vunpack.c.l.b16 %v598
          %v734 = vunpack.c.l.b16 %v599
          %v735 = vunpack.c.l.b16 %v600
          %v736 = vunpack.c.l.b16 %v601
          %v737 = vunpack.c.l.b16 %v602
          %v738 = vunpack.c.l.b16 %v603
          %v739 = vunpack.c.l.b16 %v604
          %v740 = vunpack.c.l.b16 %v605
          %v741 = vunpack.c.l.b16 %v606
          %v742 = vunpack.c.l.b16 %v607
          %v743 = vunpack.c.l.b16 %v608
          %v744 = vunpack.c.l.b16 %v609
          %v745 = vunpack.c.l.b16 %v610
          %v746 = vunpack.c.l.b16 %v611
          %v747 = vunpack.c.l.b16 %v612
          %v748 = vpack.c.b16 %v733, %v732
          %v749 = vpack.c.b16 %v735, %v734
          %v750 = vpack.c.b16 %v737, %v736
          %v751 = vpack.c.b16 %v739, %v738
          %v752 = vpack.c.b16 %v741, %v740
          %v753 = vpack.c.b16 %v743, %v742
          %v754 = vpack.c.b16 %v745, %v744
          %v755 = vpack.c.b16 %v747, %v746
          %764 = vmatprep.subr.bf16.mxu0 0
          %765 = vmatpush1.bf16.msra.mxu0 %v748
          %766 = vmatprep.subr.bf16.mxu0 0
          %767 = vmatpush1.bf16.msra.mxu0 %v749
          %768 = vmatprep.subr.bf16.mxu0 0
          %769 = vmatpush1.bf16.msra.mxu0 %v750
          %770 = vmatprep.subr.bf16.mxu0 0
          %771 = vmatpush1.bf16.msra.mxu0 %v751
          %772 = vmatprep.subr.bf16.mxu0 0
          %773 = vmatpush1.bf16.msra.mxu0 %v752
          %774 = vmatprep.subr.bf16.mxu0 0
          %775 = vmatpush1.bf16.msra.mxu0 %v753
          %776 = vmatprep.subr.bf16.mxu0 0
          %777 = vmatpush1.bf16.msra.mxu0 %v754
          %778 = vmatprep.subr.bf16.mxu0 0
          %779 = vmatpush1.bf16.msra.mxu0 %v755
          %780 = vmatprep.subr.bf16.mxu0 0
          %781 = vmatpush1.bf16.msra.mxu0 0
          %782 = vmatprep.subr.bf16.mxu0 0
          %783 = vmatpush1.bf16.msra.mxu0 0
          %784 = vmatprep.subr.bf16.mxu0 0
          %785 = vmatpush1.bf16.msra.mxu0 0
          %786 = vmatprep.subr.bf16.mxu0 0
          %787 = vmatpush1.bf16.msra.mxu0 0
          %788 = vmatprep.subr.bf16.mxu0 0
          %789 = vmatpush1.bf16.msra.mxu0 0
          %790 = vmatprep.subr.bf16.mxu0 0
          %791 = vmatpush1.bf16.msra.mxu0 0
          %792 = vmatprep.subr.bf16.mxu0 0
          %793 = vmatpush1.bf16.msra.mxu0 0
          %794 = vmatprep.subr.bf16.mxu0 0
          %795 = vmatpush1.bf16.msra.mxu0 0
          %796 = vmatprep.mubr.bf16.mxu0 0
          %797 = vmatmul.mubr.bf16.gmra.mrb[0].mxu0 %v684
          %v798 = vpop.f32.mrb[0].mxu0
          %v799 = vadd.f32 %v618, %v798
          %v800 = vpop.f32.mrb[0].mxu0
          %v801 = vpop.f32.mrb[0].mxu0
          %v802 = vadd.f32 %v618, %v801
          %v803 = vpop.f32.mrb[0].mxu0
          %804 = vmatprep.mubr.bf16.mxu0 0
          %805 = vmatmul.mubr.bf16.gmra.mrb[0].mxu0 %v685
          %v806 = vpop.f32.mrb[0].mxu0
          %v807 = vadd.f32 %v618, %v806
          %v808 = vpop.f32.mrb[0].mxu0
          %v809 = vpop.f32.mrb[0].mxu0
          %v810 = vadd.f32 %v618, %v809
          %v811 = vpop.f32.mrb[0].mxu0
          %812 = vmatprep.mubr.bf16.mxu0 0
          %813 = vmatmul.mubr.bf16.gmra.mrb[0].mxu0 %v686
          %v814 = vpop.f32.mrb[0].mxu0
          %v815 = vadd.f32 %v618, %v814
          %v816 = vpop.f32.mrb[0].mxu0
          %v817 = vpop.f32.mrb[0].mxu0
          %v818 = vadd.f32 %v618, %v817
          %v819 = vpop.f32.mrb[0].mxu0
          %820 = vmatprep.mubr.bf16.mxu0 0
          %821 = vmatmul.mubr.bf16.gmra.mrb[0].mxu0 %v687
          %v822 = vpop.f32.mrb[0].mxu0
          %v823 = vadd.f32 %v618, %v822
          %v824 = vpop.f32.mrb[0].mxu0
          %v825 = vpop.f32.mrb[0].mxu0
          %v826 = vadd.f32 %v618, %v825
          %v827 = vpop.f32.mrb[0].mxu0
          %828 = vmatprep.mubr.bf16.mxu0 0
          %829 = vmatmul.mubr.bf16.gmra.mrb[0].mxu0 %v688
          %v830 = vpop.f32.mrb[0].mxu0
          %v831 = vadd.f32 %v618, %v830
          %v832 = vpop.f32.mrb[0].mxu0
          %v833 = vpop.f32.mrb[0].mxu0
          %v834 = vadd.f32 %v618, %v833
          %v835 = vpop.f32.mrb[0].mxu0
          %836 = vmatprep.mubr.bf16.mxu0 0
          %837 = vmatmul.mubr.bf16.gmra.mrb[0].mxu0 %v689
          %v838 = vpop.f32.mrb[0].mxu0
          %v839 = vadd.f32 %v618, %v838
          %v840 = vpop.f32.mrb[0].mxu0
          %v841 = vpop.f32.mrb[0].mxu0
          %v842 = vadd.f32 %v618, %v841
          %v843 = vpop.f32.mrb[0].mxu0
          %844 = vmatprep.mubr.bf16.mxu0 0
          %845 = vmatmul.mubr.bf16.gmra.mrb[0].mxu0 %v690
          %v846 = vpop.f32.mrb[0].mxu0
          %v847 = vadd.f32 %v618, %v846
          %v848 = vpop.f32.mrb[0].mxu0
          %v849 = vpop.f32.mrb[0].mxu0
          %v850 = vadd.f32 %v618, %v849
          %v851 = vpop.f32.mrb[0].mxu0
          %852 = vmatprep.mubr.bf16.mxu0 0
          %853 = vmatmul.mubr.bf16.gmra.mrb[0].mxu0 %v691
          %v854 = vpop.f32.mrb[0].mxu0
          %v855 = vadd.f32 %v618, %v854
          %v856 = vpop.f32.mrb[0].mxu0
          %v857 = vpop.f32.mrb[0].mxu0
          %v858 = vadd.f32 %v618, %v857
          %v859 = vpop.f32.mrb[0].mxu0
          %860 = vmatprep.mubr.bf16.mxu0 0
          %861 = vmatmul.mubr.bf16.gmra.mrb[0].mxu0 %v692
          %v862 = vpop.f32.mrb[0].mxu0
          %v863 = vadd.f32 %v618, %v862
          %v864 = vpop.f32.mrb[0].mxu0
          %v865 = vpop.f32.mrb[0].mxu0
          %v866 = vadd.f32 %v618, %v865
          %v867 = vpop.f32.mrb[0].mxu0
          %868 = vmatprep.mubr.bf16.mxu0 0
          %869 = vmatmul.mubr.bf16.gmra.mrb[0].mxu0 %v693
          %v870 = vpop.f32.mrb[0].mxu0
          %v871 = vadd.f32 %v618, %v870
          %v872 = vpop.f32.mrb[0].mxu0
          %v873 = vpop.f32.mrb[0].mxu0
          %v874 = vadd.f32 %v618, %v873
          %v875 = vpop.f32.mrb[0].mxu0
          %876 = vmatprep.mubr.bf16.mxu0 0
          %877 = vmatmul.mubr.bf16.gmra.mrb[0].mxu0 %v694
          %v878 = vpop.f32.mrb[0].mxu0
          %v879 = vadd.f32 %v618, %v878
          %v880 = vpop.f32.mrb[0].mxu0
          %v881 = vpop.f32.mrb[0].mxu0
          %v882 = vadd.f32 %v618, %v881
          %v883 = vpop.f32.mrb[0].mxu0
          %884 = vmatprep.mubr.bf16.mxu0 0
          %885 = vmatmul.mubr.bf16.gmra.mrb[0].mxu0 %v695
          %v886 = vpop.f32.mrb[0].mxu0
          %v887 = vadd.f32 %v618, %v886
          %v888 = vpop.f32.mrb[0].mxu0
          %v889 = vpop.f32.mrb[0].mxu0
          %v890 = vadd.f32 %v618, %v889
          %v891 = vpop.f32.mrb[0].mxu0
          %892 = vmatprep.mubr.bf16.mxu0 0
          %893 = vmatmul.mubr.bf16.gmra.mrb[0].mxu0 %v696
          %v894 = vpop.f32.mrb[0].mxu0
          %v895 = vadd.f32 %v618, %v894
          %v896 = vpop.f32.mrb[0].mxu0
          %v897 = vpop.f32.mrb[0].mxu0
          %v898 = vadd.f32 %v618, %v897
          %v899 = vpop.f32.mrb[0].mxu0
          %900 = vmatprep.mubr.bf16.mxu0 0
          %901 = vmatmul.mubr.bf16.gmra.mrb[0].mxu0 %v697
          %v902 = vpop.f32.mrb[0].mxu0
          %v903 = vadd.f32 %v618, %v902
          %v904 = vpop.f32.mrb[0].mxu0
          %v905 = vpop.f32.mrb[0].mxu0
          %v906 = vadd.f32 %v618, %v905
          %v907 = vpop.f32.mrb[0].mxu0
          %908 = vmatprep.mubr.bf16.mxu0 0
          %909 = vmatmul.mubr.bf16.gmra.mrb[0].mxu0 %v698
          %v910 = vpop.f32.mrb[0].mxu0
          %v911 = vadd.f32 %v618, %v910
          %v912 = vpop.f32.mrb[0].mxu0
          %v913 = vpop.f32.mrb[0].mxu0
          %v914 = vadd.f32 %v618, %v913
          %v915 = vpop.f32.mrb[0].mxu0
          %916 = vmatprep.mubr.bf16.mxu0 0
          %917 = vmatmul.mubr.bf16.gmra.mrb[0].mxu0 %v699
          %v918 = vpop.f32.mrb[0].mxu0
          %v919 = vadd.f32 %v618, %v918
          %v920 = vpop.f32.mrb[0].mxu0
          %v921 = vpop.f32.mrb[0].mxu0
          %v922 = vadd.f32 %v618, %v921
          %v923 = vpop.f32.mrb[0].mxu0
          %924 = vdwg.mxu0
          %v925 = vpack.c.bf16 %v802, %v799
          %v926 = vpack.c.bf16 %v810, %v807
          %v927 = vpack.c.bf16 %v818, %v815
          %v928 = vpack.c.bf16 %v826, %v823
          %v929 = vpack.c.bf16 %v834, %v831
          %v930 = vpack.c.bf16 %v842, %v839
          %v931 = vpack.c.bf16 %v850, %v847
          %v932 = vpack.c.bf16 %v858, %v855
          %v933 = vpack.c.bf16 %v866, %v863
          %v934 = vpack.c.bf16 %v874, %v871
          %v935 = vpack.c.bf16 %v882, %v879
          %v936 = vpack.c.bf16 %v890, %v887
          %v937 = vpack.c.bf16 %v898, %v895
          %v938 = vpack.c.bf16 %v906, %v903
          %v939 = vpack.c.bf16 %v914, %v911
          %v940 = vpack.c.bf16 %v922, %v919
          %941 = vst [vmem:[#allocation2] sm:$0xff] %v925
          %942 = vst [vmem:[#allocation2 + $0x8] sm:$0xff] %v926
          %943 = vst [vmem:[#allocation2 + $0x10] sm:$0xff] %v927
          %944 = vst [vmem:[#allocation2 + $0x18] sm:$0xff] %v928
          %945 = vst [vmem:[#allocation2 + $0x20] sm:$0xff] %v929
          %946 = vst [vmem:[#allocation2 + $0x28] sm:$0xff] %v930
          %947 = vst [vmem:[#allocation2 + $0x30] sm:$0xff] %v931
          %948 = vst [vmem:[#allocation2 + $0x38] sm:$0xff] %v932
          %949 = vst [vmem:[#allocation2 + $0x40] sm:$0xff] %v933
          %950 = vst [vmem:[#allocation2 + $0x48] sm:$0xff] %v934
          %951 = vst [vmem:[#allocation2 + $0x50] sm:$0xff] %v935
          %952 = vst [vmem:[#allocation2 + $0x58] sm:$0xff] %v936
          %953 = vst [vmem:[#allocation2 + $0x60] sm:$0xff] %v937
          %954 = vst [vmem:[#allocation2 + $0x68] sm:$0xff] %v938
          %955 = vst [vmem:[#allocation2 + $0x70] sm:$0xff] %v939
          %956 = vst [vmem:[#allocation2 + $0x78] sm:$0xff] %v940
          %v957 = vld [vmem:[%s493] sm:$0xf]
          %v958 = vld [vmem:[%s493 + $0x4] sm:$0xf]
          %v959 = vld [vmem:[%s493 + $0x8] sm:$0xf]
          %v960 = vld [vmem:[%s493 + $0xc] sm:$0xf]
          %v961 = vld [vmem:[%s493 + $0x10] sm:$0xf]
          %v962 = vld [vmem:[%s493 + $0x14] sm:$0xf]
          %v963 = vld [vmem:[%s493 + $0x18] sm:$0xf]
          %v964 = vld [vmem:[%s493 + $0x1c] sm:$0xf]
          %v965 = vld [vmem:[%s493 + $0x20] sm:$0xf]
          %v966 = vld [vmem:[%s493 + $0x24] sm:$0xf]
          %v967 = vld [vmem:[%s493 + $0x28] sm:$0xf]
          %v968 = vld [vmem:[%s493 + $0x2c] sm:$0xf]
          %v969 = vld [vmem:[%s493 + $0x30] sm:$0xf]
          %v970 = vld [vmem:[%s493 + $0x34] sm:$0xf]
          %v971 = vld [vmem:[%s493 + $0x38] sm:$0xf]
          %v972 = vld [vmem:[%s493 + $0x3c] sm:$0xf]
          %v973 = vld [vmem:[%s493 + $0x40] sm:$0xf]
          %v974 = vld [vmem:[%s493 + $0x44] sm:$0xf]
          %v975 = vld [vmem:[%s493 + $0x48] sm:$0xf]
          %v976 = vld [vmem:[%s493 + $0x4c] sm:$0xf]
          %v977 = vld [vmem:[%s493 + $0x50] sm:$0xf]
          %v978 = vld [vmem:[%s493 + $0x54] sm:$0xf]
          %v979 = vld [vmem:[%s493 + $0x58] sm:$0xf]
          %v980 = vld [vmem:[%s493 + $0x5c] sm:$0xf]
          %v981 = vld [vmem:[%s493 + $0x60] sm:$0xf]
          %v982 = vld [vmem:[%s493 + $0x64] sm:$0xf]
          %v983 = vld [vmem:[%s493 + $0x68] sm:$0xf]
          %v984 = vld [vmem:[%s493 + $0x6c] sm:$0xf]
          %v985 = vld [vmem:[%s493 + $0x70] sm:$0xf]
          %v986 = vld [vmem:[%s493 + $0x74] sm:$0xf]
          %v987 = vld [vmem:[%s493 + $0x78] sm:$0xf]
          %v988 = vld [vmem:[%s493 + $0x7c] sm:$0xf]
          %v989 = vld [vmem:[#allocation14] sm:$0xf]
          %v990 = vld [vmem:[#allocation14 + $0x4] sm:$0xf]
          %v991 = vld [vmem:[#allocation14 + $0x8] sm:$0xf]
          %v992 = vld [vmem:[#allocation14 + $0xc] sm:$0xf]
          %v993 = vld [vmem:[#allocation14 + $0x10] sm:$0xf]
          %v994 = vld [vmem:[#allocation14 + $0x14] sm:$0xf]
          %v995 = vld [vmem:[#allocation14 + $0x18] sm:$0xf]
          %v996 = vld [vmem:[#allocation14 + $0x1c] sm:$0xf]
          %v997 = vld [vmem:[#allocation14 + $0x20] sm:$0xf]
          %v998 = vld [vmem:[#allocation14 + $0x24] sm:$0xf]
          %v999 = vld [vmem:[#allocation14 + $0x28] sm:$0xf]
          %v1000 = vld [vmem:[#allocation14 + $0x2c] sm:$0xf]
          %v1001 = vld [vmem:[#allocation14 + $0x30] sm:$0xf]
          %v1002 = vld [vmem:[#allocation14 + $0x34] sm:$0xf]
          %v1003 = vld [vmem:[#allocation14 + $0x38] sm:$0xf]
          %v1004 = vld [vmem:[#allocation14 + $0x3c] sm:$0xf]
          %v1005 = vld [vmem:[%s8] sm:$0x1]
          %v1007 = vlaneseq
          %v1008 = vshrl.u32 %v1007, 7
          %v1009 = vsub.s32 0, %v1008
          %v1010 = vrot.slane %v1005, %v1009
          %v1044 = vunpack.c.l.b16 %v957
          %v1045 = vunpack.c.l.b16 %v958
          %v1046 = vunpack.c.l.b16 %v959
          %v1047 = vunpack.c.l.b16 %v960
          %v1048 = vunpack.c.l.b16 %v961
          %v1049 = vunpack.c.l.b16 %v962
          %v1050 = vunpack.c.l.b16 %v963
          %v1051 = vunpack.c.l.b16 %v964
          %v1052 = vunpack.c.l.b16 %v965
          %v1053 = vunpack.c.l.b16 %v966
          %v1054 = vunpack.c.l.b16 %v967
          %v1055 = vunpack.c.l.b16 %v968
          %v1056 = vunpack.c.l.b16 %v969
          %v1057 = vunpack.c.l.b16 %v970
          %v1058 = vunpack.c.l.b16 %v971
          %v1059 = vunpack.c.l.b16 %v972
          %v1060 = vunpack.c.l.b16 %v973
          %v1061 = vunpack.c.l.b16 %v974
          %v1062 = vunpack.c.l.b16 %v975
          %v1063 = vunpack.c.l.b16 %v976
          %v1064 = vunpack.c.l.b16 %v977
          %v1065 = vunpack.c.l.b16 %v978
          %v1066 = vunpack.c.l.b16 %v979
          %v1067 = vunpack.c.l.b16 %v980
          %v1068 = vunpack.c.l.b16 %v981
          %v1069 = vunpack.c.l.b16 %v982
          %v1070 = vunpack.c.l.b16 %v983
          %v1071 = vunpack.c.l.b16 %v984
          %v1072 = vunpack.c.l.b16 %v985
          %v1073 = vunpack.c.l.b16 %v986
          %v1074 = vunpack.c.l.b16 %v987
          %v1075 = vunpack.c.l.b16 %v988
          %v1076 = vpack.c.b16 %v1045, %v1044
          %v1077 = vpack.c.b16 %v1047, %v1046
          %v1078 = vpack.c.b16 %v1049, %v1048
          %v1079 = vpack.c.b16 %v1051, %v1050
          %v1080 = vpack.c.b16 %v1053, %v1052
          %v1081 = vpack.c.b16 %v1055, %v1054
          %v1082 = vpack.c.b16 %v1057, %v1056
          %v1083 = vpack.c.b16 %v1059, %v1058
          %v1084 = vpack.c.b16 %v1061, %v1060
          %v1085 = vpack.c.b16 %v1063, %v1062
          %v1086 = vpack.c.b16 %v1065, %v1064
          %v1087 = vpack.c.b16 %v1067, %v1066
          %v1088 = vpack.c.b16 %v1069, %v1068
          %v1089 = vpack.c.b16 %v1071, %v1070
          %v1090 = vpack.c.b16 %v1073, %v1072
          %v1091 = vpack.c.b16 %v1075, %v1074
          %v1124 = vunpack.c.l.b16 %v989
          %v1125 = vunpack.c.l.b16 %v990
          %v1126 = vunpack.c.l.b16 %v991
          %v1127 = vunpack.c.l.b16 %v992
          %v1128 = vunpack.c.l.b16 %v993
          %v1129 = vunpack.c.l.b16 %v994
          %v1130 = vunpack.c.l.b16 %v995
          %v1131 = vunpack.c.l.b16 %v996
          %v1132 = vunpack.c.l.b16 %v997
          %v1133 = vunpack.c.l.b16 %v998
          %v1134 = vunpack.c.l.b16 %v999
          %v1135 = vunpack.c.l.b16 %v1000
          %v1136 = vunpack.c.l.b16 %v1001
          %v1137 = vunpack.c.l.b16 %v1002
          %v1138 = vunpack.c.l.b16 %v1003
          %v1139 = vunpack.c.l.b16 %v1004
          %v1140 = vpack.c.b16 %v1125, %v1124
          %v1141 = vpack.c.b16 %v1127, %v1126
          %v1142 = vpack.c.b16 %v1129, %v1128
          %v1143 = vpack.c.b16 %v1131, %v1130
          %v1144 = vpack.c.b16 %v1133, %v1132
          %v1145 = vpack.c.b16 %v1135, %v1134
          %v1146 = vpack.c.b16 %v1137, %v1136
          %v1147 = vpack.c.b16 %v1139, %v1138
          %1156 = vmatprep.subr.bf16.mxu0 0
          %1157 = vmatpush1.bf16.msra.mxu0 %v1140
          %1158 = vmatprep.subr.bf16.mxu0 0
          %1159 = vmatpush1.bf16.msra.mxu0 %v1141
          %1160 = vmatprep.subr.bf16.mxu0 0
          %1161 = vmatpush1.bf16.msra.mxu0 %v1142
          %1162 = vmatprep.subr.bf16.mxu0 0
          %1163 = vmatpush1.bf16.msra.mxu0 %v1143
          %1164 = vmatprep.subr.bf16.mxu0 0
          %1165 = vmatpush1.bf16.msra.mxu0 %v1144
          %1166 = vmatprep.subr.bf16.mxu0 0
          %1167 = vmatpush1.bf16.msra.mxu0 %v1145
          %1168 = vmatprep.subr.bf16.mxu0 0
          %1169 = vmatpush1.bf16.msra.mxu0 %v1146
          %1170 = vmatprep.subr.bf16.mxu0 0
          %1171 = vmatpush1.bf16.msra.mxu0 %v1147
          %1172 = vmatprep.subr.bf16.mxu0 0
          %1173 = vmatpush1.bf16.msra.mxu0 0
          %1174 = vmatprep.subr.bf16.mxu0 0
          %1175 = vmatpush1.bf16.msra.mxu0 0
          %1176 = vmatprep.subr.bf16.mxu0 0
          %1177 = vmatpush1.bf16.msra.mxu0 0
          %1178 = vmatprep.subr.bf16.mxu0 0
          %1179 = vmatpush1.bf16.msra.mxu0 0
          %1180 = vmatprep.subr.bf16.mxu0 0
          %1181 = vmatpush1.bf16.msra.mxu0 0
          %1182 = vmatprep.subr.bf16.mxu0 0
          %1183 = vmatpush1.bf16.msra.mxu0 0
          %1184 = vmatprep.subr.bf16.mxu0 0
          %1185 = vmatpush1.bf16.msra.mxu0 0
          %1186 = vmatprep.subr.bf16.mxu0 0
          %1187 = vmatpush1.bf16.msra.mxu0 0
          %1188 = vmatprep.mubr.bf16.mxu0 0
          %1189 = vmatmul.mubr.bf16.gmra.mrb[0].mxu0 %v1076
          %v1190 = vpop.f32.mrb[0].mxu0
          %v1191 = vadd.f32 %v1010, %v1190
          %v1192 = vpop.f32.mrb[0].mxu0
          %v1193 = vpop.f32.mrb[0].mxu0
          %v1194 = vadd.f32 %v1010, %v1193
          %v1195 = vpop.f32.mrb[0].mxu0
          %1196 = vmatprep.mubr.bf16.mxu0 0
          %1197 = vmatmul.mubr.bf16.gmra.mrb[0].mxu0 %v1077
          %v1198 = vpop.f32.mrb[0].mxu0
          %v1199 = vadd.f32 %v1010, %v1198
          %v1200 = vpop.f32.mrb[0].mxu0
          %v1201 = vpop.f32.mrb[0].mxu0
          %v1202 = vadd.f32 %v1010, %v1201
          %v1203 = vpop.f32.mrb[0].mxu0
          %1204 = vmatprep.mubr.bf16.mxu0 0
          %1205 = vmatmul.mubr.bf16.gmra.mrb[0].mxu0 %v1078
          %v1206 = vpop.f32.mrb[0].mxu0
          %v1207 = vadd.f32 %v1010, %v1206
          %v1208 = vpop.f32.mrb[0].mxu0
          %v1209 = vpop.f32.mrb[0].mxu0
          %v1210 = vadd.f32 %v1010, %v1209
          %v1211 = vpop.f32.mrb[0].mxu0
          %1212 = vmatprep.mubr.bf16.mxu0 0
          %1213 = vmatmul.mubr.bf16.gmra.mrb[0].mxu0 %v1079
          %v1214 = vpop.f32.mrb[0].mxu0
          %v1215 = vadd.f32 %v1010, %v1214
          %v1216 = vpop.f32.mrb[0].mxu0
          %v1217 = vpop.f32.mrb[0].mxu0
          %v1218 = vadd.f32 %v1010, %v1217
          %v1219 = vpop.f32.mrb[0].mxu0
          %1220 = vmatprep.mubr.bf16.mxu0 0
          %1221 = vmatmul.mubr.bf16.gmra.mrb[0].mxu0 %v1080
          %v1222 = vpop.f32.mrb[0].mxu0
          %v1223 = vadd.f32 %v1010, %v1222
          %v1224 = vpop.f32.mrb[0].mxu0
          %v1225 = vpop.f32.mrb[0].mxu0
          %v1226 = vadd.f32 %v1010, %v1225
          %v1227 = vpop.f32.mrb[0].mxu0
          %1228 = vmatprep.mubr.bf16.mxu0 0
          %1229 = vmatmul.mubr.bf16.gmra.mrb[0].mxu0 %v1081
          %v1230 = vpop.f32.mrb[0].mxu0
          %v1231 = vadd.f32 %v1010, %v1230
          %v1232 = vpop.f32.mrb[0].mxu0
          %v1233 = vpop.f32.mrb[0].mxu0
          %v1234 = vadd.f32 %v1010, %v1233
          %v1235 = vpop.f32.mrb[0].mxu0
          %1236 = vmatprep.mubr.bf16.mxu0 0
          %1237 = vmatmul.mubr.bf16.gmra.mrb[0].mxu0 %v1082
          %v1238 = vpop.f32.mrb[0].mxu0
          %v1239 = vadd.f32 %v1010, %v1238
          %v1240 = vpop.f32.mrb[0].mxu0
          %v1241 = vpop.f32.mrb[0].mxu0
          %v1242 = vadd.f32 %v1010, %v1241
          %v1243 = vpop.f32.mrb[0].mxu0
          %1244 = vmatprep.mubr.bf16.mxu0 0
          %1245 = vmatmul.mubr.bf16.gmra.mrb[0].mxu0 %v1083
          %v1246 = vpop.f32.mrb[0].mxu0
          %v1247 = vadd.f32 %v1010, %v1246
          %v1248 = vpop.f32.mrb[0].mxu0
          %v1249 = vpop.f32.mrb[0].mxu0
          %v1250 = vadd.f32 %v1010, %v1249
          %v1251 = vpop.f32.mrb[0].mxu0
          %1252 = vmatprep.mubr.bf16.mxu0 0
          %1253 = vmatmul.mubr.bf16.gmra.mrb[0].mxu0 %v1084
          %v1254 = vpop.f32.mrb[0].mxu0
          %v1255 = vadd.f32 %v1010, %v1254
          %v1256 = vpop.f32.mrb[0].mxu0
          %v1257 = vpop.f32.mrb[0].mxu0
          %v1258 = vadd.f32 %v1010, %v1257
          %v1259 = vpop.f32.mrb[0].mxu0
          %1260 = vmatprep.mubr.bf16.mxu0 0
          %1261 = vmatmul.mubr.bf16.gmra.mrb[0].mxu0 %v1085
          %v1262 = vpop.f32.mrb[0].mxu0
          %v1263 = vadd.f32 %v1010, %v1262
          %v1264 = vpop.f32.mrb[0].mxu0
          %v1265 = vpop.f32.mrb[0].mxu0
          %v1266 = vadd.f32 %v1010, %v1265
          %v1267 = vpop.f32.mrb[0].mxu0
          %1268 = vmatprep.mubr.bf16.mxu0 0
          %1269 = vmatmul.mubr.bf16.gmra.mrb[0].mxu0 %v1086
          %v1270 = vpop.f32.mrb[0].mxu0
          %v1271 = vadd.f32 %v1010, %v1270
          %v1272 = vpop.f32.mrb[0].mxu0
          %v1273 = vpop.f32.mrb[0].mxu0
          %v1274 = vadd.f32 %v1010, %v1273
          %v1275 = vpop.f32.mrb[0].mxu0
          %1276 = vmatprep.mubr.bf16.mxu0 0
          %1277 = vmatmul.mubr.bf16.gmra.mrb[0].mxu0 %v1087
          %v1278 = vpop.f32.mrb[0].mxu0
          %v1279 = vadd.f32 %v1010, %v1278
          %v1280 = vpop.f32.mrb[0].mxu0
          %v1281 = vpop.f32.mrb[0].mxu0
          %v1282 = vadd.f32 %v1010, %v1281
          %v1283 = vpop.f32.mrb[0].mxu0
          %1284 = vmatprep.mubr.bf16.mxu0 0
          %1285 = vmatmul.mubr.bf16.gmra.mrb[0].mxu0 %v1088
          %v1286 = vpop.f32.mrb[0].mxu0
          %v1287 = vadd.f32 %v1010, %v1286
          %v1288 = vpop.f32.mrb[0].mxu0
          %v1289 = vpop.f32.mrb[0].mxu0
          %v1290 = vadd.f32 %v1010, %v1289
          %v1291 = vpop.f32.mrb[0].mxu0
          %1292 = vmatprep.mubr.bf16.mxu0 0
          %1293 = vmatmul.mubr.bf16.gmra.mrb[0].mxu0 %v1089
          %v1294 = vpop.f32.mrb[0].mxu0
          %v1295 = vadd.f32 %v1010, %v1294
          %v1296 = vpop.f32.mrb[0].mxu0
          %v1297 = vpop.f32.mrb[0].mxu0
          %v1298 = vadd.f32 %v1010, %v1297
          %v1299 = vpop.f32.mrb[0].mxu0
          %1300 = vmatprep.mubr.bf16.mxu0 0
          %1301 = vmatmul.mubr.bf16.gmra.mrb[0].mxu0 %v1090
          %v1302 = vpop.f32.mrb[0].mxu0
          %v1303 = vadd.f32 %v1010, %v1302
          %v1304 = vpop.f32.mrb[0].mxu0
          %v1305 = vpop.f32.mrb[0].mxu0
          %v1306 = vadd.f32 %v1010, %v1305
          %v1307 = vpop.f32.mrb[0].mxu0
          %1308 = vmatprep.mubr.bf16.mxu0 0
          %1309 = vmatmul.mubr.bf16.gmra.mrb[0].mxu0 %v1091
          %v1310 = vpop.f32.mrb[0].mxu0
          %v1311 = vadd.f32 %v1010, %v1310
          %v1312 = vpop.f32.mrb[0].mxu0
          %v1313 = vpop.f32.mrb[0].mxu0
          %v1314 = vadd.f32 %v1010, %v1313
          %v1315 = vpop.f32.mrb[0].mxu0
          %1316 = vdwg.mxu0
          %v1317 = vpack.c.bf16 %v1194, %v1191
          %v1318 = vpack.c.bf16 %v1202, %v1199
          %v1319 = vpack.c.bf16 %v1210, %v1207
          %v1320 = vpack.c.bf16 %v1218, %v1215
          %v1321 = vpack.c.bf16 %v1226, %v1223
          %v1322 = vpack.c.bf16 %v1234, %v1231
          %v1323 = vpack.c.bf16 %v1242, %v1239
          %v1324 = vpack.c.bf16 %v1250, %v1247
          %v1325 = vpack.c.bf16 %v1258, %v1255
          %v1326 = vpack.c.bf16 %v1266, %v1263
          %v1327 = vpack.c.bf16 %v1274, %v1271
          %v1328 = vpack.c.bf16 %v1282, %v1279
          %v1329 = vpack.c.bf16 %v1290, %v1287
          %v1330 = vpack.c.bf16 %v1298, %v1295
          %v1331 = vpack.c.bf16 %v1306, %v1303
          %v1332 = vpack.c.bf16 %v1314, %v1311
          %1333 = vst [vmem:[#allocation3] sm:$0xff] %v1317
          %1334 = vst [vmem:[#allocation3 + $0x8] sm:$0xff] %v1318
          %1335 = vst [vmem:[#allocation3 + $0x10] sm:$0xff] %v1319
          %1336 = vst [vmem:[#allocation3 + $0x18] sm:$0xff] %v1320
          %1337 = vst [vmem:[#allocation3 + $0x20] sm:$0xff] %v1321
          %1338 = vst [vmem:[#allocation3 + $0x28] sm:$0xff] %v1322
          %1339 = vst [vmem:[#allocation3 + $0x30] sm:$0xff] %v1323
          %1340 = vst [vmem:[#allocation3 + $0x38] sm:$0xff] %v1324
          %1341 = vst [vmem:[#allocation3 + $0x40] sm:$0xff] %v1325
          %1342 = vst [vmem:[#allocation3 + $0x48] sm:$0xff] %v1326
          %1343 = vst [vmem:[#allocation3 + $0x50] sm:$0xff] %v1327
          %1344 = vst [vmem:[#allocation3 + $0x58] sm:$0xff] %v1328
          %1345 = vst [vmem:[#allocation3 + $0x60] sm:$0xff] %v1329
          %1346 = vst [vmem:[#allocation3 + $0x68] sm:$0xff] %v1330
          %1347 = vst [vmem:[#allocation3 + $0x70] sm:$0xff] %v1331
          %1348 = vst [vmem:[#allocation3 + $0x78] sm:$0xff] %v1332
        $region96: #{tpu_custom_call.1} parent=63 // pred_fallthru
          _
        %v1349 = vld [vmem:[%s475] sm:$0xf]
        %v1350 = vld [vmem:[%s475 + $0x4] sm:$0xf]
        %v1351 = vld [vmem:[%s475 + $0x8] sm:$0xf]
        %v1352 = vld [vmem:[%s475 + $0xc] sm:$0xf]
        %v1353 = vld [vmem:[%s475 + $0x10] sm:$0xf]
        %v1354 = vld [vmem:[%s475 + $0x14] sm:$0xf]
        %v1355 = vld [vmem:[%s475 + $0x18] sm:$0xf]
        %v1356 = vld [vmem:[%s475 + $0x1c] sm:$0xf]
        %v1357 = vld [vmem:[%s475 + $0x20] sm:$0xf]
        %v1358 = vld [vmem:[%s475 + $0x24] sm:$0xf]
        %v1359 = vld [vmem:[%s475 + $0x28] sm:$0xf]
        %v1360 = vld [vmem:[%s475 + $0x2c] sm:$0xf]
        %v1361 = vld [vmem:[%s475 + $0x30] sm:$0xf]
        %v1362 = vld [vmem:[%s475 + $0x34] sm:$0xf]
        %v1363 = vld [vmem:[%s475 + $0x38] sm:$0xf]
        %v1364 = vld [vmem:[%s475 + $0x3c] sm:$0xf]
        %v1365 = vld [vmem:[#allocation11] sm:$0xf]
        %v1366 = vld [vmem:[#allocation11 + $0x4] sm:$0xf]
        %v1367 = vld [vmem:[#allocation11 + $0x8] sm:$0xf]
        %v1368 = vld [vmem:[#allocation11 + $0xc] sm:$0xf]
        %v1369 = vld [vmem:[#allocation11 + $0x10] sm:$0xf]
        %v1370 = vld [vmem:[#allocation11 + $0x14] sm:$0xf]
        %v1371 = vld [vmem:[#allocation11 + $0x18] sm:$0xf]
        %v1372 = vld [vmem:[#allocation11 + $0x1c] sm:$0xf]
        %v1373 = vld [vmem:[#allocation11 + $0x20] sm:$0xf]
        %v1374 = vld [vmem:[#allocation11 + $0x24] sm:$0xf]
        %v1375 = vld [vmem:[#allocation11 + $0x28] sm:$0xf]
        %v1376 = vld [vmem:[#allocation11 + $0x2c] sm:$0xf]
        %v1377 = vld [vmem:[#allocation11 + $0x30] sm:$0xf]
        %v1378 = vld [vmem:[#allocation11 + $0x34] sm:$0xf]
        %v1379 = vld [vmem:[#allocation11 + $0x38] sm:$0xf]
        %v1380 = vld [vmem:[#allocation11 + $0x3c] sm:$0xf]
        %v1381 = vld [vmem:[%s4] sm:$0x1]
        %v1383 = vlaneseq
        %v1384 = vshrl.u32 %v1383, 7
        %v1385 = vsub.s32 0, %v1384
        %v1386 = vrot.slane %v1381, %v1385
        %v1404 = vunpack.c.l.b16 %v1349
        %v1405 = vunpack.c.l.b16 %v1350
        %v1406 = vunpack.c.l.b16 %v1351
        %v1407 = vunpack.c.l.b16 %v1352
        %v1408 = vunpack.c.l.b16 %v1353
        %v1409 = vunpack.c.l.b16 %v1354
        %v1410 = vunpack.c.l.b16 %v1355
        %v1411 = vunpack.c.l.b16 %v1356
        %v1412 = vunpack.c.l.b16 %v1357
        %v1413 = vunpack.c.l.b16 %v1358
        %v1414 = vunpack.c.l.b16 %v1359
        %v1415 = vunpack.c.l.b16 %v1360
        %v1416 = vunpack.c.l.b16 %v1361
        %v1417 = vunpack.c.l.b16 %v1362
        %v1418 = vunpack.c.l.b16 %v1363
        %v1419 = vunpack.c.l.b16 %v1364
        %v1420 = vpack.c.b16 %v1405, %v1404
        %v1421 = vpack.c.b16 %v1407, %v1406
        %v1422 = vpack.c.b16 %v1409, %v1408
        %v1423 = vpack.c.b16 %v1411, %v1410
        %v1424 = vpack.c.b16 %v1413, %v1412
        %v1425 = vpack.c.b16 %v1415, %v1414
        %v1426 = vpack.c.b16 %v1417, %v1416
        %v1427 = vpack.c.b16 %v1419, %v1418
        %v1452 = vunpack.c.l.b16 %v1365
        %v1453 = vunpack.c.l.b16 %v1366
        %v1454 = vunpack.c.l.b16 %v1367
        %v1455 = vunpack.c.l.b16 %v1368
        %v1456 = vunpack.c.l.b16 %v1369
        %v1457 = vunpack.c.l.b16 %v1370
        %v1458 = vunpack.c.l.b16 %v1371
        %v1459 = vunpack.c.l.b16 %v1372
        %v1460 = vunpack.c.l.b16 %v1373
        %v1461 = vunpack.c.l.b16 %v1374
        %v1462 = vunpack.c.l.b16 %v1375
        %v1463 = vunpack.c.l.b16 %v1376
        %v1464 = vunpack.c.l.b16 %v1377
        %v1465 = vunpack.c.l.b16 %v1378
        %v1466 = vunpack.c.l.b16 %v1379
        %v1467 = vunpack.c.l.b16 %v1380
        %v1468 = vpack.c.b16 %v1453, %v1452
        %v1469 = vpack.c.b16 %v1455, %v1454
        %v1470 = vpack.c.b16 %v1457, %v1456
        %v1471 = vpack.c.b16 %v1459, %v1458
        %v1472 = vpack.c.b16 %v1461, %v1460
        %v1473 = vpack.c.b16 %v1463, %v1462
        %v1474 = vpack.c.b16 %v1465, %v1464
        %v1475 = vpack.c.b16 %v1467, %v1466
        %1484 = vmatprep.subr.bf16.mxu0 0
        %1485 = vmatpush1.bf16.msra.mxu0 %v1468
        %1486 = vmatprep.subr.bf16.mxu0 0
        %1487 = vmatpush1.bf16.msra.mxu0 %v1469
        %1488 = vmatprep.subr.bf16.mxu0 0
        %1489 = vmatpush1.bf16.msra.mxu0 %v1470
        %1490 = vmatprep.subr.bf16.mxu0 0
        %1491 = vmatpush1.bf16.msra.mxu0 %v1471
        %1492 = vmatprep.subr.bf16.mxu0 0
        %1493 = vmatpush1.bf16.msra.mxu0 %v1472
        %1494 = vmatprep.subr.bf16.mxu0 0
        %1495 = vmatpush1.bf16.msra.mxu0 %v1473
        %1496 = vmatprep.subr.bf16.mxu0 0
        %1497 = vmatpush1.bf16.msra.mxu0 %v1474
        %1498 = vmatprep.subr.bf16.mxu0 0
        %1499 = vmatpush1.bf16.msra.mxu0 %v1475
        %1500 = vmatprep.subr.bf16.mxu0 0
        %1501 = vmatpush1.bf16.msra.mxu0 0
        %1502 = vmatprep.subr.bf16.mxu0 0
        %1503 = vmatpush1.bf16.msra.mxu0 0
        %1504 = vmatprep.subr.bf16.mxu0 0
        %1505 = vmatpush1.bf16.msra.mxu0 0
        %1506 = vmatprep.subr.bf16.mxu0 0
        %1507 = vmatpush1.bf16.msra.mxu0 0
        %1508 = vmatprep.subr.bf16.mxu0 0
        %1509 = vmatpush1.bf16.msra.mxu0 0
        %1510 = vmatprep.subr.bf16.mxu0 0
        %1511 = vmatpush1.bf16.msra.mxu0 0
        %1512 = vmatprep.subr.bf16.mxu0 0
        %1513 = vmatpush1.bf16.msra.mxu0 0
        %1514 = vmatprep.subr.bf16.mxu0 0
        %1515 = vmatpush1.bf16.msra.mxu0 0
        %1516 = vmatprep.mubr.bf16.mxu0 0
        %1517 = vmatmul.mubr.bf16.gmra.mrb[0].mxu0 %v1420
        %v1518 = vpop.f32.mrb[0].mxu0
        %v1519 = vadd.f32 %v1386, %v1518
        %v1520 = vpop.f32.mrb[0].mxu0
        %v1521 = vpop.f32.mrb[0].mxu0
        %v1522 = vadd.f32 %v1386, %v1521
        %v1523 = vpop.f32.mrb[0].mxu0
        %1524 = vmatprep.mubr.bf16.mxu0 0
        %1525 = vmatmul.mubr.bf16.gmra.mrb[0].mxu0 %v1421
        %v1526 = vpop.f32.mrb[0].mxu0
        %v1527 = vadd.f32 %v1386, %v1526
        %v1528 = vpop.f32.mrb[0].mxu0
        %v1529 = vpop.f32.mrb[0].mxu0
        %v1530 = vadd.f32 %v1386, %v1529
        %v1531 = vpop.f32.mrb[0].mxu0
        %1532 = vmatprep.mubr.bf16.mxu0 0
        %1533 = vmatmul.mubr.bf16.gmra.mrb[0].mxu0 %v1422
        %v1534 = vpop.f32.mrb[0].mxu0
        %v1535 = vadd.f32 %v1386, %v1534
        %v1536 = vpop.f32.mrb[0].mxu0
        %v1537 = vpop.f32.mrb[0].mxu0
        %v1538 = vadd.f32 %v1386, %v1537
        %v1539 = vpop.f32.mrb[0].mxu0
        %1540 = vmatprep.mubr.bf16.mxu0 0
        %1541 = vmatmul.mubr.bf16.gmra.mrb[0].mxu0 %v1423
        %v1542 = vpop.f32.mrb[0].mxu0
        %v1543 = vadd.f32 %v1386, %v1542
        %v1544 = vpop.f32.mrb[0].mxu0
        %v1545 = vpop.f32.mrb[0].mxu0
        %v1546 = vadd.f32 %v1386, %v1545
        %v1547 = vpop.f32.mrb[0].mxu0
        %1548 = vmatprep.mubr.bf16.mxu0 0
        %1549 = vmatmul.mubr.bf16.gmra.mrb[0].mxu0 %v1424
        %v1550 = vpop.f32.mrb[0].mxu0
        %v1551 = vadd.f32 %v1386, %v1550
        %v1552 = vpop.f32.mrb[0].mxu0
        %v1553 = vpop.f32.mrb[0].mxu0
        %v1554 = vadd.f32 %v1386, %v1553
        %v1555 = vpop.f32.mrb[0].mxu0
        %1556 = vmatprep.mubr.bf16.mxu0 0
        %1557 = vmatmul.mubr.bf16.gmra.mrb[0].mxu0 %v1425
        %v1558 = vpop.f32.mrb[0].mxu0
        %v1559 = vadd.f32 %v1386, %v1558
        %v1560 = vpop.f32.mrb[0].mxu0
        %v1561 = vpop.f32.mrb[0].mxu0
        %v1562 = vadd.f32 %v1386, %v1561
        %v1563 = vpop.f32.mrb[0].mxu0
        %1564 = vmatprep.mubr.bf16.mxu0 0
        %1565 = vmatmul.mubr.bf16.gmra.mrb[0].mxu0 %v1426
        %v1566 = vpop.f32.mrb[0].mxu0
        %v1567 = vadd.f32 %v1386, %v1566
        %v1568 = vpop.f32.mrb[0].mxu0
        %v1569 = vpop.f32.mrb[0].mxu0
        %v1570 = vadd.f32 %v1386, %v1569
        %v1571 = vpop.f32.mrb[0].mxu0
        %1572 = vmatprep.mubr.bf16.mxu0 0
        %1573 = vmatmul.mubr.bf16.gmra.mrb[0].mxu0 %v1427
        %v1574 = vpop.f32.mrb[0].mxu0
        %v1575 = vadd.f32 %v1386, %v1574
        %v1576 = vpop.f32.mrb[0].mxu0
        %v1577 = vpop.f32.mrb[0].mxu0
        %v1578 = vadd.f32 %v1386, %v1577
        %v1579 = vpop.f32.mrb[0].mxu0
        %1580 = vdwg.mxu0
        %v1581 = vpack.c.bf16 %v1522, %v1519
        %v1582 = vpack.c.bf16 %v1530, %v1527
        %v1583 = vpack.c.bf16 %v1538, %v1535
        %v1584 = vpack.c.bf16 %v1546, %v1543
        %v1585 = vpack.c.bf16 %v1554, %v1551
        %v1586 = vpack.c.bf16 %v1562, %v1559
        %v1587 = vpack.c.bf16 %v1570, %v1567
        %v1588 = vpack.c.bf16 %v1578, %v1575
        %v1589 = vld [vmem:[#allocation2] sm:$0xff]
        %v1590 = vld [vmem:[#allocation2 + $0x8] sm:$0xff]
        %v1591 = vld [vmem:[#allocation2 + $0x10] sm:$0xff]
        %v1592 = vld [vmem:[#allocation2 + $0x18] sm:$0xff]
        %v1593 = vld [vmem:[#allocation2 + $0x20] sm:$0xff]
        %v1594 = vld [vmem:[#allocation2 + $0x28] sm:$0xff]
        %v1595 = vld [vmem:[#allocation2 + $0x30] sm:$0xff]
        %v1596 = vld [vmem:[#allocation2 + $0x38] sm:$0xff]
        %v1597 = vld [vmem:[#allocation2 + $0x40] sm:$0xff]
        %v1598 = vld [vmem:[#allocation2 + $0x48] sm:$0xff]
        %v1599 = vld [vmem:[#allocation2 + $0x50] sm:$0xff]
        %v1600 = vld [vmem:[#allocation2 + $0x58] sm:$0xff]
        %v1601 = vld [vmem:[#allocation2 + $0x60] sm:$0xff]
        %v1602 = vld [vmem:[#allocation2 + $0x68] sm:$0xff]
        %v1603 = vld [vmem:[#allocation2 + $0x70] sm:$0xff]
        %v1604 = vld [vmem:[#allocation2 + $0x78] sm:$0xff]
        %v1605 = vld [vmem:[#allocation3] sm:$0xff]
        %v1606 = vld [vmem:[#allocation3 + $0x8] sm:$0xff]
        %v1607 = vld [vmem:[#allocation3 + $0x10] sm:$0xff]
        %v1608 = vld [vmem:[#allocation3 + $0x18] sm:$0xff]
        %v1609 = vld [vmem:[#allocation3 + $0x20] sm:$0xff]
        %v1610 = vld [vmem:[#allocation3 + $0x28] sm:$0xff]
        %v1611 = vld [vmem:[#allocation3 + $0x30] sm:$0xff]
        %v1612 = vld [vmem:[#allocation3 + $0x38] sm:$0xff]
        %v1613 = vld [vmem:[#allocation3 + $0x40] sm:$0xff]
        %v1614 = vld [vmem:[#allocation3 + $0x48] sm:$0xff]
        %v1615 = vld [vmem:[#allocation3 + $0x50] sm:$0xff]
        %v1616 = vld [vmem:[#allocation3 + $0x58] sm:$0xff]
        %v1617 = vld [vmem:[#allocation3 + $0x60] sm:$0xff]
        %v1618 = vld [vmem:[#allocation3 + $0x68] sm:$0xff]
        %v1619 = vld [vmem:[#allocation3 + $0x70] sm:$0xff]
        %v1620 = vld [vmem:[#allocation3 + $0x78] sm:$0xff]
        %vm1621 = vcmask 261120
        %v1623 = vsel %vm1621, %v1581, 0
        %v1626 = vsel %vm1621, %v1582, 0
        %v1629 = vsel %vm1621, %v1583, 0
        %v1632 = vsel %vm1621, %v1584, 0
        %v1635 = vsel %vm1621, %v1585, 0
        %v1638 = vsel %vm1621, %v1586, 0
        %v1641 = vsel %vm1621, %v1587, 0
        %v1644 = vsel %vm1621, %v1588, 0
        %v1647 = vsel %vm1621, %v1589, 0
        %v1650 = vsel %vm1621, %v1590, 0
        %v1653 = vsel %vm1621, %v1591, 0
        %v1656 = vsel %vm1621, %v1592, 0
        %v1659 = vsel %vm1621, %v1593, 0
        %v1662 = vsel %vm1621, %v1594, 0
        %v1665 = vsel %vm1621, %v1595, 0
        %v1668 = vsel %vm1621, %v1596, 0
        %v1671 = vsel %vm1621, %v1597, 0
        %v1674 = vsel %vm1621, %v1598, 0
        %v1677 = vsel %vm1621, %v1599, 0
        %v1680 = vsel %vm1621, %v1600, 0
        %v1683 = vsel %vm1621, %v1601, 0
        %v1686 = vsel %vm1621, %v1602, 0
        %v1689 = vsel %vm1621, %v1603, 0
        %v1692 = vsel %vm1621, %v1604, 0
        %1694 = vmatprep.subr.bf16.mxu0 0
        %1695 = vmatpush1.bf16.xpose.msra.mxu0 %v1647
        %1696 = vmatprep.subr.bf16.mxu0 0
        %1697 = vmatpush1.bf16.xpose.msra.mxu0 %v1650
        %1698 = vmatprep.subr.bf16.mxu0 0
        %1699 = vmatpush1.bf16.xpose.msra.mxu0 %v1653
        %1700 = vmatprep.subr.bf16.mxu0 0
        %1701 = vmatpush1.bf16.xpose.msra.mxu0 %v1656
        %1702 = vmatprep.subr.bf16.mxu0 0
        %1703 = vmatpush1.bf16.xpose.msra.mxu0 %v1659
        %1704 = vmatprep.subr.bf16.mxu0 0
        %1705 = vmatpush1.bf16.xpose.msra.mxu0 %v1662
        %1706 = vmatprep.subr.bf16.mxu0 0
        %1707 = vmatpush1.bf16.xpose.msra.mxu0 %v1665
        %1708 = vmatprep.subr.bf16.mxu0 0
        %1709 = vmatpush1.bf16.xpose.msra.mxu0 %v1668
        %1710 = vmatprep.subr.bf16.mxu0 0
        %1711 = vmatpush1.bf16.xpose.msra.mxu0 %v1671
        %1712 = vmatprep.subr.bf16.mxu0 0
        %1713 = vmatpush1.bf16.xpose.msra.mxu0 %v1674
        %1714 = vmatprep.subr.bf16.mxu0 0
        %1715 = vmatpush1.bf16.xpose.msra.mxu0 %v1677
        %1716 = vmatprep.subr.bf16.mxu0 0
        %1717 = vmatpush1.bf16.xpose.msra.mxu0 %v1680
        %1718 = vmatprep.subr.bf16.mxu0 0
        %1719 = vmatpush1.bf16.xpose.msra.mxu0 %v1683
        %1720 = vmatprep.subr.bf16.mxu0 0
        %1721 = vmatpush1.bf16.xpose.msra.mxu0 %v1686
        %1722 = vmatprep.subr.bf16.mxu0 0
        %1723 = vmatpush1.bf16.xpose.msra.mxu0 %v1689
        %1724 = vmatprep.subr.bf16.mxu0 0
        %1725 = vmatpush1.bf16.xpose.msra.mxu0 %v1692
        %1726 = vmatprep.mubr.bf16.mxu0 0
        %1727 = vmatmul.mubr.bf16.gmra.mrb[0].mxu0 %v1623
        %v1728 = vpop.f32.mrb[0].mxu0
        %v1729 = vadd.f32 0.0, %v1728
        %v1730 = vpop.f32.mrb[0].mxu0
        %v1731 = vadd.f32 0.0, %v1730
        %v1732 = vpop.f32.mrb[0].mxu0
        %v1733 = vadd.f32 0.0, %v1732
        %v1734 = vpop.f32.mrb[0].mxu0
        %v1735 = vadd.f32 0.0, %v1734
        %1736 = vmatprep.mubr.bf16.mxu0 0
        %1737 = vmatmul.mubr.bf16.gmra.mrb[0].mxu0 %v1626
        %v1738 = vpop.f32.mrb[0].mxu0
        %v1739 = vadd.f32 0.0, %v1738
        %v1740 = vpop.f32.mrb[0].mxu0
        %v1741 = vadd.f32 0.0, %v1740
        %v1742 = vpop.f32.mrb[0].mxu0
        %v1743 = vadd.f32 0.0, %v1742
        %v1744 = vpop.f32.mrb[0].mxu0
        %v1745 = vadd.f32 0.0, %v1744
        %1746 = vmatprep.mubr.bf16.mxu0 0
        %1747 = vmatmul.mubr.bf16.gmra.mrb[0].mxu0 %v1629
        %v1748 = vpop.f32.mrb[0].mxu0
        %v1749 = vadd.f32 0.0, %v1748
        %v1750 = vpop.f32.mrb[0].mxu0
        %v1751 = vadd.f32 0.0, %v1750
        %v1752 = vpop.f32.mrb[0].mxu0
        %v1753 = vadd.f32 0.0, %v1752
        %v1754 = vpop.f32.mrb[0].mxu0
        %v1755 = vadd.f32 0.0, %v1754
        %1756 = vmatprep.mubr.bf16.mxu0 0
        %1757 = vmatmul.mubr.bf16.gmra.mrb[0].mxu0 %v1632
        %v1758 = vpop.f32.mrb[0].mxu0
        %v1759 = vadd.f32 0.0, %v1758
        %v1760 = vpop.f32.mrb[0].mxu0
        %v1761 = vadd.f32 0.0, %v1760
        %v1762 = vpop.f32.mrb[0].mxu0
        %v1763 = vadd.f32 0.0, %v1762
        %v1764 = vpop.f32.mrb[0].mxu0
        %v1765 = vadd.f32 0.0, %v1764
        %1766 = vmatprep.mubr.bf16.mxu0 0
        %1767 = vmatmul.mubr.bf16.gmra.mrb[0].mxu0 %v1635
        %v1768 = vpop.f32.mrb[0].mxu0
        %v1769 = vadd.f32 0.0, %v1768
        %v1770 = vpop.f32.mrb[0].mxu0
        %v1771 = vadd.f32 0.0, %v1770
        %v1772 = vpop.f32.mrb[0].mxu0
        %v1773 = vadd.f32 0.0, %v1772
        %v1774 = vpop.f32.mrb[0].mxu0
        %v1775 = vadd.f32 0.0, %v1774
        %1776 = vmatprep.mubr.bf16.mxu0 0
        %1777 = vmatmul.mubr.bf16.gmra.mrb[0].mxu0 %v1638
        %v1778 = vpop.f32.mrb[0].mxu0
        %v1779 = vadd.f32 0.0, %v1778
        %v1780 = vpop.f32.mrb[0].mxu0
        %v1781 = vadd.f32 0.0, %v1780
        %v1782 = vpop.f32.mrb[0].mxu0
        %v1783 = vadd.f32 0.0, %v1782
        %v1784 = vpop.f32.mrb[0].mxu0
        %v1785 = vadd.f32 0.0, %v1784
        %1786 = vmatprep.mubr.bf16.mxu0 0
        %1787 = vmatmul.mubr.bf16.gmra.mrb[0].mxu0 %v1641
        %v1788 = vpop.f32.mrb[0].mxu0
        %v1789 = vadd.f32 0.0, %v1788
        %v1790 = vpop.f32.mrb[0].mxu0
        %v1791 = vadd.f32 0.0, %v1790
        %v1792 = vpop.f32.mrb[0].mxu0
        %v1793 = vadd.f32 0.0, %v1792
        %v1794 = vpop.f32.mrb[0].mxu0
        %v1795 = vadd.f32 0.0, %v1794
        %1796 = vmatprep.mubr.bf16.mxu0 0
        %1797 = vmatmul.mubr.bf16.gmra.mrb[0].mxu0 %v1644
        %v1798 = vpop.f32.mrb[0].mxu0
        %v1799 = vadd.f32 0.0, %v1798
        %v1800 = vpop.f32.mrb[0].mxu0
        %v1801 = vadd.f32 0.0, %v1800
        %v1802 = vpop.f32.mrb[0].mxu0
        %v1803 = vadd.f32 0.0, %v1802
        %v1804 = vpop.f32.mrb[0].mxu0
        %v1805 = vadd.f32 0.0, %v1804
        %1806 = vdwg.mxu0
        %v1807 = vmax.f32 %v1729, %v1731
        %1808 = vmax.xlane.f32.xlu0 %v1807
        %v1809 = vpop.xlane.xlu0 %1808
        %v1810 = vmax.f32 %v1733, %v1735
        %1811 = vmax.xlane.f32.xlu0 %v1810
        %v1812 = vpop.xlane.xlu0 %1811
        %v1813 = vmax.f32 %v1739, %v1741
        %1814 = vmax.xlane.f32.xlu0 %v1813
        %v1815 = vpop.xlane.xlu0 %1814
        %v1816 = vmax.f32 %v1743, %v1745
        %1817 = vmax.xlane.f32.xlu0 %v1816
        %v1818 = vpop.xlane.xlu0 %1817
        %v1819 = vmax.f32 %v1749, %v1751
        %1820 = vmax.xlane.f32.xlu0 %v1819
        %v1821 = vpop.xlane.xlu0 %1820
        %v1822 = vmax.f32 %v1753, %v1755
        %1823 = vmax.xlane.f32.xlu0 %v1822
        %v1824 = vpop.xlane.xlu0 %1823
        %v1825 = vmax.f32 %v1759, %v1761
        %1826 = vmax.xlane.f32.xlu0 %v1825
        %v1827 = vpop.xlane.xlu0 %1826
        %v1828 = vmax.f32 %v1763, %v1765
        %1829 = vmax.xlane.f32.xlu0 %v1828
        %v1830 = vpop.xlane.xlu0 %1829
        %v1831 = vmax.f32 %v1769, %v1771
        %1832 = vmax.xlane.f32.xlu0 %v1831
        %v1833 = vpop.xlane.xlu0 %1832
        %v1834 = vmax.f32 %v1773, %v1775
        %1835 = vmax.xlane.f32.xlu0 %v1834
        %v1836 = vpop.xlane.xlu0 %1835
        %v1837 = vmax.f32 %v1779, %v1781
        %1838 = vmax.xlane.f32.xlu0 %v1837
        %v1839 = vpop.xlane.xlu0 %1838
        %v1840 = vmax.f32 %v1783, %v1785
        %1841 = vmax.xlane.f32.xlu0 %v1840
        %v1842 = vpop.xlane.xlu0 %1841
        %v1843 = vmax.f32 %v1789, %v1791
        %1844 = vmax.xlane.f32.xlu0 %v1843
        %v1845 = vpop.xlane.xlu0 %1844
        %v1846 = vmax.f32 %v1793, %v1795
        %1847 = vmax.xlane.f32.xlu0 %v1846
        %v1848 = vpop.xlane.xlu0 %1847
        %v1849 = vmax.f32 %v1799, %v1801
        %1850 = vmax.xlane.f32.xlu0 %v1849
        %v1851 = vpop.xlane.xlu0 %1850
        %v1852 = vmax.f32 %v1803, %v1805
        %1853 = vmax.xlane.f32.xlu0 %v1852
        %v1854 = vpop.xlane.xlu0 %1853
        %v1855 = vsub.f32 %v1729, %v1809
        %v1856 = vsub.f32 %v1731, %v1809
        %v1857 = vsub.f32 %v1733, %v1812
        %v1858 = vsub.f32 %v1735, %v1812
        %v1859 = vsub.f32 %v1739, %v1815
        %v1860 = vsub.f32 %v1741, %v1815
        %v1861 = vsub.f32 %v1743, %v1818
        %v1862 = vsub.f32 %v1745, %v1818
        %v1863 = vsub.f32 %v1749, %v1821
        %v1864 = vsub.f32 %v1751, %v1821
        %v1865 = vsub.f32 %v1753, %v1824
        %v1866 = vsub.f32 %v1755, %v1824
        %v1867 = vsub.f32 %v1759, %v1827
        %v1868 = vsub.f32 %v1761, %v1827
        %v1869 = vsub.f32 %v1763, %v1830
        %v1870 = vsub.f32 %v1765, %v1830
        %v1871 = vsub.f32 %v1769, %v1833
        %v1872 = vsub.f32 %v1771, %v1833
        %v1873 = vsub.f32 %v1773, %v1836
        %v1874 = vsub.f32 %v1775, %v1836
        %v1875 = vsub.f32 %v1779, %v1839
        %v1876 = vsub.f32 %v1781, %v1839
        %v1877 = vsub.f32 %v1783, %v1842
        %v1878 = vsub.f32 %v1785, %v1842
        %v1879 = vsub.f32 %v1789, %v1845
        %v1880 = vsub.f32 %v1791, %v1845
        %v1881 = vsub.f32 %v1793, %v1848
        %v1882 = vsub.f32 %v1795, %v1848
        %v1883 = vsub.f32 %v1799, %v1851
        %v1884 = vsub.f32 %v1801, %v1851
        %v1885 = vsub.f32 %v1803, %v1854
        %v1886 = vsub.f32 %v1805, %v1854
        %v1887 = vmul.f32 %v1855, 1.442695
        %v1888 = vpow.pop %v1887
        %v1889 = vmul.f32 %v1856, 1.442695
        %v1890 = vpow.pop %v1889
        %v1891 = vmul.f32 %v1857, 1.442695
        %v1892 = vpow.pop %v1891
        %v1893 = vmul.f32 %v1858, 1.442695
        %v1894 = vpow.pop %v1893
        %v1895 = vmul.f32 %v1859, 1.442695
        %v1896 = vpow.pop %v1895
        %v1897 = vmul.f32 %v1860, 1.442695
        %v1898 = vpow.pop %v1897
        %v1899 = vmul.f32 %v1861, 1.442695
        %v1900 = vpow.pop %v1899
        %v1901 = vmul.f32 %v1862, 1.442695
        %v1902 = vpow.pop %v1901
        %v1903 = vmul.f32 %v1863, 1.442695
        %v1904 = vpow.pop %v1903
        %v1905 = vmul.f32 %v1864, 1.442695
        %v1906 = vpow.pop %v1905
        %v1907 = vmul.f32 %v1865, 1.442695
        %v1908 = vpow.pop %v1907
        %v1909 = vmul.f32 %v1866, 1.442695
        %v1910 = vpow.pop %v1909
        %v1911 = vmul.f32 %v1867, 1.442695
        %v1912 = vpow.pop %v1911
        %v1913 = vmul.f32 %v1868, 1.442695
        %v1914 = vpow.pop %v1913
        %v1915 = vmul.f32 %v1869, 1.442695
        %v1916 = vpow.pop %v1915
        %v1917 = vmul.f32 %v1870, 1.442695
        %v1918 = vpow.pop %v1917
        %v1919 = vmul.f32 %v1871, 1.442695
        %v1920 = vpow.pop %v1919
        %v1921 = vmul.f32 %v1872, 1.442695
        %v1922 = vpow.pop %v1921
        %v1923 = vmul.f32 %v1873, 1.442695
        %v1924 = vpow.pop %v1923
        %v1925 = vmul.f32 %v1874, 1.442695
        %v1926 = vpow.pop %v1925
        %v1927 = vmul.f32 %v1875, 1.442695
        %v1928 = vpow.pop %v1927
        %v1929 = vmul.f32 %v1876, 1.442695
        %v1930 = vpow.pop %v1929
        %v1931 = vmul.f32 %v1877, 1.442695
        %v1932 = vpow.pop %v1931
        %v1933 = vmul.f32 %v1878, 1.442695
        %v1934 = vpow.pop %v1933
        %v1935 = vmul.f32 %v1879, 1.442695
        %v1936 = vpow.pop %v1935
        %v1937 = vmul.f32 %v1880, 1.442695
        %v1938 = vpow.pop %v1937
        %v1939 = vmul.f32 %v1881, 1.442695
        %v1940 = vpow.pop %v1939
        %v1941 = vmul.f32 %v1882, 1.442695
        %v1942 = vpow.pop %v1941
        %v1943 = vmul.f32 %v1883, 1.442695
        %v1944 = vpow.pop %v1943
        %v1945 = vmul.f32 %v1884, 1.442695
        %v1946 = vpow.pop %v1945
        %v1947 = vmul.f32 %v1885, 1.442695
        %v1948 = vpow.pop %v1947
        %v1949 = vmul.f32 %v1886, 1.442695
        %v1950 = vpow.pop %v1949
        %v1951 = vadd.f32 %v1888, %v1890
        %1952 = vadd.xlane.f32.xlu0 %v1951
        %v1953 = vpop.xlane.xlu0 %1952
        %v1954 = vadd.f32 %v1892, %v1894
        %1955 = vadd.xlane.f32.xlu0 %v1954
        %v1956 = vpop.xlane.xlu0 %1955
        %v1957 = vadd.f32 %v1896, %v1898
        %1958 = vadd.xlane.f32.xlu0 %v1957
        %v1959 = vpop.xlane.xlu0 %1958
        %v1960 = vadd.f32 %v1900, %v1902
        %1961 = vadd.xlane.f32.xlu0 %v1960
        %v1962 = vpop.xlane.xlu0 %1961
        %v1963 = vadd.f32 %v1904, %v1906
        %1964 = vadd.xlane.f32.xlu0 %v1963
        %v1965 = vpop.xlane.xlu0 %1964
        %v1966 = vadd.f32 %v1908, %v1910
        %1967 = vadd.xlane.f32.xlu0 %v1966
        %v1968 = vpop.xlane.xlu0 %1967
        %v1969 = vadd.f32 %v1912, %v1914
        %1970 = vadd.xlane.f32.xlu0 %v1969
        %v1971 = vpop.xlane.xlu0 %1970
        %v1972 = vadd.f32 %v1916, %v1918
        %1973 = vadd.xlane.f32.xlu0 %v1972
        %v1974 = vpop.xlane.xlu0 %1973
        %v1975 = vadd.f32 %v1920, %v1922
        %1976 = vadd.xlane.f32.xlu0 %v1975
        %v1977 = vpop.xlane.xlu0 %1976
        %v1978 = vadd.f32 %v1924, %v1926
        %1979 = vadd.xlane.f32.xlu0 %v1978
        %v1980 = vpop.xlane.xlu0 %1979
        %v1981 = vadd.f32 %v1928, %v1930
        %1982 = vadd.xlane.f32.xlu0 %v1981
        %v1983 = vpop.xlane.xlu0 %1982
        %v1984 = vadd.f32 %v1932, %v1934
        %1985 = vadd.xlane.f32.xlu0 %v1984
        %v1986 = vpop.xlane.xlu0 %1985
        %v1987 = vadd.f32 %v1936, %v1938
        %1988 = vadd.xlane.f32.xlu0 %v1987
        %v1989 = vpop.xlane.xlu0 %1988
        %v1990 = vadd.f32 %v1940, %v1942
        %1991 = vadd.xlane.f32.xlu0 %v1990
        %v1992 = vpop.xlane.xlu0 %1991
        %v1993 = vadd.f32 %v1944, %v1946
        %1994 = vadd.xlane.f32.xlu0 %v1993
        %v1995 = vpop.xlane.xlu0 %1994
        %v1996 = vadd.f32 %v1948, %v1950
        %1997 = vadd.xlane.f32.xlu0 %v1996
        %v1998 = vpop.xlane.xlu0 %1997
        %v1999 = vpack.c.bf16 %v1892, %v1888
        %v2000 = vpack.c.bf16 %v1894, %v1890
        %v2001 = vpack.c.bf16 %v1900, %v1896
        %v2002 = vpack.c.bf16 %v1902, %v1898
        %v2003 = vpack.c.bf16 %v1908, %v1904
        %v2004 = vpack.c.bf16 %v1910, %v1906
        %v2005 = vpack.c.bf16 %v1916, %v1912
        %v2006 = vpack.c.bf16 %v1918, %v1914
        %v2007 = vpack.c.bf16 %v1924, %v1920
        %v2008 = vpack.c.bf16 %v1926, %v1922
        %v2009 = vpack.c.bf16 %v1932, %v1928
        %v2010 = vpack.c.bf16 %v1934, %v1930
        %v2011 = vpack.c.bf16 %v1940, %v1936
        %v2012 = vpack.c.bf16 %v1942, %v1938
        %v2013 = vpack.c.bf16 %v1948, %v1944
        %v2014 = vpack.c.bf16 %v1950, %v1946
        %2015 = vmatprep.subr.bf16.mxu0 0
        %2016 = vmatpush1.bf16.msra.mxu0 %v1605
        %2017 = vmatprep.subr.bf16.mxu0 0
        %2018 = vmatpush1.bf16.msra.mxu0 %v1606
        %2019 = vmatprep.subr.bf16.mxu0 0
        %2020 = vmatpush1.bf16.msra.mxu0 %v1607
        %2021 = vmatprep.subr.bf16.mxu0 0
        %2022 = vmatpush1.bf16.msra.mxu0 %v1608
        %2023 = vmatprep.subr.bf16.mxu0 0
        %2024 = vmatpush1.bf16.msra.mxu0 %v1609
        %2025 = vmatprep.subr.bf16.mxu0 0
        %2026 = vmatpush1.bf16.msra.mxu0 %v1610
        %2027 = vmatprep.subr.bf16.mxu0 0
        %2028 = vmatpush1.bf16.msra.mxu0 %v1611
        %2029 = vmatprep.subr.bf16.mxu0 0
        %2030 = vmatpush1.bf16.msra.mxu0 %v1612
        %2031 = vmatprep.subr.bf16.mxu0 0
        %2032 = vmatpush1.bf16.msra.mxu0 %v1613
        %2033 = vmatprep.subr.bf16.mxu0 0
        %2034 = vmatpush1.bf16.msra.mxu0 %v1614
        %2035 = vmatprep.subr.bf16.mxu0 0
        %2036 = vmatpush1.bf16.msra.mxu0 %v1615
        %2037 = vmatprep.subr.bf16.mxu0 0
        %2038 = vmatpush1.bf16.msra.mxu0 %v1616
        %2039 = vmatprep.subr.bf16.mxu0 0
        %2040 = vmatpush1.bf16.msra.mxu0 %v1617
        %2041 = vmatprep.subr.bf16.mxu0 0
        %2042 = vmatpush1.bf16.msra.mxu0 %v1618
        %2043 = vmatprep.subr.bf16.mxu0 0
        %2044 = vmatpush1.bf16.msra.mxu0 %v1619
        %2045 = vmatprep.subr.bf16.mxu0 0
        %2046 = vmatpush1.bf16.msra.mxu0 %v1620
        %2047 = vmatprep.mubr.bf16.mxu0 %v2000
        %2048 = vmatmul.mubr.bf16.gmra.mrb[0].mxu0 %v1999
        %v2049 = vpop.f32.mrb[0].mxu0
        %v2050 = vadd.f32 0.0, %v2049
        %v2051 = vpop.f32.mrb[0].mxu0
        %v2052 = vpop.f32.mrb[0].mxu0
        %v2053 = vadd.f32 0.0, %v2052
        %v2054 = vpop.f32.mrb[0].mxu0
        %2055 = vmatprep.mubr.bf16.mxu0 %v2002
        %2056 = vmatmul.mubr.bf16.gmra.mrb[0].mxu0 %v2001
        %v2057 = vpop.f32.mrb[0].mxu0
        %v2058 = vadd.f32 0.0, %v2057
        %v2059 = vpop.f32.mrb[0].mxu0
        %v2060 = vpop.f32.mrb[0].mxu0
        %v2061 = vadd.f32 0.0, %v2060
        %v2062 = vpop.f32.mrb[0].mxu0
        %2063 = vmatprep.mubr.bf16.mxu0 %v2004
        %2064 = vmatmul.mubr.bf16.gmra.mrb[0].mxu0 %v2003
        %v2065 = vpop.f32.mrb[0].mxu0
        %v2066 = vadd.f32 0.0, %v2065
        %v2067 = vpop.f32.mrb[0].mxu0
        %v2068 = vpop.f32.mrb[0].mxu0
        %v2069 = vadd.f32 0.0, %v2068
        %v2070 = vpop.f32.mrb[0].mxu0
        %2071 = vmatprep.mubr.bf16.mxu0 %v2006
        %2072 = vmatmul.mubr.bf16.gmra.mrb[0].mxu0 %v2005
        %v2073 = vpop.f32.mrb[0].mxu0
        %v2074 = vadd.f32 0.0, %v2073
        %v2075 = vpop.f32.mrb[0].mxu0
        %v2076 = vpop.f32.mrb[0].mxu0
        %v2077 = vadd.f32 0.0, %v2076
        %v2078 = vpop.f32.mrb[0].mxu0
        %2079 = vmatprep.mubr.bf16.mxu0 %v2008
        %2080 = vmatmul.mubr.bf16.gmra.mrb[0].mxu0 %v2007
        %v2081 = vpop.f32.mrb[0].mxu0
        %v2082 = vadd.f32 0.0, %v2081
        %v2083 = vpop.f32.mrb[0].mxu0
        %v2084 = vpop.f32.mrb[0].mxu0
        %v2085 = vadd.f32 0.0, %v2084
        %v2086 = vpop.f32.mrb[0].mxu0
        %2087 = vmatprep.mubr.bf16.mxu0 %v2010
        %2088 = vmatmul.mubr.bf16.gmra.mrb[0].mxu0 %v2009
        %v2089 = vpop.f32.mrb[0].mxu0
        %v2090 = vadd.f32 0.0, %v2089
        %v2091 = vpop.f32.mrb[0].mxu0
        %v2092 = vpop.f32.mrb[0].mxu0
        %v2093 = vadd.f32 0.0, %v2092
        %v2094 = vpop.f32.mrb[0].mxu0
        %2095 = vmatprep.mubr.bf16.mxu0 %v2012
        %2096 = vmatmul.mubr.bf16.gmra.mrb[0].mxu0 %v2011
        %v2097 = vpop.f32.mrb[0].mxu0
        %v2098 = vadd.f32 0.0, %v2097
        %v2099 = vpop.f32.mrb[0].mxu0
        %v2100 = vpop.f32.mrb[0].mxu0
        %v2101 = vadd.f32 0.0, %v2100
        %v2102 = vpop.f32.mrb[0].mxu0
        %2103 = vmatprep.mubr.bf16.mxu0 %v2014
        %2104 = vmatmul.mubr.bf16.gmra.mrb[0].mxu0 %v2013
        %v2105 = vpop.f32.mrb[0].mxu0
        %v2106 = vadd.f32 0.0, %v2105
        %v2107 = vpop.f32.mrb[0].mxu0
        %v2108 = vpop.f32.mrb[0].mxu0
        %v2109 = vadd.f32 0.0, %v2108
        %v2110 = vpop.f32.mrb[0].mxu0
        %2111 = vdwg.mxu0
        %v2112 = vrcp.pop %v1953
        %v2113 = vrcp.pop %v1956
        %v2114 = vrcp.pop %v1959
        %v2115 = vrcp.pop %v1962
        %v2116 = vrcp.pop %v1965
        %v2117 = vrcp.pop %v1968
        %v2118 = vrcp.pop %v1971
        %v2119 = vrcp.pop %v1974
        %v2120 = vrcp.pop %v1977
        %v2121 = vrcp.pop %v1980
        %v2122 = vrcp.pop %v1983
        %v2123 = vrcp.pop %v1986
        %v2124 = vrcp.pop %v1989
        %v2125 = vrcp.pop %v1992
        %v2126 = vrcp.pop %v1995
        %v2127 = vrcp.pop %v1998
        %v2128 = vmul.f32 %v2050, %v2112
        %v2129 = vmul.f32 %v2053, %v2113
        %v2130 = vmul.f32 %v2058, %v2114
        %v2131 = vmul.f32 %v2061, %v2115
        %v2132 = vmul.f32 %v2066, %v2116
        %v2133 = vmul.f32 %v2069, %v2117
        %v2134 = vmul.f32 %v2074, %v2118
        %v2135 = vmul.f32 %v2077, %v2119
        %v2136 = vmul.f32 %v2082, %v2120
        %v2137 = vmul.f32 %v2085, %v2121
        %v2138 = vmul.f32 %v2090, %v2122
        %v2139 = vmul.f32 %v2093, %v2123
        %v2140 = vmul.f32 %v2098, %v2124
        %v2141 = vmul.f32 %v2101, %v2125
        %v2142 = vmul.f32 %v2106, %v2126
        %v2143 = vmul.f32 %v2109, %v2127
        %v2144 = vpack.c.bf16 %v2129, %v2128
        %v2145 = vpack.c.bf16 %v2131, %v2130
        %v2146 = vpack.c.bf16 %v2133, %v2132
        %v2147 = vpack.c.bf16 %v2135, %v2134
        %v2148 = vpack.c.bf16 %v2137, %v2136
        %v2149 = vpack.c.bf16 %v2139, %v2138
        %v2150 = vpack.c.bf16 %v2141, %v2140
        %v2151 = vpack.c.bf16 %v2143, %v2142
        %2152 = vst.msk [vmem:[#allocation4] sm:$0xff] %vm1621, %v2144
        %2153 = vst.msk [vmem:[#allocation4 + $0x8] sm:$0xff] %vm1621, %v2145
        %2154 = vst.msk [vmem:[#allocation4 + $0x10] sm:$0xff] %vm1621, %v2146
        %2155 = vst.msk [vmem:[#allocation4 + $0x18] sm:$0xff] %vm1621, %v2147
        %2156 = vst.msk [vmem:[#allocation4 + $0x20] sm:$0xff] %vm1621, %v2148
        %2157 = vst.msk [vmem:[#allocation4 + $0x28] sm:$0xff] %vm1621, %v2149
        %2158 = vst.msk [vmem:[#allocation4 + $0x30] sm:$0xff] %vm1621, %v2150
        %2159 = vst.msk [vmem:[#allocation4 + $0x38] sm:$0xff] %vm1621, %v2151
        %v2160 = vld [vmem:[#allocation2] sm:$0xff]
        %v2161 = vld [vmem:[#allocation2 + $0x8] sm:$0xff]
        %v2162 = vld [vmem:[#allocation2 + $0x10] sm:$0xff]
        %v2163 = vld [vmem:[#allocation2 + $0x18] sm:$0xff]
        %v2164 = vld [vmem:[#allocation2 + $0x20] sm:$0xff]
        %v2165 = vld [vmem:[#allocation2 + $0x28] sm:$0xff]
        %v2166 = vld [vmem:[#allocation2 + $0x30] sm:$0xff]
        %v2167 = vld [vmem:[#allocation2 + $0x38] sm:$0xff]
        %v2168 = vld [vmem:[#allocation2 + $0x40] sm:$0xff]
        %v2169 = vld [vmem:[#allocation2 + $0x48] sm:$0xff]
        %v2170 = vld [vmem:[#allocation2 + $0x50] sm:$0xff]
        %v2171 = vld [vmem:[#allocation2 + $0x58] sm:$0xff]
        %v2172 = vld [vmem:[#allocation2 + $0x60] sm:$0xff]
        %v2173 = vld [vmem:[#allocation2 + $0x68] sm:$0xff]
        %v2174 = vld [vmem:[#allocation2 + $0x70] sm:$0xff]
        %v2175 = vld [vmem:[#allocation2 + $0x78] sm:$0xff]
        %v2176 = vld [vmem:[#allocation3] sm:$0xff]
        %v2177 = vld [vmem:[#allocation3 + $0x8] sm:$0xff]
        %v2178 = vld [vmem:[#allocation3 + $0x10] sm:$0xff]
        %v2179 = vld [vmem:[#allocation3 + $0x18] sm:$0xff]
        %v2180 = vld [vmem:[#allocation3 + $0x20] sm:$0xff]
        %v2181 = vld [vmem:[#allocation3 + $0x28] sm:$0xff]
        %v2182 = vld [vmem:[#allocation3 + $0x30] sm:$0xff]
        %v2183 = vld [vmem:[#allocation3 + $0x38] sm:$0xff]
        %v2184 = vld [vmem:[#allocation3 + $0x40] sm:$0xff]
        %v2185 = vld [vmem:[#allocation3 + $0x48] sm:$0xff]
        %v2186 = vld [vmem:[#allocation3 + $0x50] sm:$0xff]
        %v2187 = vld [vmem:[#allocation3 + $0x58] sm:$0xff]
        %v2188 = vld [vmem:[#allocation3 + $0x60] sm:$0xff]
        %v2189 = vld [vmem:[#allocation3 + $0x68] sm:$0xff]
        %v2190 = vld [vmem:[#allocation3 + $0x70] sm:$0xff]
        %v2191 = vld [vmem:[#allocation3 + $0x78] sm:$0xff]
        %2200 = vrot.lane.b32.xlu0 %v1581, 96
        %v2201 = vpop.permute.xlu0 %2200
        %2202 = vrot.lane.b32.xlu0 %v1582, 96
        %v2203 = vpop.permute.xlu0 %2202
        %2204 = vrot.lane.b32.xlu0 %v1583, 96
        %v2205 = vpop.permute.xlu0 %2204
        %2206 = vrot.lane.b32.xlu0 %v1584, 96
        %v2207 = vpop.permute.xlu0 %2206
        %2208 = vrot.lane.b32.xlu0 %v1585, 96
        %v2209 = vpop.permute.xlu0 %2208
        %2210 = vrot.lane.b32.xlu0 %v1586, 96
        %v2211 = vpop.permute.xlu0 %2210
        %2212 = vrot.lane.b32.xlu0 %v1587, 96
        %v2213 = vpop.permute.xlu0 %2212
        %2214 = vrot.lane.b32.xlu0 %v1588, 96
        %v2215 = vpop.permute.xlu0 %2214
        %2232 = vrot.lane.b32.xlu0 %v2160, 96
        %v2233 = vpop.permute.xlu0 %2232
        %2234 = vrot.lane.b32.xlu0 %v2161, 96
        %v2235 = vpop.permute.xlu0 %2234
        %2236 = vrot.lane.b32.xlu0 %v2162, 96
        %v2237 = vpop.permute.xlu0 %2236
        %2238 = vrot.lane.b32.xlu0 %v2163, 96
        %v2239 = vpop.permute.xlu0 %2238
        %2240 = vrot.lane.b32.xlu0 %v2164, 96
        %v2241 = vpop.permute.xlu0 %2240
        %2242 = vrot.lane.b32.xlu0 %v2165, 96
        %v2243 = vpop.permute.xlu0 %2242
        %2244 = vrot.lane.b32.xlu0 %v2166, 96
        %v2245 = vpop.permute.xlu0 %2244
        %2246 = vrot.lane.b32.xlu0 %v2167, 96
        %v2247 = vpop.permute.xlu0 %2246
        %2248 = vrot.lane.b32.xlu0 %v2168, 96
        %v2249 = vpop.permute.xlu0 %2248
        %2250 = vrot.lane.b32.xlu0 %v2169, 96
        %v2251 = vpop.permute.xlu0 %2250
        %2252 = vrot.lane.b32.xlu0 %v2170, 96
        %v2253 = vpop.permute.xlu0 %2252
        %2254 = vrot.lane.b32.xlu0 %v2171, 96
        %v2255 = vpop.permute.xlu0 %2254
        %2256 = vrot.lane.b32.xlu0 %v2172, 96
        %v2257 = vpop.permute.xlu0 %2256
        %2258 = vrot.lane.b32.xlu0 %v2173, 96
        %v2259 = vpop.permute.xlu0 %2258
        %2260 = vrot.lane.b32.xlu0 %v2174, 96
        %v2261 = vpop.permute.xlu0 %2260
        %2262 = vrot.lane.b32.xlu0 %v2175, 96
        %v2263 = vpop.permute.xlu0 %2262
        %v2265 = vsel %vm1621, %v2201, 0
        %v2268 = vsel %vm1621, %v2203, 0
        %v2271 = vsel %vm1621, %v2205, 0
        %v2274 = vsel %vm1621, %v2207, 0
        %v2277 = vsel %vm1621, %v2209, 0
        %v2280 = vsel %vm1621, %v2211, 0
        %v2283 = vsel %vm1621, %v2213, 0
        %v2286 = vsel %vm1621, %v2215, 0
        %v2289 = vsel %vm1621, %v2233, 0
        %v2292 = vsel %vm1621, %v2235, 0
        %v2295 = vsel %vm1621, %v2237, 0
        %v2298 = vsel %vm1621, %v2239, 0
        %v2301 = vsel %vm1621, %v2241, 0
        %v2304 = vsel %vm1621, %v2243, 0
        %v2307 = vsel %vm1621, %v2245, 0
        %v2310 = vsel %vm1621, %v2247, 0
        %v2313 = vsel %vm1621, %v2249, 0
        %v2316 = vsel %vm1621, %v2251, 0
        %v2319 = vsel %vm1621, %v2253, 0
        %v2322 = vsel %vm1621, %v2255, 0
        %v2325 = vsel %vm1621, %v2257, 0
        %v2328 = vsel %vm1621, %v2259, 0
        %v2331 = vsel %vm1621, %v2261, 0
        %v2334 = vsel %vm1621, %v2263, 0
        %2336 = vmatprep.subr.bf16.mxu0 0
        %2337 = vmatpush1.bf16.xpose.msra.mxu0 %v2289
        %2338 = vmatprep.subr.bf16.mxu0 0
        %2339 = vmatpush1.bf16.xpose.msra.mxu0 %v2292
        %2340 = vmatprep.subr.bf16.mxu0 0
        %2341 = vmatpush1.bf16.xpose.msra.mxu0 %v2295
        %2342 = vmatprep.subr.bf16.mxu0 0
        %2343 = vmatpush1.bf16.xpose.msra.mxu0 %v2298
        %2344 = vmatprep.subr.bf16.mxu0 0
        %2345 = vmatpush1.bf16.xpose.msra.mxu0 %v2301
        %2346 = vmatprep.subr.bf16.mxu0 0
        %2347 = vmatpush1.bf16.xpose.msra.mxu0 %v2304
        %2348 = vmatprep.subr.bf16.mxu0 0
        %2349 = vmatpush1.bf16.xpose.msra.mxu0 %v2307
        %2350 = vmatprep.subr.bf16.mxu0 0
        %2351 = vmatpush1.bf16.xpose.msra.mxu0 %v2310
        %2352 = vmatprep.subr.bf16.mxu0 0
        %2353 = vmatpush1.bf16.xpose.msra.mxu0 %v2313
        %2354 = vmatprep.subr.bf16.mxu0 0
        %2355 = vmatpush1.bf16.xpose.msra.mxu0 %v2316
        %2356 = vmatprep.subr.bf16.mxu0 0
        %2357 = vmatpush1.bf16.xpose.msra.mxu0 %v2319
        %2358 = vmatprep.subr.bf16.mxu0 0
        %2359 = vmatpush1.bf16.xpose.msra.mxu0 %v2322
        %2360 = vmatprep.subr.bf16.mxu0 0
        %2361 = vmatpush1.bf16.xpose.msra.mxu0 %v2325
        %2362 = vmatprep.subr.bf16.mxu0 0
        %2363 = vmatpush1.bf16.xpose.msra.mxu0 %v2328
        %2364 = vmatprep.subr.bf16.mxu0 0
        %2365 = vmatpush1.bf16.xpose.msra.mxu0 %v2331
        %2366 = vmatprep.subr.bf16.mxu0 0
        %2367 = vmatpush1.bf16.xpose.msra.mxu0 %v2334
        %2368 = vmatprep.mubr.bf16.mxu0 0
        %2369 = vmatmul.mubr.bf16.gmra.mrb[0].mxu0 %v2265
        %v2370 = vpop.f32.mrb[0].mxu0
        %v2371 = vadd.f32 0.0, %v2370
        %v2372 = vpop.f32.mrb[0].mxu0
        %v2373 = vadd.f32 0.0, %v2372
        %v2374 = vpop.f32.mrb[0].mxu0
        %v2375 = vadd.f32 0.0, %v2374
        %v2376 = vpop.f32.mrb[0].mxu0
        %v2377 = vadd.f32 0.0, %v2376
        %2378 = vmatprep.mubr.bf16.mxu0 0
        %2379 = vmatmul.mubr.bf16.gmra.mrb[0].mxu0 %v2268
        %v2380 = vpop.f32.mrb[0].mxu0
        %v2381 = vadd.f32 0.0, %v2380
        %v2382 = vpop.f32.mrb[0].mxu0
        %v2383 = vadd.f32 0.0, %v2382
        %v2384 = vpop.f32.mrb[0].mxu0
        %v2385 = vadd.f32 0.0, %v2384
        %v2386 = vpop.f32.mrb[0].mxu0
        %v2387 = vadd.f32 0.0, %v2386
        %2388 = vmatprep.mubr.bf16.mxu0 0
        %2389 = vmatmul.mubr.bf16.gmra.mrb[0].mxu0 %v2271
        %v2390 = vpop.f32.mrb[0].mxu0
        %v2391 = vadd.f32 0.0, %v2390
        %v2392 = vpop.f32.mrb[0].mxu0
        %v2393 = vadd.f32 0.0, %v2392
        %v2394 = vpop.f32.mrb[0].mxu0
        %v2395 = vadd.f32 0.0, %v2394
        %v2396 = vpop.f32.mrb[0].mxu0
        %v2397 = vadd.f32 0.0, %v2396
        %2398 = vmatprep.mubr.bf16.mxu0 0
        %2399 = vmatmul.mubr.bf16.gmra.mrb[0].mxu0 %v2274
        %v2400 = vpop.f32.mrb[0].mxu0
        %v2401 = vadd.f32 0.0, %v2400
        %v2402 = vpop.f32.mrb[0].mxu0
        %v2403 = vadd.f32 0.0, %v2402
        %v2404 = vpop.f32.mrb[0].mxu0
        %v2405 = vadd.f32 0.0, %v2404
        %v2406 = vpop.f32.mrb[0].mxu0
        %v2407 = vadd.f32 0.0, %v2406
        %2408 = vmatprep.mubr.bf16.mxu0 0
        %2409 = vmatmul.mubr.bf16.gmra.mrb[0].mxu0 %v2277
        %v2410 = vpop.f32.mrb[0].mxu0
        %v2411 = vadd.f32 0.0, %v2410
        %v2412 = vpop.f32.mrb[0].mxu0
        %v2413 = vadd.f32 0.0, %v2412
        %v2414 = vpop.f32.mrb[0].mxu0
        %v2415 = vadd.f32 0.0, %v2414
        %v2416 = vpop.f32.mrb[0].mxu0
        %v2417 = vadd.f32 0.0, %v2416
        %2418 = vmatprep.mubr.bf16.mxu0 0
        %2419 = vmatmul.mubr.bf16.gmra.mrb[0].mxu0 %v2280
        %v2420 = vpop.f32.mrb[0].mxu0
        %v2421 = vadd.f32 0.0, %v2420
        %v2422 = vpop.f32.mrb[0].mxu0
        %v2423 = vadd.f32 0.0, %v2422
        %v2424 = vpop.f32.mrb[0].mxu0
        %v2425 = vadd.f32 0.0, %v2424
        %v2426 = vpop.f32.mrb[0].mxu0
        %v2427 = vadd.f32 0.0, %v2426
        %2428 = vmatprep.mubr.bf16.mxu0 0
        %2429 = vmatmul.mubr.bf16.gmra.mrb[0].mxu0 %v2283
        %v2430 = vpop.f32.mrb[0].mxu0
        %v2431 = vadd.f32 0.0, %v2430
        %v2432 = vpop.f32.mrb[0].mxu0
        %v2433 = vadd.f32 0.0, %v2432
        %v2434 = vpop.f32.mrb[0].mxu0
        %v2435 = vadd.f32 0.0, %v2434
        %v2436 = vpop.f32.mrb[0].mxu0
        %v2437 = vadd.f32 0.0, %v2436
        %2438 = vmatprep.mubr.bf16.mxu0 0
        %2439 = vmatmul.mubr.bf16.gmra.mrb[0].mxu0 %v2286
        %v2440 = vpop.f32.mrb[0].mxu0
        %v2441 = vadd.f32 0.0, %v2440
        %v2442 = vpop.f32.mrb[0].mxu0
        %v2443 = vadd.f32 0.0, %v2442
        %v2444 = vpop.f32.mrb[0].mxu0
        %v2445 = vadd.f32 0.0, %v2444
        %v2446 = vpop.f32.mrb[0].mxu0
        %v2447 = vadd.f32 0.0, %v2446
        %2448 = vdwg.mxu0
        %v2449 = vmax.f32 %v2371, %v2373
        %2450 = vmax.xlane.f32.xlu0 %v2449
        %v2451 = vpop.xlane.xlu0 %2450
        %v2452 = vmax.f32 %v2375, %v2377
        %2453 = vmax.xlane.f32.xlu0 %v2452
        %v2454 = vpop.xlane.xlu0 %2453
        %v2455 = vmax.f32 %v2381, %v2383
        %2456 = vmax.xlane.f32.xlu0 %v2455
        %v2457 = vpop.xlane.xlu0 %2456
        %v2458 = vmax.f32 %v2385, %v2387
        %2459 = vmax.xlane.f32.xlu0 %v2458
        %v2460 = vpop.xlane.xlu0 %2459
        %v2461 = vmax.f32 %v2391, %v2393
        %2462 = vmax.xlane.f32.xlu0 %v2461
        %v2463 = vpop.xlane.xlu0 %2462
        %v2464 = vmax.f32 %v2395, %v2397
        %2465 = vmax.xlane.f32.xlu0 %v2464
        %v2466 = vpop.xlane.xlu0 %2465
        %v2467 = vmax.f32 %v2401, %v2403
        %2468 = vmax.xlane.f32.xlu0 %v2467
        %v2469 = vpop.xlane.xlu0 %2468
        %v2470 = vmax.f32 %v2405, %v2407
        %2471 = vmax.xlane.f32.xlu0 %v2470
        %v2472 = vpop.xlane.xlu0 %2471
        %v2473 = vmax.f32 %v2411, %v2413
        %2474 = vmax.xlane.f32.xlu0 %v2473
        %v2475 = vpop.xlane.xlu0 %2474
        %v2476 = vmax.f32 %v2415, %v2417
        %2477 = vmax.xlane.f32.xlu0 %v2476
        %v2478 = vpop.xlane.xlu0 %2477
        %v2479 = vmax.f32 %v2421, %v2423
        %2480 = vmax.xlane.f32.xlu0 %v2479
        %v2481 = vpop.xlane.xlu0 %2480
        %v2482 = vmax.f32 %v2425, %v2427
        %2483 = vmax.xlane.f32.xlu0 %v2482
        %v2484 = vpop.xlane.xlu0 %2483
        %v2485 = vmax.f32 %v2431, %v2433
        %2486 = vmax.xlane.f32.xlu0 %v2485
        %v2487 = vpop.xlane.xlu0 %2486
        %v2488 = vmax.f32 %v2435, %v2437
        %2489 = vmax.xlane.f32.xlu0 %v2488
        %v2490 = vpop.xlane.xlu0 %2489
        %v2491 = vmax.f32 %v2441, %v2443
        %2492 = vmax.xlane.f32.xlu0 %v2491
        %v2493 = vpop.xlane.xlu0 %2492
        %v2494 = vmax.f32 %v2445, %v2447
        %2495 = vmax.xlane.f32.xlu0 %v2494
        %v2496 = vpop.xlane.xlu0 %2495
        %v2497 = vsub.f32 %v2371, %v2451
        %v2498 = vsub.f32 %v2373, %v2451
        %v2499 = vsub.f32 %v2375, %v2454
        %v2500 = vsub.f32 %v2377, %v2454
        %v2501 = vsub.f32 %v2381, %v2457
        %v2502 = vsub.f32 %v2383, %v2457
        %v2503 = vsub.f32 %v2385, %v2460
        %v2504 = vsub.f32 %v2387, %v2460
        %v2505 = vsub.f32 %v2391, %v2463
        %v2506 = vsub.f32 %v2393, %v2463
        %v2507 = vsub.f32 %v2395, %v2466
        %v2508 = vsub.f32 %v2397, %v2466
        %v2509 = vsub.f32 %v2401, %v2469
        %v2510 = vsub.f32 %v2403, %v2469
        %v2511 = vsub.f32 %v2405, %v2472
        %v2512 = vsub.f32 %v2407, %v2472
        %v2513 = vsub.f32 %v2411, %v2475
        %v2514 = vsub.f32 %v2413, %v2475
        %v2515 = vsub.f32 %v2415, %v2478
        %v2516 = vsub.f32 %v2417, %v2478
        %v2517 = vsub.f32 %v2421, %v2481
        %v2518 = vsub.f32 %v2423, %v2481
        %v2519 = vsub.f32 %v2425, %v2484
        %v2520 = vsub.f32 %v2427, %v2484
        %v2521 = vsub.f32 %v2431, %v2487
        %v2522 = vsub.f32 %v2433, %v2487
        %v2523 = vsub.f32 %v2435, %v2490
        %v2524 = vsub.f32 %v2437, %v2490
        %v2525 = vsub.f32 %v2441, %v2493
        %v2526 = vsub.f32 %v2443, %v2493
        %v2527 = vsub.f32 %v2445, %v2496
        %v2528 = vsub.f32 %v2447, %v2496
        %v2529 = vmul.f32 %v2497, 1.442695
        %v2530 = vpow.pop %v2529
        %v2531 = vmul.f32 %v2498, 1.442695
        %v2532 = vpow.pop %v2531
        %v2533 = vmul.f32 %v2499, 1.442695
        %v2534 = vpow.pop %v2533
        %v2535 = vmul.f32 %v2500, 1.442695
        %v2536 = vpow.pop %v2535
        %v2537 = vmul.f32 %v2501, 1.442695
        %v2538 = vpow.pop %v2537
        %v2539 = vmul.f32 %v2502, 1.442695
        %v2540 = vpow.pop %v2539
        %v2541 = vmul.f32 %v2503, 1.442695
        %v2542 = vpow.pop %v2541
        %v2543 = vmul.f32 %v2504, 1.442695
        %v2544 = vpow.pop %v2543
        %v2545 = vmul.f32 %v2505, 1.442695
        %v2546 = vpow.pop %v2545
        %v2547 = vmul.f32 %v2506, 1.442695
        %v2548 = vpow.pop %v2547
        %v2549 = vmul.f32 %v2507, 1.442695
        %v2550 = vpow.pop %v2549
        %v2551 = vmul.f32 %v2508, 1.442695
        %v2552 = vpow.pop %v2551
        %v2553 = vmul.f32 %v2509, 1.442695
        %v2554 = vpow.pop %v2553
        %v2555 = vmul.f32 %v2510, 1.442695
        %v2556 = vpow.pop %v2555
        %v2557 = vmul.f32 %v2511, 1.442695
        %v2558 = vpow.pop %v2557
        %v2559 = vmul.f32 %v2512, 1.442695
        %v2560 = vpow.pop %v2559
        %v2561 = vmul.f32 %v2513, 1.442695
        %v2562 = vpow.pop %v2561
        %v2563 = vmul.f32 %v2514, 1.442695
        %v2564 = vpow.pop %v2563
        %v2565 = vmul.f32 %v2515, 1.442695
        %v2566 = vpow.pop %v2565
        %v2567 = vmul.f32 %v2516, 1.442695
        %v2568 = vpow.pop %v2567
        %v2569 = vmul.f32 %v2517, 1.442695
        %v2570 = vpow.pop %v2569
        %v2571 = vmul.f32 %v2518, 1.442695
        %v2572 = vpow.pop %v2571
        %v2573 = vmul.f32 %v2519, 1.442695
        %v2574 = vpow.pop %v2573
        %v2575 = vmul.f32 %v2520, 1.442695
        %v2576 = vpow.pop %v2575
        %v2577 = vmul.f32 %v2521, 1.442695
        %v2578 = vpow.pop %v2577
        %v2579 = vmul.f32 %v2522, 1.442695
        %v2580 = vpow.pop %v2579
        %v2581 = vmul.f32 %v2523, 1.442695
        %v2582 = vpow.pop %v2581
        %v2583 = vmul.f32 %v2524, 1.442695
        %v2584 = vpow.pop %v2583
        %v2585 = vmul.f32 %v2525, 1.442695
        %v2586 = vpow.pop %v2585
        %v2587 = vmul.f32 %v2526, 1.442695
        %v2588 = vpow.pop %v2587
        %v2589 = vmul.f32 %v2527, 1.442695
        %v2590 = vpow.pop %v2589
        %v2591 = vmul.f32 %v2528, 1.442695
        %v2592 = vpow.pop %v2591
        %v2593 = vadd.f32 %v2530, %v2532
        %2594 = vadd.xlane.f32.xlu0 %v2593
        %v2595 = vpop.xlane.xlu0 %2594
        %v2596 = vadd.f32 %v2534, %v2536
        %2597 = vadd.xlane.f32.xlu0 %v2596
        %v2598 = vpop.xlane.xlu0 %2597
        %v2599 = vadd.f32 %v2538, %v2540
        %2600 = vadd.xlane.f32.xlu0 %v2599
        %v2601 = vpop.xlane.xlu0 %2600
        %v2602 = vadd.f32 %v2542, %v2544
        %2603 = vadd.xlane.f32.xlu0 %v2602
        %v2604 = vpop.xlane.xlu0 %2603
        %v2605 = vadd.f32 %v2546, %v2548
        %2606 = vadd.xlane.f32.xlu0 %v2605
        %v2607 = vpop.xlane.xlu0 %2606
        %v2608 = vadd.f32 %v2550, %v2552
        %2609 = vadd.xlane.f32.xlu0 %v2608
        %v2610 = vpop.xlane.xlu0 %2609
        %v2611 = vadd.f32 %v2554, %v2556
        %2612 = vadd.xlane.f32.xlu0 %v2611
        %v2613 = vpop.xlane.xlu0 %2612
        %v2614 = vadd.f32 %v2558, %v2560
        %2615 = vadd.xlane.f32.xlu0 %v2614
        %v2616 = vpop.xlane.xlu0 %2615
        %v2617 = vadd.f32 %v2562, %v2564
        %2618 = vadd.xlane.f32.xlu0 %v2617
        %v2619 = vpop.xlane.xlu0 %2618
        %v2620 = vadd.f32 %v2566, %v2568
        %2621 = vadd.xlane.f32.xlu0 %v2620
        %v2622 = vpop.xlane.xlu0 %2621
        %v2623 = vadd.f32 %v2570, %v2572
        %2624 = vadd.xlane.f32.xlu0 %v2623
        %v2625 = vpop.xlane.xlu0 %2624
        %v2626 = vadd.f32 %v2574, %v2576
        %2627 = vadd.xlane.f32.xlu0 %v2626
        %v2628 = vpop.xlane.xlu0 %2627
        %v2629 = vadd.f32 %v2578, %v2580
        %2630 = vadd.xlane.f32.xlu0 %v2629
        %v2631 = vpop.xlane.xlu0 %2630
        %v2632 = vadd.f32 %v2582, %v2584
        %2633 = vadd.xlane.f32.xlu0 %v2632
        %v2634 = vpop.xlane.xlu0 %2633
        %v2635 = vadd.f32 %v2586, %v2588
        %2636 = vadd.xlane.f32.xlu0 %v2635
        %v2637 = vpop.xlane.xlu0 %2636
        %v2638 = vadd.f32 %v2590, %v2592
        %2639 = vadd.xlane.f32.xlu0 %v2638
        %v2640 = vpop.xlane.xlu0 %2639
        %v2641 = vpack.c.bf16 %v2534, %v2530
        %v2642 = vpack.c.bf16 %v2536, %v2532
        %v2643 = vpack.c.bf16 %v2542, %v2538
        %v2644 = vpack.c.bf16 %v2544, %v2540
        %v2645 = vpack.c.bf16 %v2550, %v2546
        %v2646 = vpack.c.bf16 %v2552, %v2548
        %v2647 = vpack.c.bf16 %v2558, %v2554
        %v2648 = vpack.c.bf16 %v2560, %v2556
        %v2649 = vpack.c.bf16 %v2566, %v2562
        %v2650 = vpack.c.bf16 %v2568, %v2564
        %v2651 = vpack.c.bf16 %v2574, %v2570
        %v2652 = vpack.c.bf16 %v2576, %v2572
        %v2653 = vpack.c.bf16 %v2582, %v2578
        %v2654 = vpack.c.bf16 %v2584, %v2580
        %v2655 = vpack.c.bf16 %v2590, %v2586
        %v2656 = vpack.c.bf16 %v2592, %v2588
        %2673 = vrot.lane.b32.xlu0 %v2176, 96
        %v2674 = vpop.permute.xlu0 %2673
        %2675 = vrot.lane.b32.xlu0 %v2177, 96
        %v2676 = vpop.permute.xlu0 %2675
        %2677 = vrot.lane.b32.xlu0 %v2178, 96
        %v2678 = vpop.permute.xlu0 %2677
        %2679 = vrot.lane.b32.xlu0 %v2179, 96
        %v2680 = vpop.permute.xlu0 %2679
        %2681 = vrot.lane.b32.xlu0 %v2180, 96
        %v2682 = vpop.permute.xlu0 %2681
        %2683 = vrot.lane.b32.xlu0 %v2181, 96
        %v2684 = vpop.permute.xlu0 %2683
        %2685 = vrot.lane.b32.xlu0 %v2182, 96
        %v2686 = vpop.permute.xlu0 %2685
        %2687 = vrot.lane.b32.xlu0 %v2183, 96
        %v2688 = vpop.permute.xlu0 %2687
        %2689 = vrot.lane.b32.xlu0 %v2184, 96
        %v2690 = vpop.permute.xlu0 %2689
        %2691 = vrot.lane.b32.xlu0 %v2185, 96
        %v2692 = vpop.permute.xlu0 %2691
        %2693 = vrot.lane.b32.xlu0 %v2186, 96
        %v2694 = vpop.permute.xlu0 %2693
        %2695 = vrot.lane.b32.xlu0 %v2187, 96
        %v2696 = vpop.permute.xlu0 %2695
        %2697 = vrot.lane.b32.xlu0 %v2188, 96
        %v2698 = vpop.permute.xlu0 %2697
        %2699 = vrot.lane.b32.xlu0 %v2189, 96
        %v2700 = vpop.permute.xlu0 %2699
        %2701 = vrot.lane.b32.xlu0 %v2190, 96
        %v2702 = vpop.permute.xlu0 %2701
        %2703 = vrot.lane.b32.xlu0 %v2191, 96
        %v2704 = vpop.permute.xlu0 %2703
        %2721 = vmatprep.subr.bf16.mxu0 0
        %2722 = vmatpush1.bf16.msra.mxu0 %v2674
        %2723 = vmatprep.subr.bf16.mxu0 0
        %2724 = vmatpush1.bf16.msra.mxu0 %v2676
        %2725 = vmatprep.subr.bf16.mxu0 0
        %2726 = vmatpush1.bf16.msra.mxu0 %v2678
        %2727 = vmatprep.subr.bf16.mxu0 0
        %2728 = vmatpush1.bf16.msra.mxu0 %v2680
        %2729 = vmatprep.subr.bf16.mxu0 0
        %2730 = vmatpush1.bf16.msra.mxu0 %v2682
        %2731 = vmatprep.subr.bf16.mxu0 0
        %2732 = vmatpush1.bf16.msra.mxu0 %v2684
        %2733 = vmatprep.subr.bf16.mxu0 0
        %2734 = vmatpush1.bf16.msra.mxu0 %v2686
        %2735 = vmatprep.subr.bf16.mxu0 0
        %2736 = vmatpush1.bf16.msra.mxu0 %v2688
        %2737 = vmatprep.subr.bf16.mxu0 0
        %2738 = vmatpush1.bf16.msra.mxu0 %v2690
        %2739 = vmatprep.subr.bf16.mxu0 0
        %2740 = vmatpush1.bf16.msra.mxu0 %v2692
        %2741 = vmatprep.subr.bf16.mxu0 0
        %2742 = vmatpush1.bf16.msra.mxu0 %v2694
        %2743 = vmatprep.subr.bf16.mxu0 0
        %2744 = vmatpush1.bf16.msra.mxu0 %v2696
        %2745 = vmatprep.subr.bf16.mxu0 0
        %2746 = vmatpush1.bf16.msra.mxu0 %v2698
        %2747 = vmatprep.subr.bf16.mxu0 0
        %2748 = vmatpush1.bf16.msra.mxu0 %v2700
        %2749 = vmatprep.subr.bf16.mxu0 0
        %2750 = vmatpush1.bf16.msra.mxu0 %v2702
        %2751 = vmatprep.subr.bf16.mxu0 0
        %2752 = vmatpush1.bf16.msra.mxu0 %v2704
        %2753 = vmatprep.mubr.bf16.mxu0 %v2642
        %2754 = vmatmul.mubr.bf16.gmra.mrb[0].mxu0 %v2641
        %v2755 = vpop.f32.mrb[0].mxu0
        %v2756 = vadd.f32 0.0, %v2755
        %v2757 = vpop.f32.mrb[0].mxu0
        %v2758 = vpop.f32.mrb[0].mxu0
        %v2759 = vadd.f32 0.0, %v2758
        %v2760 = vpop.f32.mrb[0].mxu0
        %2761 = vmatprep.mubr.bf16.mxu0 %v2644
        %2762 = vmatmul.mubr.bf16.gmra.mrb[0].mxu0 %v2643
        %v2763 = vpop.f32.mrb[0].mxu0
        %v2764 = vadd.f32 0.0, %v2763
        %v2765 = vpop.f32.mrb[0].mxu0
        %v2766 = vpop.f32.mrb[0].mxu0
        %v2767 = vadd.f32 0.0, %v2766
        %v2768 = vpop.f32.mrb[0].mxu0
        %2769 = vmatprep.mubr.bf16.mxu0 %v2646
        %2770 = vmatmul.mubr.bf16.gmra.mrb[0].mxu0 %v2645
        %v2771 = vpop.f32.mrb[0].mxu0
        %v2772 = vadd.f32 0.0, %v2771
        %v2773 = vpop.f32.mrb[0].mxu0
        %v2774 = vpop.f32.mrb[0].mxu0
        %v2775 = vadd.f32 0.0, %v2774
        %v2776 = vpop.f32.mrb[0].mxu0
        %2777 = vmatprep.mubr.bf16.mxu0 %v2648
        %2778 = vmatmul.mubr.bf16.gmra.mrb[0].mxu0 %v2647
        %v2779 = vpop.f32.mrb[0].mxu0
        %v2780 = vadd.f32 0.0, %v2779
        %v2781 = vpop.f32.mrb[0].mxu0
        %v2782 = vpop.f32.mrb[0].mxu0
        %v2783 = vadd.f32 0.0, %v2782
        %v2784 = vpop.f32.mrb[0].mxu0
        %2785 = vmatprep.mubr.bf16.mxu0 %v2650
        %2786 = vmatmul.mubr.bf16.gmra.mrb[0].mxu0 %v2649
        %v2787 = vpop.f32.mrb[0].mxu0
        %v2788 = vadd.f32 0.0, %v2787
        %v2789 = vpop.f32.mrb[0].mxu0
        %v2790 = vpop.f32.mrb[0].mxu0
        %v2791 = vadd.f32 0.0, %v2790
        %v2792 = vpop.f32.mrb[0].mxu0
        %2793 = vmatprep.mubr.bf16.mxu0 %v2652
        %2794 = vmatmul.mubr.bf16.gmra.mrb[0].mxu0 %v2651
        %v2795 = vpop.f32.mrb[0].mxu0
        %v2796 = vadd.f32 0.0, %v2795
        %v2797 = vpop.f32.mrb[0].mxu0
        %v2798 = vpop.f32.mrb[0].mxu0
        %v2799 = vadd.f32 0.0, %v2798
        %v2800 = vpop.f32.mrb[0].mxu0
        %2801 = vmatprep.mubr.bf16.mxu0 %v2654
        %2802 = vmatmul.mubr.bf16.gmra.mrb[0].mxu0 %v2653
        %v2803 = vpop.f32.mrb[0].mxu0
        %v2804 = vadd.f32 0.0, %v2803
        %v2805 = vpop.f32.mrb[0].mxu0
        %v2806 = vpop.f32.mrb[0].mxu0
        %v2807 = vadd.f32 0.0, %v2806
        %v2808 = vpop.f32.mrb[0].mxu0
        %2809 = vmatprep.mubr.bf16.mxu0 %v2656
        %2810 = vmatmul.mubr.bf16.gmra.mrb[0].mxu0 %v2655
        %v2811 = vpop.f32.mrb[0].mxu0
        %v2812 = vadd.f32 0.0, %v2811
        %v2813 = vpop.f32.mrb[0].mxu0
        %v2814 = vpop.f32.mrb[0].mxu0
        %v2815 = vadd.f32 0.0, %v2814
        %v2816 = vpop.f32.mrb[0].mxu0
        %2817 = vdwg.mxu0
        %v2818 = vrcp.pop %v2595
        %v2819 = vrcp.pop %v2598
        %v2820 = vrcp.pop %v2601
        %v2821 = vrcp.pop %v2604
        %v2822 = vrcp.pop %v2607
        %v2823 = vrcp.pop %v2610
        %v2824 = vrcp.pop %v2613
        %v2825 = vrcp.pop %v2616
        %v2826 = vrcp.pop %v2619
        %v2827 = vrcp.pop %v2622
        %v2828 = vrcp.pop %v2625
        %v2829 = vrcp.pop %v2628
        %v2830 = vrcp.pop %v2631
        %v2831 = vrcp.pop %v2634
        %v2832 = vrcp.pop %v2637
        %v2833 = vrcp.pop %v2640
        %v2834 = vmul.f32 %v2756, %v2818
        %v2835 = vmul.f32 %v2759, %v2819
        %v2836 = vmul.f32 %v2764, %v2820
        %v2837 = vmul.f32 %v2767, %v2821
        %v2838 = vmul.f32 %v2772, %v2822
        %v2839 = vmul.f32 %v2775, %v2823
        %v2840 = vmul.f32 %v2780, %v2824
        %v2841 = vmul.f32 %v2783, %v2825
        %v2842 = vmul.f32 %v2788, %v2826
        %v2843 = vmul.f32 %v2791, %v2827
        %v2844 = vmul.f32 %v2796, %v2828
        %v2845 = vmul.f32 %v2799, %v2829
        %v2846 = vmul.f32 %v2804, %v2830
        %v2847 = vmul.f32 %v2807, %v2831
        %v2848 = vmul.f32 %v2812, %v2832
        %v2849 = vmul.f32 %v2815, %v2833
        %v2850 = vpack.c.bf16 %v2835, %v2834
        %v2851 = vpack.c.bf16 %v2837, %v2836
        %v2852 = vpack.c.bf16 %v2839, %v2838
        %v2853 = vpack.c.bf16 %v2841, %v2840
        %v2854 = vpack.c.bf16 %v2843, %v2842
        %v2855 = vpack.c.bf16 %v2845, %v2844
        %v2856 = vpack.c.bf16 %v2847, %v2846
        %v2857 = vpack.c.bf16 %v2849, %v2848
        %2866 = vrot.lane.b32.xlu0 %v2850, 32
        %v2867 = vpop.permute.xlu0 %2866
        %2868 = vrot.lane.b32.xlu0 %v2851, 32
        %v2869 = vpop.permute.xlu0 %2868
        %2870 = vrot.lane.b32.xlu0 %v2852, 32
        %v2871 = vpop.permute.xlu0 %2870
        %2872 = vrot.lane.b32.xlu0 %v2853, 32
        %v2873 = vpop.permute.xlu0 %2872
        %2874 = vrot.lane.b32.xlu0 %v2854, 32
        %v2875 = vpop.permute.xlu0 %2874
        %2876 = vrot.lane.b32.xlu0 %v2855, 32
        %v2877 = vpop.permute.xlu0 %2876
        %2878 = vrot.lane.b32.xlu0 %v2856, 32
        %v2879 = vpop.permute.xlu0 %2878
        %2880 = vrot.lane.b32.xlu0 %v2857, 32
        %v2881 = vpop.permute.xlu0 %2880
        %vm2890 = vcmask 523520
        %2891 = vst.msk [vmem:[#allocation4] sm:$0xff] %vm2890, %v2867
        %2892 = vst.msk [vmem:[#allocation4 + $0x8] sm:$0xff] %vm2890, %v2869
        %2893 = vst.msk [vmem:[#allocation4 + $0x10] sm:$0xff] %vm2890, %v2871
        %2894 = vst.msk [vmem:[#allocation4 + $0x18] sm:$0xff] %vm2890, %v2873
        %2895 = vst.msk [vmem:[#allocation4 + $0x20] sm:$0xff] %vm2890, %v2875
        %2896 = vst.msk [vmem:[#allocation4 + $0x28] sm:$0xff] %vm2890, %v2877
        %2897 = vst.msk [vmem:[#allocation4 + $0x30] sm:$0xff] %vm2890, %v2879
        %2898 = vst.msk [vmem:[#allocation4 + $0x38] sm:$0xff] %vm2890, %v2881
        %v2899 = vld [vmem:[#allocation2] sm:$0xff]
        %v2900 = vld [vmem:[#allocation2 + $0x8] sm:$0xff]
        %v2901 = vld [vmem:[#allocation2 + $0x10] sm:$0xff]
        %v2902 = vld [vmem:[#allocation2 + $0x18] sm:$0xff]
        %v2903 = vld [vmem:[#allocation2 + $0x20] sm:$0xff]
        %v2904 = vld [vmem:[#allocation2 + $0x28] sm:$0xff]
        %v2905 = vld [vmem:[#allocation2 + $0x30] sm:$0xff]
        %v2906 = vld [vmem:[#allocation2 + $0x38] sm:$0xff]
        %v2907 = vld [vmem:[#allocation2 + $0x40] sm:$0xff]
        %v2908 = vld [vmem:[#allocation2 + $0x48] sm:$0xff]
        %v2909 = vld [vmem:[#allocation2 + $0x50] sm:$0xff]
        %v2910 = vld [vmem:[#allocation2 + $0x58] sm:$0xff]
        %v2911 = vld [vmem:[#allocation2 + $0x60] sm:$0xff]
        %v2912 = vld [vmem:[#allocation2 + $0x68] sm:$0xff]
        %v2913 = vld [vmem:[#allocation2 + $0x70] sm:$0xff]
        %v2914 = vld [vmem:[#allocation2 + $0x78] sm:$0xff]
        %v2915 = vld [vmem:[#allocation3] sm:$0xff]
        %v2916 = vld [vmem:[#allocation3 + $0x8] sm:$0xff]
        %v2917 = vld [vmem:[#allocation3 + $0x10] sm:$0xff]
        %v2918 = vld [vmem:[#allocation3 + $0x18] sm:$0xff]
        %v2919 = vld [vmem:[#allocation3 + $0x20] sm:$0xff]
        %v2920 = vld [vmem:[#allocation3 + $0x28] sm:$0xff]
        %v2921 = vld [vmem:[#allocation3 + $0x30] sm:$0xff]
        %v2922 = vld [vmem:[#allocation3 + $0x38] sm:$0xff]
        %v2923 = vld [vmem:[#allocation3 + $0x40] sm:$0xff]
        %v2924 = vld [vmem:[#allocation3 + $0x48] sm:$0xff]
        %v2925 = vld [vmem:[#allocation3 + $0x50] sm:$0xff]
        %v2926 = vld [vmem:[#allocation3 + $0x58] sm:$0xff]
        %v2927 = vld [vmem:[#allocation3 + $0x60] sm:$0xff]
        %v2928 = vld [vmem:[#allocation3 + $0x68] sm:$0xff]
        %v2929 = vld [vmem:[#allocation3 + $0x70] sm:$0xff]
        %v2930 = vld [vmem:[#allocation3 + $0x78] sm:$0xff]
        %2931 = vrot.lane.b32.xlu0 %v1581, 64
        %v2932 = vpop.permute.xlu0 %2931
        %2933 = vrot.lane.b32.xlu0 %v1582, 64
        %v2934 = vpop.permute.xlu0 %2933
        %2935 = vrot.lane.b32.xlu0 %v1583, 64
        %v2936 = vpop.permute.xlu0 %2935
        %2937 = vrot.lane.b32.xlu0 %v1584, 64
        %v2938 = vpop.permute.xlu0 %2937
        %2939 = vrot.lane.b32.xlu0 %v1585, 64
        %v2940 = vpop.permute.xlu0 %2939
        %2941 = vrot.lane.b32.xlu0 %v1586, 64
        %v2942 = vpop.permute.xlu0 %2941
        %2943 = vrot.lane.b32.xlu0 %v1587, 64
        %v2944 = vpop.permute.xlu0 %2943
        %2945 = vrot.lane.b32.xlu0 %v1588, 64
        %v2946 = vpop.permute.xlu0 %2945
        %2963 = vrot.lane.b32.xlu0 %v2899, 64
        %v2964 = vpop.permute.xlu0 %2963
        %2965 = vrot.lane.b32.xlu0 %v2900, 64
        %v2966 = vpop.permute.xlu0 %2965
        %2967 = vrot.lane.b32.xlu0 %v2901, 64
        %v2968 = vpop.permute.xlu0 %2967
        %2969 = vrot.lane.b32.xlu0 %v2902, 64
        %v2970 = vpop.permute.xlu0 %2969
        %2971 = vrot.lane.b32.xlu0 %v2903, 64
        %v2972 = vpop.permute.xlu0 %2971
        %2973 = vrot.lane.b32.xlu0 %v2904, 64
        %v2974 = vpop.permute.xlu0 %2973
        %2975 = vrot.lane.b32.xlu0 %v2905, 64
        %v2976 = vpop.permute.xlu0 %2975
        %2977 = vrot.lane.b32.xlu0 %v2906, 64
        %v2978 = vpop.permute.xlu0 %2977
        %2979 = vrot.lane.b32.xlu0 %v2907, 64
        %v2980 = vpop.permute.xlu0 %2979
        %2981 = vrot.lane.b32.xlu0 %v2908, 64
        %v2982 = vpop.permute.xlu0 %2981
        %2983 = vrot.lane.b32.xlu0 %v2909, 64
        %v2984 = vpop.permute.xlu0 %2983
        %2985 = vrot.lane.b32.xlu0 %v2910, 64
        %v2986 = vpop.permute.xlu0 %2985
        %2987 = vrot.lane.b32.xlu0 %v2911, 64
        %v2988 = vpop.permute.xlu0 %2987
        %2989 = vrot.lane.b32.xlu0 %v2912, 64
        %v2990 = vpop.permute.xlu0 %2989
        %2991 = vrot.lane.b32.xlu0 %v2913, 64
        %v2992 = vpop.permute.xlu0 %2991
        %2993 = vrot.lane.b32.xlu0 %v2914, 64
        %v2994 = vpop.permute.xlu0 %2993
        %v2996 = vsel %vm1621, %v2932, 0
        %v2999 = vsel %vm1621, %v2934, 0
        %v3002 = vsel %vm1621, %v2936, 0
        %v3005 = vsel %vm1621, %v2938, 0
        %v3008 = vsel %vm1621, %v2940, 0
        %v3011 = vsel %vm1621, %v2942, 0
        %v3014 = vsel %vm1621, %v2944, 0
        %v3017 = vsel %vm1621, %v2946, 0
        %v3020 = vsel %vm1621, %v2964, 0
        %v3023 = vsel %vm1621, %v2966, 0
        %v3026 = vsel %vm1621, %v2968, 0
        %v3029 = vsel %vm1621, %v2970, 0
        %v3032 = vsel %vm1621, %v2972, 0
        %v3035 = vsel %vm1621, %v2974, 0
        %v3038 = vsel %vm1621, %v2976, 0
        %v3041 = vsel %vm1621, %v2978, 0
        %v3044 = vsel %vm1621, %v2980, 0
        %v3047 = vsel %vm1621, %v2982, 0
        %v3050 = vsel %vm1621, %v2984, 0
        %v3053 = vsel %vm1621, %v2986, 0
        %v3056 = vsel %vm1621, %v2988, 0
        %v3059 = vsel %vm1621, %v2990, 0
        %v3062 = vsel %vm1621, %v2992, 0
        %v3065 = vsel %vm1621, %v2994, 0
        %3067 = vmatprep.subr.bf16.mxu0 0
        %3068 = vmatpush1.bf16.xpose.msra.mxu0 %v3020
        %3069 = vmatprep.subr.bf16.mxu0 0
        %3070 = vmatpush1.bf16.xpose.msra.mxu0 %v3023
        %3071 = vmatprep.subr.bf16.mxu0 0
        %3072 = vmatpush1.bf16.xpose.msra.mxu0 %v3026
        %3073 = vmatprep.subr.bf16.mxu0 0
        %3074 = vmatpush1.bf16.xpose.msra.mxu0 %v3029
        %3075 = vmatprep.subr.bf16.mxu0 0
        %3076 = vmatpush1.bf16.xpose.msra.mxu0 %v3032
        %3077 = vmatprep.subr.bf16.mxu0 0
        %3078 = vmatpush1.bf16.xpose.msra.mxu0 %v3035
        %3079 = vmatprep.subr.bf16.mxu0 0
        %3080 = vmatpush1.bf16.xpose.msra.mxu0 %v3038
        %3081 = vmatprep.subr.bf16.mxu0 0
        %3082 = vmatpush1.bf16.xpose.msra.mxu0 %v3041
        %3083 = vmatprep.subr.bf16.mxu0 0
        %3084 = vmatpush1.bf16.xpose.msra.mxu0 %v3044
        %3085 = vmatprep.subr.bf16.mxu0 0
        %3086 = vmatpush1.bf16.xpose.msra.mxu0 %v3047
        %3087 = vmatprep.subr.bf16.mxu0 0
        %3088 = vmatpush1.bf16.xpose.msra.mxu0 %v3050
        %3089 = vmatprep.subr.bf16.mxu0 0
        %3090 = vmatpush1.bf16.xpose.msra.mxu0 %v3053
        %3091 = vmatprep.subr.bf16.mxu0 0
        %3092 = vmatpush1.bf16.xpose.msra.mxu0 %v3056
        %3093 = vmatprep.subr.bf16.mxu0 0
        %3094 = vmatpush1.bf16.xpose.msra.mxu0 %v3059
        %3095 = vmatprep.subr.bf16.mxu0 0
        %3096 = vmatpush1.bf16.xpose.msra.mxu0 %v3062
        %3097 = vmatprep.subr.bf16.mxu0 0
        %3098 = vmatpush1.bf16.xpose.msra.mxu0 %v3065
        %3099 = vmatprep.mubr.bf16.mxu0 0
        %3100 = vmatmul.mubr.bf16.gmra.mrb[0].mxu0 %v2996
        %v3101 = vpop.f32.mrb[0].mxu0
        %v3102 = vadd.f32 0.0, %v3101
        %v3103 = vpop.f32.mrb[0].mxu0
        %v3104 = vadd.f32 0.0, %v3103
        %v3105 = vpop.f32.mrb[0].mxu0
        %v3106 = vadd.f32 0.0, %v3105
        %v3107 = vpop.f32.mrb[0].mxu0
        %v3108 = vadd.f32 0.0, %v3107
        %3109 = vmatprep.mubr.bf16.mxu0 0
        %3110 = vmatmul.mubr.bf16.gmra.mrb[0].mxu0 %v2999
        %v3111 = vpop.f32.mrb[0].mxu0
        %v3112 = vadd.f32 0.0, %v3111
        %v3113 = vpop.f32.mrb[0].mxu0
        %v3114 = vadd.f32 0.0, %v3113
        %v3115 = vpop.f32.mrb[0].mxu0
        %v3116 = vadd.f32 0.0, %v3115
        %v3117 = vpop.f32.mrb[0].mxu0
        %v3118 = vadd.f32 0.0, %v3117
        %3119 = vmatprep.mubr.bf16.mxu0 0
        %3120 = vmatmul.mubr.bf16.gmra.mrb[0].mxu0 %v3002
        %v3121 = vpop.f32.mrb[0].mxu0
        %v3122 = vadd.f32 0.0, %v3121
        %v3123 = vpop.f32.mrb[0].mxu0
        %v3124 = vadd.f32 0.0, %v3123
        %v3125 = vpop.f32.mrb[0].mxu0
        %v3126 = vadd.f32 0.0, %v3125
        %v3127 = vpop.f32.mrb[0].mxu0
        %v3128 = vadd.f32 0.0, %v3127
        %3129 = vmatprep.mubr.bf16.mxu0 0
        %3130 = vmatmul.mubr.bf16.gmra.mrb[0].mxu0 %v3005
        %v3131 = vpop.f32.mrb[0].mxu0
        %v3132 = vadd.f32 0.0, %v3131
        %v3133 = vpop.f32.mrb[0].mxu0
        %v3134 = vadd.f32 0.0, %v3133
        %v3135 = vpop.f32.mrb[0].mxu0
        %v3136 = vadd.f32 0.0, %v3135
        %v3137 = vpop.f32.mrb[0].mxu0
        %v3138 = vadd.f32 0.0, %v3137
        %3139 = vmatprep.mubr.bf16.mxu0 0
        %3140 = vmatmul.mubr.bf16.gmra.mrb[0].mxu0 %v3008
        %v3141 = vpop.f32.mrb[0].mxu0
        %v3142 = vadd.f32 0.0, %v3141
        %v3143 = vpop.f32.mrb[0].mxu0
        %v3144 = vadd.f32 0.0, %v3143
        %v3145 = vpop.f32.mrb[0].mxu0
        %v3146 = vadd.f32 0.0, %v3145
        %v3147 = vpop.f32.mrb[0].mxu0
        %v3148 = vadd.f32 0.0, %v3147
        %3149 = vmatprep.mubr.bf16.mxu0 0
        %3150 = vmatmul.mubr.bf16.gmra.mrb[0].mxu0 %v3011
        %v3151 = vpop.f32.mrb[0].mxu0
        %v3152 = vadd.f32 0.0, %v3151
        %v3153 = vpop.f32.mrb[0].mxu0
        %v3154 = vadd.f32 0.0, %v3153
        %v3155 = vpop.f32.mrb[0].mxu0
        %v3156 = vadd.f32 0.0, %v3155
        %v3157 = vpop.f32.mrb[0].mxu0
        %v3158 = vadd.f32 0.0, %v3157
        %3159 = vmatprep.mubr.bf16.mxu0 0
        %3160 = vmatmul.mubr.bf16.gmra.mrb[0].mxu0 %v3014
        %v3161 = vpop.f32.mrb[0].mxu0
        %v3162 = vadd.f32 0.0, %v3161
        %v3163 = vpop.f32.mrb[0].mxu0
        %v3164 = vadd.f32 0.0, %v3163
        %v3165 = vpop.f32.mrb[0].mxu0
        %v3166 = vadd.f32 0.0, %v3165
        %v3167 = vpop.f32.mrb[0].mxu0
        %v3168 = vadd.f32 0.0, %v3167
        %3169 = vmatprep.mubr.bf16.mxu0 0
        %3170 = vmatmul.mubr.bf16.gmra.mrb[0].mxu0 %v3017
        %v3171 = vpop.f32.mrb[0].mxu0
        %v3172 = vadd.f32 0.0, %v3171
        %v3173 = vpop.f32.mrb[0].mxu0
        %v3174 = vadd.f32 0.0, %v3173
        %v3175 = vpop.f32.mrb[0].mxu0
        %v3176 = vadd.f32 0.0, %v3175
        %v3177 = vpop.f32.mrb[0].mxu0
        %v3178 = vadd.f32 0.0, %v3177
        %3179 = vdwg.mxu0
        %v3180 = vmax.f32 %v3102, %v3104
        %3181 = vmax.xlane.f32.xlu0 %v3180
        %v3182 = vpop.xlane.xlu0 %3181
        %v3183 = vmax.f32 %v3106, %v3108
        %3184 = vmax.xlane.f32.xlu0 %v3183
        %v3185 = vpop.xlane.xlu0 %3184
        %v3186 = vmax.f32 %v3112, %v3114
        %3187 = vmax.xlane.f32.xlu0 %v3186
        %v3188 = vpop.xlane.xlu0 %3187
        %v3189 = vmax.f32 %v3116, %v3118
        %3190 = vmax.xlane.f32.xlu0 %v3189
        %v3191 = vpop.xlane.xlu0 %3190
        %v3192 = vmax.f32 %v3122, %v3124
        %3193 = vmax.xlane.f32.xlu0 %v3192
        %v3194 = vpop.xlane.xlu0 %3193
        %v3195 = vmax.f32 %v3126, %v3128
        %3196 = vmax.xlane.f32.xlu0 %v3195
        %v3197 = vpop.xlane.xlu0 %3196
        %v3198 = vmax.f32 %v3132, %v3134
        %3199 = vmax.xlane.f32.xlu0 %v3198
        %v3200 = vpop.xlane.xlu0 %3199
        %v3201 = vmax.f32 %v3136, %v3138
        %3202 = vmax.xlane.f32.xlu0 %v3201
        %v3203 = vpop.xlane.xlu0 %3202
        %v3204 = vmax.f32 %v3142, %v3144
        %3205 = vmax.xlane.f32.xlu0 %v3204
        %v3206 = vpop.xlane.xlu0 %3205
        %v3207 = vmax.f32 %v3146, %v3148
        %3208 = vmax.xlane.f32.xlu0 %v3207
        %v3209 = vpop.xlane.xlu0 %3208
        %v3210 = vmax.f32 %v3152, %v3154
        %3211 = vmax.xlane.f32.xlu0 %v3210
        %v3212 = vpop.xlane.xlu0 %3211
        %v3213 = vmax.f32 %v3156, %v3158
        %3214 = vmax.xlane.f32.xlu0 %v3213
        %v3215 = vpop.xlane.xlu0 %3214
        %v3216 = vmax.f32 %v3162, %v3164
        %3217 = vmax.xlane.f32.xlu0 %v3216
        %v3218 = vpop.xlane.xlu0 %3217
        %v3219 = vmax.f32 %v3166, %v3168
        %3220 = vmax.xlane.f32.xlu0 %v3219
        %v3221 = vpop.xlane.xlu0 %3220
        %v3222 = vmax.f32 %v3172, %v3174
        %3223 = vmax.xlane.f32.xlu0 %v3222
        %v3224 = vpop.xlane.xlu0 %3223
        %v3225 = vmax.f32 %v3176, %v3178
        %3226 = vmax.xlane.f32.xlu0 %v3225
        %v3227 = vpop.xlane.xlu0 %3226
        %v3228 = vsub.f32 %v3102, %v3182
        %v3229 = vsub.f32 %v3104, %v3182
        %v3230 = vsub.f32 %v3106, %v3185
        %v3231 = vsub.f32 %v3108, %v3185
        %v3232 = vsub.f32 %v3112, %v3188
        %v3233 = vsub.f32 %v3114, %v3188
        %v3234 = vsub.f32 %v3116, %v3191
        %v3235 = vsub.f32 %v3118, %v3191
        %v3236 = vsub.f32 %v3122, %v3194
        %v3237 = vsub.f32 %v3124, %v3194
        %v3238 = vsub.f32 %v3126, %v3197
        %v3239 = vsub.f32 %v3128, %v3197
        %v3240 = vsub.f32 %v3132, %v3200
        %v3241 = vsub.f32 %v3134, %v3200
        %v3242 = vsub.f32 %v3136, %v3203
        %v3243 = vsub.f32 %v3138, %v3203
        %v3244 = vsub.f32 %v3142, %v3206
        %v3245 = vsub.f32 %v3144, %v3206
        %v3246 = vsub.f32 %v3146, %v3209
        %v3247 = vsub.f32 %v3148, %v3209
        %v3248 = vsub.f32 %v3152, %v3212
        %v3249 = vsub.f32 %v3154, %v3212
        %v3250 = vsub.f32 %v3156, %v3215
        %v3251 = vsub.f32 %v3158, %v3215
        %v3252 = vsub.f32 %v3162, %v3218
        %v3253 = vsub.f32 %v3164, %v3218
        %v3254 = vsub.f32 %v3166, %v3221
        %v3255 = vsub.f32 %v3168, %v3221
        %v3256 = vsub.f32 %v3172, %v3224
        %v3257 = vsub.f32 %v3174, %v3224
        %v3258 = vsub.f32 %v3176, %v3227
        %v3259 = vsub.f32 %v3178, %v3227
        %v3260 = vmul.f32 %v3228, 1.442695
        %v3261 = vpow.pop %v3260
        %v3262 = vmul.f32 %v3229, 1.442695
        %v3263 = vpow.pop %v3262
        %v3264 = vmul.f32 %v3230, 1.442695
        %v3265 = vpow.pop %v3264
        %v3266 = vmul.f32 %v3231, 1.442695
        %v3267 = vpow.pop %v3266
        %v3268 = vmul.f32 %v3232, 1.442695
        %v3269 = vpow.pop %v3268
        %v3270 = vmul.f32 %v3233, 1.442695
        %v3271 = vpow.pop %v3270
        %v3272 = vmul.f32 %v3234, 1.442695
        %v3273 = vpow.pop %v3272
        %v3274 = vmul.f32 %v3235, 1.442695
        %v3275 = vpow.pop %v3274
        %v3276 = vmul.f32 %v3236, 1.442695
        %v3277 = vpow.pop %v3276
        %v3278 = vmul.f32 %v3237, 1.442695
        %v3279 = vpow.pop %v3278
        %v3280 = vmul.f32 %v3238, 1.442695
        %v3281 = vpow.pop %v3280
        %v3282 = vmul.f32 %v3239, 1.442695
        %v3283 = vpow.pop %v3282
        %v3284 = vmul.f32 %v3240, 1.442695
        %v3285 = vpow.pop %v3284
        %v3286 = vmul.f32 %v3241, 1.442695
        %v3287 = vpow.pop %v3286
        %v3288 = vmul.f32 %v3242, 1.442695
        %v3289 = vpow.pop %v3288
        %v3290 = vmul.f32 %v3243, 1.442695
        %v3291 = vpow.pop %v3290
        %v3292 = vmul.f32 %v3244, 1.442695
        %v3293 = vpow.pop %v3292
        %v3294 = vmul.f32 %v3245, 1.442695
        %v3295 = vpow.pop %v3294
        %v3296 = vmul.f32 %v3246, 1.442695
        %v3297 = vpow.pop %v3296
        %v3298 = vmul.f32 %v3247, 1.442695
        %v3299 = vpow.pop %v3298
        %v3300 = vmul.f32 %v3248, 1.442695
        %v3301 = vpow.pop %v3300
        %v3302 = vmul.f32 %v3249, 1.442695
        %v3303 = vpow.pop %v3302
        %v3304 = vmul.f32 %v3250, 1.442695
        %v3305 = vpow.pop %v3304
        %v3306 = vmul.f32 %v3251, 1.442695
        %v3307 = vpow.pop %v3306
        %v3308 = vmul.f32 %v3252, 1.442695
        %v3309 = vpow.pop %v3308
        %v3310 = vmul.f32 %v3253, 1.442695
        %v3311 = vpow.pop %v3310
        %v3312 = vmul.f32 %v3254, 1.442695
        %v3313 = vpow.pop %v3312
        %v3314 = vmul.f32 %v3255, 1.442695
        %v3315 = vpow.pop %v3314
        %v3316 = vmul.f32 %v3256, 1.442695
        %v3317 = vpow.pop %v3316
        %v3318 = vmul.f32 %v3257, 1.442695
        %v3319 = vpow.pop %v3318
        %v3320 = vmul.f32 %v3258, 1.442695
        %v3321 = vpow.pop %v3320
        %v3322 = vmul.f32 %v3259, 1.442695
        %v3323 = vpow.pop %v3322
        %v3324 = vadd.f32 %v3261, %v3263
        %3325 = vadd.xlane.f32.xlu0 %v3324
        %v3326 = vpop.xlane.xlu0 %3325
        %v3327 = vadd.f32 %v3265, %v3267
        %3328 = vadd.xlane.f32.xlu0 %v3327
        %v3329 = vpop.xlane.xlu0 %3328
        %v3330 = vadd.f32 %v3269, %v3271
        %3331 = vadd.xlane.f32.xlu0 %v3330
        %v3332 = vpop.xlane.xlu0 %3331
        %v3333 = vadd.f32 %v3273, %v3275
        %3334 = vadd.xlane.f32.xlu0 %v3333
        %v3335 = vpop.xlane.xlu0 %3334
        %v3336 = vadd.f32 %v3277, %v3279
        %3337 = vadd.xlane.f32.xlu0 %v3336
        %v3338 = vpop.xlane.xlu0 %3337
        %v3339 = vadd.f32 %v3281, %v3283
        %3340 = vadd.xlane.f32.xlu0 %v3339
        %v3341 = vpop.xlane.xlu0 %3340
        %v3342 = vadd.f32 %v3285, %v3287
        %3343 = vadd.xlane.f32.xlu0 %v3342
        %v3344 = vpop.xlane.xlu0 %3343
        %v3345 = vadd.f32 %v3289, %v3291
        %3346 = vadd.xlane.f32.xlu0 %v3345
        %v3347 = vpop.xlane.xlu0 %3346
        %v3348 = vadd.f32 %v3293, %v3295
        %3349 = vadd.xlane.f32.xlu0 %v3348
        %v3350 = vpop.xlane.xlu0 %3349
        %v3351 = vadd.f32 %v3297, %v3299
        %3352 = vadd.xlane.f32.xlu0 %v3351
        %v3353 = vpop.xlane.xlu0 %3352
        %v3354 = vadd.f32 %v3301, %v3303
        %3355 = vadd.xlane.f32.xlu0 %v3354
        %v3356 = vpop.xlane.xlu0 %3355
        %v3357 = vadd.f32 %v3305, %v3307
        %3358 = vadd.xlane.f32.xlu0 %v3357
        %v3359 = vpop.xlane.xlu0 %3358
        %v3360 = vadd.f32 %v3309, %v3311
        %3361 = vadd.xlane.f32.xlu0 %v3360
        %v3362 = vpop.xlane.xlu0 %3361
        %v3363 = vadd.f32 %v3313, %v3315
        %3364 = vadd.xlane.f32.xlu0 %v3363
        %v3365 = vpop.xlane.xlu0 %3364
        %v3366 = vadd.f32 %v3317, %v3319
        %3367 = vadd.xlane.f32.xlu0 %v3366
        %v3368 = vpop.xlane.xlu0 %3367
        %v3369 = vadd.f32 %v3321, %v3323
        %3370 = vadd.xlane.f32.xlu0 %v3369
        %v3371 = vpop.xlane.xlu0 %3370
        %v3372 = vpack.c.bf16 %v3265, %v3261
        %v3373 = vpack.c.bf16 %v3267, %v3263
        %v3374 = vpack.c.bf16 %v3273, %v3269
        %v3375 = vpack.c.bf16 %v3275, %v3271
        %v3376 = vpack.c.bf16 %v3281, %v3277
        %v3377 = vpack.c.bf16 %v3283, %v3279
        %v3378 = vpack.c.bf16 %v3289, %v3285
        %v3379 = vpack.c.bf16 %v3291, %v3287
        %v3380 = vpack.c.bf16 %v3297, %v3293
        %v3381 = vpack.c.bf16 %v3299, %v3295
        %v3382 = vpack.c.bf16 %v3305, %v3301
        %v3383 = vpack.c.bf16 %v3307, %v3303
        %v3384 = vpack.c.bf16 %v3313, %v3309
        %v3385 = vpack.c.bf16 %v3315, %v3311
        %v3386 = vpack.c.bf16 %v3321, %v3317
        %v3387 = vpack.c.bf16 %v3323, %v3319
        %3404 = vrot.lane.b32.xlu0 %v2915, 64
        %v3405 = vpop.permute.xlu0 %3404
        %3406 = vrot.lane.b32.xlu0 %v2916, 64
        %v3407 = vpop.permute.xlu0 %3406
        %3408 = vrot.lane.b32.xlu0 %v2917, 64
        %v3409 = vpop.permute.xlu0 %3408
        %3410 = vrot.lane.b32.xlu0 %v2918, 64
        %v3411 = vpop.permute.xlu0 %3410
        %3412 = vrot.lane.b32.xlu0 %v2919, 64
        %v3413 = vpop.permute.xlu0 %3412
        %3414 = vrot.lane.b32.xlu0 %v2920, 64
        %v3415 = vpop.permute.xlu0 %3414
        %3416 = vrot.lane.b32.xlu0 %v2921, 64
        %v3417 = vpop.permute.xlu0 %3416
        %3418 = vrot.lane.b32.xlu0 %v2922, 64
        %v3419 = vpop.permute.xlu0 %3418
        %3420 = vrot.lane.b32.xlu0 %v2923, 64
        %v3421 = vpop.permute.xlu0 %3420
        %3422 = vrot.lane.b32.xlu0 %v2924, 64
        %v3423 = vpop.permute.xlu0 %3422
        %3424 = vrot.lane.b32.xlu0 %v2925, 64
        %v3425 = vpop.permute.xlu0 %3424
        %3426 = vrot.lane.b32.xlu0 %v2926, 64
        %v3427 = vpop.permute.xlu0 %3426
        %3428 = vrot.lane.b32.xlu0 %v2927, 64
        %v3429 = vpop.permute.xlu0 %3428
        %3430 = vrot.lane.b32.xlu0 %v2928, 64
        %v3431 = vpop.permute.xlu0 %3430
        %3432 = vrot.lane.b32.xlu0 %v2929, 64
        %v3433 = vpop.permute.xlu0 %3432
        %3434 = vrot.lane.b32.xlu0 %v2930, 64
        %v3435 = vpop.permute.xlu0 %3434
        %3452 = vmatprep.subr.bf16.mxu0 0
        %3453 = vmatpush1.bf16.msra.mxu0 %v3405
        %3454 = vmatprep.subr.bf16.mxu0 0
        %3455 = vmatpush1.bf16.msra.mxu0 %v3407
        %3456 = vmatprep.subr.bf16.mxu0 0
        %3457 = vmatpush1.bf16.msra.mxu0 %v3409
        %3458 = vmatprep.subr.bf16.mxu0 0
        %3459 = vmatpush1.bf16.msra.mxu0 %v3411
        %3460 = vmatprep.subr.bf16.mxu0 0
        %3461 = vmatpush1.bf16.msra.mxu0 %v3413
        %3462 = vmatprep.subr.bf16.mxu0 0
        %3463 = vmatpush1.bf16.msra.mxu0 %v3415
        %3464 = vmatprep.subr.bf16.mxu0 0
        %3465 = vmatpush1.bf16.msra.mxu0 %v3417
        %3466 = vmatprep.subr.bf16.mxu0 0
        %3467 = vmatpush1.bf16.msra.mxu0 %v3419
        %3468 = vmatprep.subr.bf16.mxu0 0
        %3469 = vmatpush1.bf16.msra.mxu0 %v3421
        %3470 = vmatprep.subr.bf16.mxu0 0
        %3471 = vmatpush1.bf16.msra.mxu0 %v3423
        %3472 = vmatprep.subr.bf16.mxu0 0
        %3473 = vmatpush1.bf16.msra.mxu0 %v3425
        %3474 = vmatprep.subr.bf16.mxu0 0
        %3475 = vmatpush1.bf16.msra.mxu0 %v3427
        %3476 = vmatprep.subr.bf16.mxu0 0
        %3477 = vmatpush1.bf16.msra.mxu0 %v3429
        %3478 = vmatprep.subr.bf16.mxu0 0
        %3479 = vmatpush1.bf16.msra.mxu0 %v3431
        %3480 = vmatprep.subr.bf16.mxu0 0
        %3481 = vmatpush1.bf16.msra.mxu0 %v3433
        %3482 = vmatprep.subr.bf16.mxu0 0
        %3483 = vmatpush1.bf16.msra.mxu0 %v3435
        %3484 = vmatprep.mubr.bf16.mxu0 %v3373
        %3485 = vmatmul.mubr.bf16.gmra.mrb[0].mxu0 %v3372
        %v3486 = vpop.f32.mrb[0].mxu0
        %v3487 = vadd.f32 0.0, %v3486
        %v3488 = vpop.f32.mrb[0].mxu0
        %v3489 = vpop.f32.mrb[0].mxu0
        %v3490 = vadd.f32 0.0, %v3489
        %v3491 = vpop.f32.mrb[0].mxu0
        %3492 = vmatprep.mubr.bf16.mxu0 %v3375
        %3493 = vmatmul.mubr.bf16.gmra.mrb[0].mxu0 %v3374
        %v3494 = vpop.f32.mrb[0].mxu0
        %v3495 = vadd.f32 0.0, %v3494
        %v3496 = vpop.f32.mrb[0].mxu0
        %v3497 = vpop.f32.mrb[0].mxu0
        %v3498 = vadd.f32 0.0, %v3497
        %v3499 = vpop.f32.mrb[0].mxu0
        %3500 = vmatprep.mubr.bf16.mxu0 %v3377
        %3501 = vmatmul.mubr.bf16.gmra.mrb[0].mxu0 %v3376
        %v3502 = vpop.f32.mrb[0].mxu0
        %v3503 = vadd.f32 0.0, %v3502
        %v3504 = vpop.f32.mrb[0].mxu0
        %v3505 = vpop.f32.mrb[0].mxu0
        %v3506 = vadd.f32 0.0, %v3505
        %v3507 = vpop.f32.mrb[0].mxu0
        %3508 = vmatprep.mubr.bf16.mxu0 %v3379
        %3509 = vmatmul.mubr.bf16.gmra.mrb[0].mxu0 %v3378
        %v3510 = vpop.f32.mrb[0].mxu0
        %v3511 = vadd.f32 0.0, %v3510
        %v3512 = vpop.f32.mrb[0].mxu0
        %v3513 = vpop.f32.mrb[0].mxu0
        %v3514 = vadd.f32 0.0, %v3513
        %v3515 = vpop.f32.mrb[0].mxu0
        %3516 = vmatprep.mubr.bf16.mxu0 %v3381
        %3517 = vmatmul.mubr.bf16.gmra.mrb[0].mxu0 %v3380
        %v3518 = vpop.f32.mrb[0].mxu0
        %v3519 = vadd.f32 0.0, %v3518
        %v3520 = vpop.f32.mrb[0].mxu0
        %v3521 = vpop.f32.mrb[0].mxu0
        %v3522 = vadd.f32 0.0, %v3521
        %v3523 = vpop.f32.mrb[0].mxu0
        %3524 = vmatprep.mubr.bf16.mxu0 %v3383
        %3525 = vmatmul.mubr.bf16.gmra.mrb[0].mxu0 %v3382
        %v3526 = vpop.f32.mrb[0].mxu0
        %v3527 = vadd.f32 0.0, %v3526
        %v3528 = vpop.f32.mrb[0].mxu0
        %v3529 = vpop.f32.mrb[0].mxu0
        %v3530 = vadd.f32 0.0, %v3529
        %v3531 = vpop.f32.mrb[0].mxu0
        %3532 = vmatprep.mubr.bf16.mxu0 %v3385
        %3533 = vmatmul.mubr.bf16.gmra.mrb[0].mxu0 %v3384
        %v3534 = vpop.f32.mrb[0].mxu0
        %v3535 = vadd.f32 0.0, %v3534
        %v3536 = vpop.f32.mrb[0].mxu0
        %v3537 = vpop.f32.mrb[0].mxu0
        %v3538 = vadd.f32 0.0, %v3537
        %v3539 = vpop.f32.mrb[0].mxu0
        %3540 = vmatprep.mubr.bf16.mxu0 %v3387
        %3541 = vmatmul.mubr.bf16.gmra.mrb[0].mxu0 %v3386
        %v3542 = vpop.f32.mrb[0].mxu0
        %v3543 = vadd.f32 0.0, %v3542
        %v3544 = vpop.f32.mrb[0].mxu0
        %v3545 = vpop.f32.mrb[0].mxu0
        %v3546 = vadd.f32 0.0, %v3545
        %v3547 = vpop.f32.mrb[0].mxu0
        %3548 = vdwg.mxu0
        %v3549 = vrcp.pop %v3326
        %v3550 = vrcp.pop %v3329
        %v3551 = vrcp.pop %v3332
        %v3552 = vrcp.pop %v3335
        %v3553 = vrcp.pop %v3338
        %v3554 = vrcp.pop %v3341
        %v3555 = vrcp.pop %v3344
        %v3556 = vrcp.pop %v3347
        %v3557 = vrcp.pop %v3350
        %v3558 = vrcp.pop %v3353
        %v3559 = vrcp.pop %v3356
        %v3560 = vrcp.pop %v3359
        %v3561 = vrcp.pop %v3362
        %v3562 = vrcp.pop %v3365
        %v3563 = vrcp.pop %v3368
        %v3564 = vrcp.pop %v3371
        %v3565 = vmul.f32 %v3487, %v3549
        %v3566 = vmul.f32 %v3490, %v3550
        %v3567 = vmul.f32 %v3495, %v3551
        %v3568 = vmul.f32 %v3498, %v3552
        %v3569 = vmul.f32 %v3503, %v3553
        %v3570 = vmul.f32 %v3506, %v3554
        %v3571 = vmul.f32 %v3511, %v3555
        %v3572 = vmul.f32 %v3514, %v3556
        %v3573 = vmul.f32 %v3519, %v3557
        %v3574 = vmul.f32 %v3522, %v3558
        %v3575 = vmul.f32 %v3527, %v3559
        %v3576 = vmul.f32 %v3530, %v3560
        %v3577 = vmul.f32 %v3535, %v3561
        %v3578 = vmul.f32 %v3538, %v3562
        %v3579 = vmul.f32 %v3543, %v3563
        %v3580 = vmul.f32 %v3546, %v3564
        %v3581 = vpack.c.bf16 %v3566, %v3565
        %v3582 = vpack.c.bf16 %v3568, %v3567
        %v3583 = vpack.c.bf16 %v3570, %v3569
        %v3584 = vpack.c.bf16 %v3572, %v3571
        %v3585 = vpack.c.bf16 %v3574, %v3573
        %v3586 = vpack.c.bf16 %v3576, %v3575
        %v3587 = vpack.c.bf16 %v3578, %v3577
        %v3588 = vpack.c.bf16 %v3580, %v3579
        %3597 = vrot.lane.b32.xlu0 %v3581, 64
        %v3598 = vpop.permute.xlu0 %3597
        %3599 = vrot.lane.b32.xlu0 %v3582, 64
        %v3600 = vpop.permute.xlu0 %3599
        %3601 = vrot.lane.b32.xlu0 %v3583, 64
        %v3602 = vpop.permute.xlu0 %3601
        %3603 = vrot.lane.b32.xlu0 %v3584, 64
        %v3604 = vpop.permute.xlu0 %3603
        %3605 = vrot.lane.b32.xlu0 %v3585, 64
        %v3606 = vpop.permute.xlu0 %3605
        %3607 = vrot.lane.b32.xlu0 %v3586, 64
        %v3608 = vpop.permute.xlu0 %3607
        %3609 = vrot.lane.b32.xlu0 %v3587, 64
        %v3610 = vpop.permute.xlu0 %3609
        %3611 = vrot.lane.b32.xlu0 %v3588, 64
        %v3612 = vpop.permute.xlu0 %3611
        %vm3621 = vcmask 785920
        %3622 = vst.msk [vmem:[#allocation4] sm:$0xff] %vm3621, %v3598
        %3623 = vst.msk [vmem:[#allocation4 + $0x8] sm:$0xff] %vm3621, %v3600
        %3624 = vst.msk [vmem:[#allocation4 + $0x10] sm:$0xff] %vm3621, %v3602
        %3625 = vst.msk [vmem:[#allocation4 + $0x18] sm:$0xff] %vm3621, %v3604
        %3626 = vst.msk [vmem:[#allocation4 + $0x20] sm:$0xff] %vm3621, %v3606
        %3627 = vst.msk [vmem:[#allocation4 + $0x28] sm:$0xff] %vm3621, %v3608
        %3628 = vst.msk [vmem:[#allocation4 + $0x30] sm:$0xff] %vm3621, %v3610
        %3629 = vst.msk [vmem:[#allocation4 + $0x38] sm:$0xff] %vm3621, %v3612
        %v3630 = vld [vmem:[#allocation2] sm:$0xff]
        %v3631 = vld [vmem:[#allocation2 + $0x8] sm:$0xff]
        %v3632 = vld [vmem:[#allocation2 + $0x10] sm:$0xff]
        %v3633 = vld [vmem:[#allocation2 + $0x18] sm:$0xff]
        %v3634 = vld [vmem:[#allocation2 + $0x20] sm:$0xff]
        %v3635 = vld [vmem:[#allocation2 + $0x28] sm:$0xff]
        %v3636 = vld [vmem:[#allocation2 + $0x30] sm:$0xff]
        %v3637 = vld [vmem:[#allocation2 + $0x38] sm:$0xff]
        %v3638 = vld [vmem:[#allocation2 + $0x40] sm:$0xff]
        %v3639 = vld [vmem:[#allocation2 + $0x48] sm:$0xff]
        %v3640 = vld [vmem:[#allocation2 + $0x50] sm:$0xff]
        %v3641 = vld [vmem:[#allocation2 + $0x58] sm:$0xff]
        %v3642 = vld [vmem:[#allocation2 + $0x60] sm:$0xff]
        %v3643 = vld [vmem:[#allocation2 + $0x68] sm:$0xff]
        %v3644 = vld [vmem:[#allocation2 + $0x70] sm:$0xff]
        %v3645 = vld [vmem:[#allocation2 + $0x78] sm:$0xff]
        %v3646 = vld [vmem:[#allocation3] sm:$0xff]
        %v3647 = vld [vmem:[#allocation3 + $0x8] sm:$0xff]
        %v3648 = vld [vmem:[#allocation3 + $0x10] sm:$0xff]
        %v3649 = vld [vmem:[#allocation3 + $0x18] sm:$0xff]
        %v3650 = vld [vmem:[#allocation3 + $0x20] sm:$0xff]
        %v3651 = vld [vmem:[#allocation3 + $0x28] sm:$0xff]
        %v3652 = vld [vmem:[#allocation3 + $0x30] sm:$0xff]
        %v3653 = vld [vmem:[#allocation3 + $0x38] sm:$0xff]
        %v3654 = vld [vmem:[#allocation3 + $0x40] sm:$0xff]
        %v3655 = vld [vmem:[#allocation3 + $0x48] sm:$0xff]
        %v3656 = vld [vmem:[#allocation3 + $0x50] sm:$0xff]
        %v3657 = vld [vmem:[#allocation3 + $0x58] sm:$0xff]
        %v3658 = vld [vmem:[#allocation3 + $0x60] sm:$0xff]
        %v3659 = vld [vmem:[#allocation3 + $0x68] sm:$0xff]
        %v3660 = vld [vmem:[#allocation3 + $0x70] sm:$0xff]
        %v3661 = vld [vmem:[#allocation3 + $0x78] sm:$0xff]
        %3662 = vrot.lane.b32.xlu0 %v1581, 32
        %v3663 = vpop.permute.xlu0 %3662
        %3664 = vrot.lane.b32.xlu0 %v1582, 32
        %v3665 = vpop.permute.xlu0 %3664
        %3666 = vrot.lane.b32.xlu0 %v1583, 32
        %v3667 = vpop.permute.xlu0 %3666
        %3668 = vrot.lane.b32.xlu0 %v1584, 32
        %v3669 = vpop.permute.xlu0 %3668
        %3670 = vrot.lane.b32.xlu0 %v1585, 32
        %v3671 = vpop.permute.xlu0 %3670
        %3672 = vrot.lane.b32.xlu0 %v1586, 32
        %v3673 = vpop.permute.xlu0 %3672
        %3674 = vrot.lane.b32.xlu0 %v1587, 32
        %v3675 = vpop.permute.xlu0 %3674
        %3676 = vrot.lane.b32.xlu0 %v1588, 32
        %v3677 = vpop.permute.xlu0 %3676
        %3694 = vrot.lane.b32.xlu0 %v3630, 32
        %v3695 = vpop.permute.xlu0 %3694
        %3696 = vrot.lane.b32.xlu0 %v3631, 32
        %v3697 = vpop.permute.xlu0 %3696
        %3698 = vrot.lane.b32.xlu0 %v3632, 32
        %v3699 = vpop.permute.xlu0 %3698
        %3700 = vrot.lane.b32.xlu0 %v3633, 32
        %v3701 = vpop.permute.xlu0 %3700
        %3702 = vrot.lane.b32.xlu0 %v3634, 32
        %v3703 = vpop.permute.xlu0 %3702
        %3704 = vrot.lane.b32.xlu0 %v3635, 32
        %v3705 = vpop.permute.xlu0 %3704
        %3706 = vrot.lane.b32.xlu0 %v3636, 32
        %v3707 = vpop.permute.xlu0 %3706
        %3708 = vrot.lane.b32.xlu0 %v3637, 32
        %v3709 = vpop.permute.xlu0 %3708
        %3710 = vrot.lane.b32.xlu0 %v3638, 32
        %v3711 = vpop.permute.xlu0 %3710
        %3712 = vrot.lane.b32.xlu0 %v3639, 32
        %v3713 = vpop.permute.xlu0 %3712
        %3714 = vrot.lane.b32.xlu0 %v3640, 32
        %v3715 = vpop.permute.xlu0 %3714
        %3716 = vrot.lane.b32.xlu0 %v3641, 32
        %v3717 = vpop.permute.xlu0 %3716
        %3718 = vrot.lane.b32.xlu0 %v3642, 32
        %v3719 = vpop.permute.xlu0 %3718
        %3720 = vrot.lane.b32.xlu0 %v3643, 32
        %v3721 = vpop.permute.xlu0 %3720
        %3722 = vrot.lane.b32.xlu0 %v3644, 32
        %v3723 = vpop.permute.xlu0 %3722
        %3724 = vrot.lane.b32.xlu0 %v3645, 32
        %v3725 = vpop.permute.xlu0 %3724
        %v3727 = vsel %vm1621, %v3663, 0
        %v3730 = vsel %vm1621, %v3665, 0
        %v3733 = vsel %vm1621, %v3667, 0
        %v3736 = vsel %vm1621, %v3669, 0
        %v3739 = vsel %vm1621, %v3671, 0
        %v3742 = vsel %vm1621, %v3673, 0
        %v3745 = vsel %vm1621, %v3675, 0
        %v3748 = vsel %vm1621, %v3677, 0
        %v3751 = vsel %vm1621, %v3695, 0
        %v3754 = vsel %vm1621, %v3697, 0
        %v3757 = vsel %vm1621, %v3699, 0
        %v3760 = vsel %vm1621, %v3701, 0
        %v3763 = vsel %vm1621, %v3703, 0
        %v3766 = vsel %vm1621, %v3705, 0
        %v3769 = vsel %vm1621, %v3707, 0
        %v3772 = vsel %vm1621, %v3709, 0
        %v3775 = vsel %vm1621, %v3711, 0
        %v3778 = vsel %vm1621, %v3713, 0
        %v3781 = vsel %vm1621, %v3715, 0
        %v3784 = vsel %vm1621, %v3717, 0
        %v3787 = vsel %vm1621, %v3719, 0
        %v3790 = vsel %vm1621, %v3721, 0
        %v3793 = vsel %vm1621, %v3723, 0
        %v3796 = vsel %vm1621, %v3725, 0
        %3798 = vmatprep.subr.bf16.mxu0 0
        %3799 = vmatpush1.bf16.xpose.msra.mxu0 %v3751
        %3800 = vmatprep.subr.bf16.mxu0 0
        %3801 = vmatpush1.bf16.xpose.msra.mxu0 %v3754
        %3802 = vmatprep.subr.bf16.mxu0 0
        %3803 = vmatpush1.bf16.xpose.msra.mxu0 %v3757
        %3804 = vmatprep.subr.bf16.mxu0 0
        %3805 = vmatpush1.bf16.xpose.msra.mxu0 %v3760
        %3806 = vmatprep.subr.bf16.mxu0 0
        %3807 = vmatpush1.bf16.xpose.msra.mxu0 %v3763
        %3808 = vmatprep.subr.bf16.mxu0 0
        %3809 = vmatpush1.bf16.xpose.msra.mxu0 %v3766
        %3810 = vmatprep.subr.bf16.mxu0 0
        %3811 = vmatpush1.bf16.xpose.msra.mxu0 %v3769
        %3812 = vmatprep.subr.bf16.mxu0 0
        %3813 = vmatpush1.bf16.xpose.msra.mxu0 %v3772
        %3814 = vmatprep.subr.bf16.mxu0 0
        %3815 = vmatpush1.bf16.xpose.msra.mxu0 %v3775
        %3816 = vmatprep.subr.bf16.mxu0 0
        %3817 = vmatpush1.bf16.xpose.msra.mxu0 %v3778
        %3818 = vmatprep.subr.bf16.mxu0 0
        %3819 = vmatpush1.bf16.xpose.msra.mxu0 %v3781
        %3820 = vmatprep.subr.bf16.mxu0 0
        %3821 = vmatpush1.bf16.xpose.msra.mxu0 %v3784
        %3822 = vmatprep.subr.bf16.mxu0 0
        %3823 = vmatpush1.bf16.xpose.msra.mxu0 %v3787
        %3824 = vmatprep.subr.bf16.mxu0 0
        %3825 = vmatpush1.bf16.xpose.msra.mxu0 %v3790
        %3826 = vmatprep.subr.bf16.mxu0 0
        %3827 = vmatpush1.bf16.xpose.msra.mxu0 %v3793
        %3828 = vmatprep.subr.bf16.mxu0 0
        %3829 = vmatpush1.bf16.xpose.msra.mxu0 %v3796
        %3830 = vmatprep.mubr.bf16.mxu0 0
        %3831 = vmatmul.mubr.bf16.gmra.mrb[0].mxu0 %v3727
        %v3832 = vpop.f32.mrb[0].mxu0
        %v3833 = vadd.f32 0.0, %v3832
        %v3834 = vpop.f32.mrb[0].mxu0
        %v3835 = vadd.f32 0.0, %v3834
        %v3836 = vpop.f32.mrb[0].mxu0
        %v3837 = vadd.f32 0.0, %v3836
        %v3838 = vpop.f32.mrb[0].mxu0
        %v3839 = vadd.f32 0.0, %v3838
        %3840 = vmatprep.mubr.bf16.mxu0 0
        %3841 = vmatmul.mubr.bf16.gmra.mrb[0].mxu0 %v3730
        %v3842 = vpop.f32.mrb[0].mxu0
        %v3843 = vadd.f32 0.0, %v3842
        %v3844 = vpop.f32.mrb[0].mxu0
        %v3845 = vadd.f32 0.0, %v3844
        %v3846 = vpop.f32.mrb[0].mxu0
        %v3847 = vadd.f32 0.0, %v3846
        %v3848 = vpop.f32.mrb[0].mxu0
        %v3849 = vadd.f32 0.0, %v3848
        %3850 = vmatprep.mubr.bf16.mxu0 0
        %3851 = vmatmul.mubr.bf16.gmra.mrb[0].mxu0 %v3733
        %v3852 = vpop.f32.mrb[0].mxu0
        %v3853 = vadd.f32 0.0, %v3852
        %v3854 = vpop.f32.mrb[0].mxu0
        %v3855 = vadd.f32 0.0, %v3854
        %v3856 = vpop.f32.mrb[0].mxu0
        %v3857 = vadd.f32 0.0, %v3856
        %v3858 = vpop.f32.mrb[0].mxu0
        %v3859 = vadd.f32 0.0, %v3858
        %3860 = vmatprep.mubr.bf16.mxu0 0
        %3861 = vmatmul.mubr.bf16.gmra.mrb[0].mxu0 %v3736
        %v3862 = vpop.f32.mrb[0].mxu0
        %v3863 = vadd.f32 0.0, %v3862
        %v3864 = vpop.f32.mrb[0].mxu0
        %v3865 = vadd.f32 0.0, %v3864
        %v3866 = vpop.f32.mrb[0].mxu0
        %v3867 = vadd.f32 0.0, %v3866
        %v3868 = vpop.f32.mrb[0].mxu0
        %v3869 = vadd.f32 0.0, %v3868
        %3870 = vmatprep.mubr.bf16.mxu0 0
        %3871 = vmatmul.mubr.bf16.gmra.mrb[0].mxu0 %v3739
        %v3872 = vpop.f32.mrb[0].mxu0
        %v3873 = vadd.f32 0.0, %v3872
        %v3874 = vpop.f32.mrb[0].mxu0
        %v3875 = vadd.f32 0.0, %v3874
        %v3876 = vpop.f32.mrb[0].mxu0
        %v3877 = vadd.f32 0.0, %v3876
        %v3878 = vpop.f32.mrb[0].mxu0
        %v3879 = vadd.f32 0.0, %v3878
        %3880 = vmatprep.mubr.bf16.mxu0 0
        %3881 = vmatmul.mubr.bf16.gmra.mrb[0].mxu0 %v3742
        %v3882 = vpop.f32.mrb[0].mxu0
        %v3883 = vadd.f32 0.0, %v3882
        %v3884 = vpop.f32.mrb[0].mxu0
        %v3885 = vadd.f32 0.0, %v3884
        %v3886 = vpop.f32.mrb[0].mxu0
        %v3887 = vadd.f32 0.0, %v3886
        %v3888 = vpop.f32.mrb[0].mxu0
        %v3889 = vadd.f32 0.0, %v3888
        %3890 = vmatprep.mubr.bf16.mxu0 0
        %3891 = vmatmul.mubr.bf16.gmra.mrb[0].mxu0 %v3745
        %v3892 = vpop.f32.mrb[0].mxu0
        %v3893 = vadd.f32 0.0, %v3892
        %v3894 = vpop.f32.mrb[0].mxu0
        %v3895 = vadd.f32 0.0, %v3894
        %v3896 = vpop.f32.mrb[0].mxu0
        %v3897 = vadd.f32 0.0, %v3896
        %v3898 = vpop.f32.mrb[0].mxu0
        %v3899 = vadd.f32 0.0, %v3898
        %3900 = vmatprep.mubr.bf16.mxu0 0
        %3901 = vmatmul.mubr.bf16.gmra.mrb[0].mxu0 %v3748
        %v3902 = vpop.f32.mrb[0].mxu0
        %v3903 = vadd.f32 0.0, %v3902
        %v3904 = vpop.f32.mrb[0].mxu0
        %v3905 = vadd.f32 0.0, %v3904
        %v3906 = vpop.f32.mrb[0].mxu0
        %v3907 = vadd.f32 0.0, %v3906
        %v3908 = vpop.f32.mrb[0].mxu0
        %v3909 = vadd.f32 0.0, %v3908
        %3910 = vdwg.mxu0
        %v3911 = vmax.f32 %v3833, %v3835
        %3912 = vmax.xlane.f32.xlu0 %v3911
        %v3913 = vpop.xlane.xlu0 %3912
        %v3914 = vmax.f32 %v3837, %v3839
        %3915 = vmax.xlane.f32.xlu0 %v3914
        %v3916 = vpop.xlane.xlu0 %3915
        %v3917 = vmax.f32 %v3843, %v3845
        %3918 = vmax.xlane.f32.xlu0 %v3917
        %v3919 = vpop.xlane.xlu0 %3918
        %v3920 = vmax.f32 %v3847, %v3849
        %3921 = vmax.xlane.f32.xlu0 %v3920
        %v3922 = vpop.xlane.xlu0 %3921
        %v3923 = vmax.f32 %v3853, %v3855
        %3924 = vmax.xlane.f32.xlu0 %v3923
        %v3925 = vpop.xlane.xlu0 %3924
        %v3926 = vmax.f32 %v3857, %v3859
        %3927 = vmax.xlane.f32.xlu0 %v3926
        %v3928 = vpop.xlane.xlu0 %3927
        %v3929 = vmax.f32 %v3863, %v3865
        %3930 = vmax.xlane.f32.xlu0 %v3929
        %v3931 = vpop.xlane.xlu0 %3930
        %v3932 = vmax.f32 %v3867, %v3869
        %3933 = vmax.xlane.f32.xlu0 %v3932
        %v3934 = vpop.xlane.xlu0 %3933
        %v3935 = vmax.f32 %v3873, %v3875
        %3936 = vmax.xlane.f32.xlu0 %v3935
        %v3937 = vpop.xlane.xlu0 %3936
        %v3938 = vmax.f32 %v3877, %v3879
        %3939 = vmax.xlane.f32.xlu0 %v3938
        %v3940 = vpop.xlane.xlu0 %3939
        %v3941 = vmax.f32 %v3883, %v3885
        %3942 = vmax.xlane.f32.xlu0 %v3941
        %v3943 = vpop.xlane.xlu0 %3942
        %v3944 = vmax.f32 %v3887, %v3889
        %3945 = vmax.xlane.f32.xlu0 %v3944
        %v3946 = vpop.xlane.xlu0 %3945
        %v3947 = vmax.f32 %v3893, %v3895
        %3948 = vmax.xlane.f32.xlu0 %v3947
        %v3949 = vpop.xlane.xlu0 %3948
        %v3950 = vmax.f32 %v3897, %v3899
        %3951 = vmax.xlane.f32.xlu0 %v3950
        %v3952 = vpop.xlane.xlu0 %3951
        %v3953 = vmax.f32 %v3903, %v3905
        %3954 = vmax.xlane.f32.xlu0 %v3953
        %v3955 = vpop.xlane.xlu0 %3954
        %v3956 = vmax.f32 %v3907, %v3909
        %3957 = vmax.xlane.f32.xlu0 %v3956
        %v3958 = vpop.xlane.xlu0 %3957
        %v3959 = vsub.f32 %v3833, %v3913
        %v3960 = vsub.f32 %v3835, %v3913
        %v3961 = vsub.f32 %v3837, %v3916
        %v3962 = vsub.f32 %v3839, %v3916
        %v3963 = vsub.f32 %v3843, %v3919
        %v3964 = vsub.f32 %v3845, %v3919
        %v3965 = vsub.f32 %v3847, %v3922
        %v3966 = vsub.f32 %v3849, %v3922
        %v3967 = vsub.f32 %v3853, %v3925
        %v3968 = vsub.f32 %v3855, %v3925
        %v3969 = vsub.f32 %v3857, %v3928
        %v3970 = vsub.f32 %v3859, %v3928
        %v3971 = vsub.f32 %v3863, %v3931
        %v3972 = vsub.f32 %v3865, %v3931
        %v3973 = vsub.f32 %v3867, %v3934
        %v3974 = vsub.f32 %v3869, %v3934
        %v3975 = vsub.f32 %v3873, %v3937
        %v3976 = vsub.f32 %v3875, %v3937
        %v3977 = vsub.f32 %v3877, %v3940
        %v3978 = vsub.f32 %v3879, %v3940
        %v3979 = vsub.f32 %v3883, %v3943
        %v3980 = vsub.f32 %v3885, %v3943
        %v3981 = vsub.f32 %v3887, %v3946
        %v3982 = vsub.f32 %v3889, %v3946
        %v3983 = vsub.f32 %v3893, %v3949
        %v3984 = vsub.f32 %v3895, %v3949
        %v3985 = vsub.f32 %v3897, %v3952
        %v3986 = vsub.f32 %v3899, %v3952
        %v3987 = vsub.f32 %v3903, %v3955
        %v3988 = vsub.f32 %v3905, %v3955
        %v3989 = vsub.f32 %v3907, %v3958
        %v3990 = vsub.f32 %v3909, %v3958
        %v3991 = vmul.f32 %v3959, 1.442695
        %v3992 = vpow.pop %v3991
        %v3993 = vmul.f32 %v3960, 1.442695
        %v3994 = vpow.pop %v3993
        %v3995 = vmul.f32 %v3961, 1.442695
        %v3996 = vpow.pop %v3995
        %v3997 = vmul.f32 %v3962, 1.442695
        %v3998 = vpow.pop %v3997
        %v3999 = vmul.f32 %v3963, 1.442695
        %v4000 = vpow.pop %v3999
        %v4001 = vmul.f32 %v3964, 1.442695
        %v4002 = vpow.pop %v4001
        %v4003 = vmul.f32 %v3965, 1.442695
        %v4004 = vpow.pop %v4003
        %v4005 = vmul.f32 %v3966, 1.442695
        %v4006 = vpow.pop %v4005
        %v4007 = vmul.f32 %v3967, 1.442695
        %v4008 = vpow.pop %v4007
        %v4009 = vmul.f32 %v3968, 1.442695
        %v4010 = vpow.pop %v4009
        %v4011 = vmul.f32 %v3969, 1.442695
        %v4012 = vpow.pop %v4011
        %v4013 = vmul.f32 %v3970, 1.442695
        %v4014 = vpow.pop %v4013
        %v4015 = vmul.f32 %v3971, 1.442695
        %v4016 = vpow.pop %v4015
        %v4017 = vmul.f32 %v3972, 1.442695
        %v4018 = vpow.pop %v4017
        %v4019 = vmul.f32 %v3973, 1.442695
        %v4020 = vpow.pop %v4019
        %v4021 = vmul.f32 %v3974, 1.442695
        %v4022 = vpow.pop %v4021
        %v4023 = vmul.f32 %v3975, 1.442695
        %v4024 = vpow.pop %v4023
        %v4025 = vmul.f32 %v3976, 1.442695
        %v4026 = vpow.pop %v4025
        %v4027 = vmul.f32 %v3977, 1.442695
        %v4028 = vpow.pop %v4027
        %v4029 = vmul.f32 %v3978, 1.442695
        %v4030 = vpow.pop %v4029
        %v4031 = vmul.f32 %v3979, 1.442695
        %v4032 = vpow.pop %v4031
        %v4033 = vmul.f32 %v3980, 1.442695
        %v4034 = vpow.pop %v4033
        %v4035 = vmul.f32 %v3981, 1.442695
        %v4036 = vpow.pop %v4035
        %v4037 = vmul.f32 %v3982, 1.442695
        %v4038 = vpow.pop %v4037
        %v4039 = vmul.f32 %v3983, 1.442695
        %v4040 = vpow.pop %v4039
        %v4041 = vmul.f32 %v3984, 1.442695
        %v4042 = vpow.pop %v4041
        %v4043 = vmul.f32 %v3985, 1.442695
        %v4044 = vpow.pop %v4043
        %v4045 = vmul.f32 %v3986, 1.442695
        %v4046 = vpow.pop %v4045
        %v4047 = vmul.f32 %v3987, 1.442695
        %v4048 = vpow.pop %v4047
        %v4049 = vmul.f32 %v3988, 1.442695
        %v4050 = vpow.pop %v4049
        %v4051 = vmul.f32 %v3989, 1.442695
        %v4052 = vpow.pop %v4051
        %v4053 = vmul.f32 %v3990, 1.442695
        %v4054 = vpow.pop %v4053
        %v4055 = vadd.f32 %v3992, %v3994
        %4056 = vadd.xlane.f32.xlu0 %v4055
        %v4057 = vpop.xlane.xlu0 %4056
        %v4058 = vadd.f32 %v3996, %v3998
        %4059 = vadd.xlane.f32.xlu0 %v4058
        %v4060 = vpop.xlane.xlu0 %4059
        %v4061 = vadd.f32 %v4000, %v4002
        %4062 = vadd.xlane.f32.xlu0 %v4061
        %v4063 = vpop.xlane.xlu0 %4062
        %v4064 = vadd.f32 %v4004, %v4006
        %4065 = vadd.xlane.f32.xlu0 %v4064
        %v4066 = vpop.xlane.xlu0 %4065
        %v4067 = vadd.f32 %v4008, %v4010
        %4068 = vadd.xlane.f32.xlu0 %v4067
        %v4069 = vpop.xlane.xlu0 %4068
        %v4070 = vadd.f32 %v4012, %v4014
        %4071 = vadd.xlane.f32.xlu0 %v4070
        %v4072 = vpop.xlane.xlu0 %4071
        %v4073 = vadd.f32 %v4016, %v4018
        %4074 = vadd.xlane.f32.xlu0 %v4073
        %v4075 = vpop.xlane.xlu0 %4074
        %v4076 = vadd.f32 %v4020, %v4022
        %4077 = vadd.xlane.f32.xlu0 %v4076
        %v4078 = vpop.xlane.xlu0 %4077
        %v4079 = vadd.f32 %v4024, %v4026
        %4080 = vadd.xlane.f32.xlu0 %v4079
        %v4081 = vpop.xlane.xlu0 %4080
        %v4082 = vadd.f32 %v4028, %v4030
        %4083 = vadd.xlane.f32.xlu0 %v4082
        %v4084 = vpop.xlane.xlu0 %4083
        %v4085 = vadd.f32 %v4032, %v4034
        %4086 = vadd.xlane.f32.xlu0 %v4085
        %v4087 = vpop.xlane.xlu0 %4086
        %v4088 = vadd.f32 %v4036, %v4038
        %4089 = vadd.xlane.f32.xlu0 %v4088
        %v4090 = vpop.xlane.xlu0 %4089
        %v4091 = vadd.f32 %v4040, %v4042
        %4092 = vadd.xlane.f32.xlu0 %v4091
        %v4093 = vpop.xlane.xlu0 %4092
        %v4094 = vadd.f32 %v4044, %v4046
        %4095 = vadd.xlane.f32.xlu0 %v4094
        %v4096 = vpop.xlane.xlu0 %4095
        %v4097 = vadd.f32 %v4048, %v4050
        %4098 = vadd.xlane.f32.xlu0 %v4097
        %v4099 = vpop.xlane.xlu0 %4098
        %v4100 = vadd.f32 %v4052, %v4054
        %4101 = vadd.xlane.f32.xlu0 %v4100
        %v4102 = vpop.xlane.xlu0 %4101
        %v4103 = vpack.c.bf16 %v3996, %v3992
        %v4104 = vpack.c.bf16 %v3998, %v3994
        %v4105 = vpack.c.bf16 %v4004, %v4000
        %v4106 = vpack.c.bf16 %v4006, %v4002
        %v4107 = vpack.c.bf16 %v4012, %v4008
        %v4108 = vpack.c.bf16 %v4014, %v4010
        %v4109 = vpack.c.bf16 %v4020, %v4016
        %v4110 = vpack.c.bf16 %v4022, %v4018
        %v4111 = vpack.c.bf16 %v4028, %v4024
        %v4112 = vpack.c.bf16 %v4030, %v4026
        %v4113 = vpack.c.bf16 %v4036, %v4032
        %v4114 = vpack.c.bf16 %v4038, %v4034
        %v4115 = vpack.c.bf16 %v4044, %v4040
        %v4116 = vpack.c.bf16 %v4046, %v4042
        %v4117 = vpack.c.bf16 %v4052, %v4048
        %v4118 = vpack.c.bf16 %v4054, %v4050
        %4135 = vrot.lane.b32.xlu0 %v3646, 32
        %v4136 = vpop.permute.xlu0 %4135
        %4137 = vrot.lane.b32.xlu0 %v3647, 32
        %v4138 = vpop.permute.xlu0 %4137
        %4139 = vrot.lane.b32.xlu0 %v3648, 32
        %v4140 = vpop.permute.xlu0 %4139
        %4141 = vrot.lane.b32.xlu0 %v3649, 32
        %v4142 = vpop.permute.xlu0 %4141
        %4143 = vrot.lane.b32.xlu0 %v3650, 32
        %v4144 = vpop.permute.xlu0 %4143
        %4145 = vrot.lane.b32.xlu0 %v3651, 32
        %v4146 = vpop.permute.xlu0 %4145
        %4147 = vrot.lane.b32.xlu0 %v3652, 32
        %v4148 = vpop.permute.xlu0 %4147
        %4149 = vrot.lane.b32.xlu0 %v3653, 32
        %v4150 = vpop.permute.xlu0 %4149
        %4151 = vrot.lane.b32.xlu0 %v3654, 32
        %v4152 = vpop.permute.xlu0 %4151
        %4153 = vrot.lane.b32.xlu0 %v3655, 32
        %v4154 = vpop.permute.xlu0 %4153
        %4155 = vrot.lane.b32.xlu0 %v3656, 32
        %v4156 = vpop.permute.xlu0 %4155
        %4157 = vrot.lane.b32.xlu0 %v3657, 32
        %v4158 = vpop.permute.xlu0 %4157
        %4159 = vrot.lane.b32.xlu0 %v3658, 32
        %v4160 = vpop.permute.xlu0 %4159
        %4161 = vrot.lane.b32.xlu0 %v3659, 32
        %v4162 = vpop.permute.xlu0 %4161
        %4163 = vrot.lane.b32.xlu0 %v3660, 32
        %v4164 = vpop.permute.xlu0 %4163
        %4165 = vrot.lane.b32.xlu0 %v3661, 32
        %v4166 = vpop.permute.xlu0 %4165
        %4183 = vmatprep.subr.bf16.mxu0 0
        %4184 = vmatpush1.bf16.msra.mxu0 %v4136
        %4185 = vmatprep.subr.bf16.mxu0 0
        %4186 = vmatpush1.bf16.msra.mxu0 %v4138
        %4187 = vmatprep.subr.bf16.mxu0 0
        %4188 = vmatpush1.bf16.msra.mxu0 %v4140
        %4189 = vmatprep.subr.bf16.mxu0 0
        %4190 = vmatpush1.bf16.msra.mxu0 %v4142
        %4191 = vmatprep.subr.bf16.mxu0 0
        %4192 = vmatpush1.bf16.msra.mxu0 %v4144
        %4193 = vmatprep.subr.bf16.mxu0 0
        %4194 = vmatpush1.bf16.msra.mxu0 %v4146
        %4195 = vmatprep.subr.bf16.mxu0 0
        %4196 = vmatpush1.bf16.msra.mxu0 %v4148
        %4197 = vmatprep.subr.bf16.mxu0 0
        %4198 = vmatpush1.bf16.msra.mxu0 %v4150
        %4199 = vmatprep.subr.bf16.mxu0 0
        %4200 = vmatpush1.bf16.msra.mxu0 %v4152
        %4201 = vmatprep.subr.bf16.mxu0 0
        %4202 = vmatpush1.bf16.msra.mxu0 %v4154
        %4203 = vmatprep.subr.bf16.mxu0 0
        %4204 = vmatpush1.bf16.msra.mxu0 %v4156
        %4205 = vmatprep.subr.bf16.mxu0 0
        %4206 = vmatpush1.bf16.msra.mxu0 %v4158
        %4207 = vmatprep.subr.bf16.mxu0 0
        %4208 = vmatpush1.bf16.msra.mxu0 %v4160
        %4209 = vmatprep.subr.bf16.mxu0 0
        %4210 = vmatpush1.bf16.msra.mxu0 %v4162
        %4211 = vmatprep.subr.bf16.mxu0 0
        %4212 = vmatpush1.bf16.msra.mxu0 %v4164
        %4213 = vmatprep.subr.bf16.mxu0 0
        %4214 = vmatpush1.bf16.msra.mxu0 %v4166
        %4215 = vmatprep.mubr.bf16.mxu0 %v4104
        %4216 = vmatmul.mubr.bf16.gmra.mrb[0].mxu0 %v4103
        %v4217 = vpop.f32.mrb[0].mxu0
        %v4218 = vadd.f32 0.0, %v4217
        %v4219 = vpop.f32.mrb[0].mxu0
        %v4220 = vpop.f32.mrb[0].mxu0
        %v4221 = vadd.f32 0.0, %v4220
        %v4222 = vpop.f32.mrb[0].mxu0
        %4223 = vmatprep.mubr.bf16.mxu0 %v4106
        %4224 = vmatmul.mubr.bf16.gmra.mrb[0].mxu0 %v4105
        %v4225 = vpop.f32.mrb[0].mxu0
        %v4226 = vadd.f32 0.0, %v4225
        %v4227 = vpop.f32.mrb[0].mxu0
        %v4228 = vpop.f32.mrb[0].mxu0
        %v4229 = vadd.f32 0.0, %v4228
        %v4230 = vpop.f32.mrb[0].mxu0
        %4231 = vmatprep.mubr.bf16.mxu0 %v4108
        %4232 = vmatmul.mubr.bf16.gmra.mrb[0].mxu0 %v4107
        %v4233 = vpop.f32.mrb[0].mxu0
        %v4234 = vadd.f32 0.0, %v4233
        %v4235 = vpop.f32.mrb[0].mxu0
        %v4236 = vpop.f32.mrb[0].mxu0
        %v4237 = vadd.f32 0.0, %v4236
        %v4238 = vpop.f32.mrb[0].mxu0
        %4239 = vmatprep.mubr.bf16.mxu0 %v4110
        %4240 = vmatmul.mubr.bf16.gmra.mrb[0].mxu0 %v4109
        %v4241 = vpop.f32.mrb[0].mxu0
        %v4242 = vadd.f32 0.0, %v4241
        %v4243 = vpop.f32.mrb[0].mxu0
        %v4244 = vpop.f32.mrb[0].mxu0
        %v4245 = vadd.f32 0.0, %v4244
        %v4246 = vpop.f32.mrb[0].mxu0
        %4247 = vmatprep.mubr.bf16.mxu0 %v4112
        %4248 = vmatmul.mubr.bf16.gmra.mrb[0].mxu0 %v4111
        %v4249 = vpop.f32.mrb[0].mxu0
        %v4250 = vadd.f32 0.0, %v4249
        %v4251 = vpop.f32.mrb[0].mxu0
        %v4252 = vpop.f32.mrb[0].mxu0
        %v4253 = vadd.f32 0.0, %v4252
        %v4254 = vpop.f32.mrb[0].mxu0
        %4255 = vmatprep.mubr.bf16.mxu0 %v4114
        %4256 = vmatmul.mubr.bf16.gmra.mrb[0].mxu0 %v4113
        %v4257 = vpop.f32.mrb[0].mxu0
        %v4258 = vadd.f32 0.0, %v4257
        %v4259 = vpop.f32.mrb[0].mxu0
        %v4260 = vpop.f32.mrb[0].mxu0
        %v4261 = vadd.f32 0.0, %v4260
        %v4262 = vpop.f32.mrb[0].mxu0
        %4263 = vmatprep.mubr.bf16.mxu0 %v4116
        %4264 = vmatmul.mubr.bf16.gmra.mrb[0].mxu0 %v4115
        %v4265 = vpop.f32.mrb[0].mxu0
        %v4266 = vadd.f32 0.0, %v4265
        %v4267 = vpop.f32.mrb[0].mxu0
        %v4268 = vpop.f32.mrb[0].mxu0
        %v4269 = vadd.f32 0.0, %v4268
        %v4270 = vpop.f32.mrb[0].mxu0
        %4271 = vmatprep.mubr.bf16.mxu0 %v4118
        %4272 = vmatmul.mubr.bf16.gmra.mrb[0].mxu0 %v4117
        %v4273 = vpop.f32.mrb[0].mxu0
        %v4274 = vadd.f32 0.0, %v4273
        %v4275 = vpop.f32.mrb[0].mxu0
        %v4276 = vpop.f32.mrb[0].mxu0
        %v4277 = vadd.f32 0.0, %v4276
        %v4278 = vpop.f32.mrb[0].mxu0
        %4279 = vdwg.mxu0
        %v4280 = vrcp.pop %v4057
        %v4281 = vrcp.pop %v4060
        %v4282 = vrcp.pop %v4063
        %v4283 = vrcp.pop %v4066
        %v4284 = vrcp.pop %v4069
        %v4285 = vrcp.pop %v4072
        %v4286 = vrcp.pop %v4075
        %v4287 = vrcp.pop %v4078
        %v4288 = vrcp.pop %v4081
        %v4289 = vrcp.pop %v4084
        %v4290 = vrcp.pop %v4087
        %v4291 = vrcp.pop %v4090
        %v4292 = vrcp.pop %v4093
        %v4293 = vrcp.pop %v4096
        %v4294 = vrcp.pop %v4099
        %v4295 = vrcp.pop %v4102
        %v4296 = vmul.f32 %v4218, %v4280
        %v4297 = vmul.f32 %v4221, %v4281
        %v4298 = vmul.f32 %v4226, %v4282
        %v4299 = vmul.f32 %v4229, %v4283
        %v4300 = vmul.f32 %v4234, %v4284
        %v4301 = vmul.f32 %v4237, %v4285
        %v4302 = vmul.f32 %v4242, %v4286
        %v4303 = vmul.f32 %v4245, %v4287
        %v4304 = vmul.f32 %v4250, %v4288
        %v4305 = vmul.f32 %v4253, %v4289
        %v4306 = vmul.f32 %v4258, %v4290
        %v4307 = vmul.f32 %v4261, %v4291
        %v4308 = vmul.f32 %v4266, %v4292
        %v4309 = vmul.f32 %v4269, %v4293
        %v4310 = vmul.f32 %v4274, %v4294
        %v4311 = vmul.f32 %v4277, %v4295
        %v4312 = vpack.c.bf16 %v4297, %v4296
        %v4313 = vpack.c.bf16 %v4299, %v4298
        %v4314 = vpack.c.bf16 %v4301, %v4300
        %v4315 = vpack.c.bf16 %v4303, %v4302
        %v4316 = vpack.c.bf16 %v4305, %v4304
        %v4317 = vpack.c.bf16 %v4307, %v4306
        %v4318 = vpack.c.bf16 %v4309, %v4308
        %v4319 = vpack.c.bf16 %v4311, %v4310
        %4328 = vrot.lane.b32.xlu0 %v4312, 96
        %v4329 = vpop.permute.xlu0 %4328
        %4330 = vrot.lane.b32.xlu0 %v4313, 96
        %v4331 = vpop.permute.xlu0 %4330
        %4332 = vrot.lane.b32.xlu0 %v4314, 96
        %v4333 = vpop.permute.xlu0 %4332
        %4334 = vrot.lane.b32.xlu0 %v4315, 96
        %v4335 = vpop.permute.xlu0 %4334
        %4336 = vrot.lane.b32.xlu0 %v4316, 96
        %v4337 = vpop.permute.xlu0 %4336
        %4338 = vrot.lane.b32.xlu0 %v4317, 96
        %v4339 = vpop.permute.xlu0 %4338
        %4340 = vrot.lane.b32.xlu0 %v4318, 96
        %v4341 = vpop.permute.xlu0 %4340
        %4342 = vrot.lane.b32.xlu0 %v4319, 96
        %v4343 = vpop.permute.xlu0 %4342
        %vm4352 = vcmask 1048320
        %4353 = vst.msk [vmem:[#allocation4] sm:$0xff] %vm4352, %v4329
        %4354 = vst.msk [vmem:[#allocation4 + $0x8] sm:$0xff] %vm4352, %v4331
        %4355 = vst.msk [vmem:[#allocation4 + $0x10] sm:$0xff] %vm4352, %v4333
        %4356 = vst.msk [vmem:[#allocation4 + $0x18] sm:$0xff] %vm4352, %v4335
        %4357 = vst.msk [vmem:[#allocation4 + $0x20] sm:$0xff] %vm4352, %v4337
        %4358 = vst.msk [vmem:[#allocation4 + $0x28] sm:$0xff] %vm4352, %v4339
        %4359 = vst.msk [vmem:[#allocation4 + $0x30] sm:$0xff] %vm4352, %v4341
        %4360 = vst.msk [vmem:[#allocation4 + $0x38] sm:$0xff] %vm4352, %v4343
        %v4361 = vld [vmem:[#allocation4] sm:$0xff]
        %v4362 = vld [vmem:[#allocation4 + $0x8] sm:$0xff]
        %v4363 = vld [vmem:[#allocation4 + $0x10] sm:$0xff]
        %v4364 = vld [vmem:[#allocation4 + $0x18] sm:$0xff]
        %v4365 = vld [vmem:[#allocation4 + $0x20] sm:$0xff]
        %v4366 = vld [vmem:[#allocation4 + $0x28] sm:$0xff]
        %v4367 = vld [vmem:[#allocation4 + $0x30] sm:$0xff]
        %v4368 = vld [vmem:[#allocation4 + $0x38] sm:$0xff]
        %v4369 = vld [vmem:[#allocation16] sm:$0xf]
        %v4370 = vld [vmem:[#allocation16 + $0x4] sm:$0xf]
        %v4371 = vld [vmem:[#allocation16 + $0x8] sm:$0xf]
        %v4372 = vld [vmem:[#allocation16 + $0xc] sm:$0xf]
        %v4373 = vld [vmem:[#allocation16 + $0x10] sm:$0xf]
        %v4374 = vld [vmem:[#allocation16 + $0x14] sm:$0xf]
        %v4375 = vld [vmem:[#allocation16 + $0x18] sm:$0xf]
        %v4376 = vld [vmem:[#allocation16 + $0x1c] sm:$0xf]
        %v4377 = vld [vmem:[#allocation16 + $0x20] sm:$0xf]
        %v4378 = vld [vmem:[#allocation16 + $0x24] sm:$0xf]
        %v4379 = vld [vmem:[#allocation16 + $0x28] sm:$0xf]
        %v4380 = vld [vmem:[#allocation16 + $0x2c] sm:$0xf]
        %v4381 = vld [vmem:[#allocation16 + $0x30] sm:$0xf]
        %v4382 = vld [vmem:[#allocation16 + $0x34] sm:$0xf]
        %v4383 = vld [vmem:[#allocation16 + $0x38] sm:$0xf]
        %v4384 = vld [vmem:[#allocation16 + $0x3c] sm:$0xf]
        %v4385 = vld [vmem:[%s10] sm:$0x1]
        %v4387 = vlaneseq
        %v4388 = vshrl.u32 %v4387, 7
        %v4389 = vsub.s32 0, %v4388
        %v4390 = vrot.slane %v4385, %v4389
        %v4408 = vunpack.c.l.b16 %v4369
        %v4409 = vunpack.c.l.b16 %v4370
        %v4410 = vunpack.c.l.b16 %v4371
        %v4411 = vunpack.c.l.b16 %v4372
        %v4412 = vunpack.c.l.b16 %v4373
        %v4413 = vunpack.c.l.b16 %v4374
        %v4414 = vunpack.c.l.b16 %v4375
        %v4415 = vunpack.c.l.b16 %v4376
        %v4416 = vunpack.c.l.b16 %v4377
        %v4417 = vunpack.c.l.b16 %v4378
        %v4418 = vunpack.c.l.b16 %v4379
        %v4419 = vunpack.c.l.b16 %v4380
        %v4420 = vunpack.c.l.b16 %v4381
        %v4421 = vunpack.c.l.b16 %v4382
        %v4422 = vunpack.c.l.b16 %v4383
        %v4423 = vunpack.c.l.b16 %v4384
        %v4424 = vpack.c.b16 %v4409, %v4408
        %v4425 = vpack.c.b16 %v4411, %v4410
        %v4426 = vpack.c.b16 %v4413, %v4412
        %v4427 = vpack.c.b16 %v4415, %v4414
        %v4428 = vpack.c.b16 %v4417, %v4416
        %v4429 = vpack.c.b16 %v4419, %v4418
        %v4430 = vpack.c.b16 %v4421, %v4420
        %v4431 = vpack.c.b16 %v4423, %v4422
        %4440 = vmatprep.subr.bf16.mxu0 0
        %4441 = vmatpush1.bf16.msra.mxu0 %v4424
        %4442 = vmatprep.subr.bf16.mxu0 0
        %4443 = vmatpush1.bf16.msra.mxu0 %v4425
        %4444 = vmatprep.subr.bf16.mxu0 0
        %4445 = vmatpush1.bf16.msra.mxu0 %v4426
        %4446 = vmatprep.subr.bf16.mxu0 0
        %4447 = vmatpush1.bf16.msra.mxu0 %v4427
        %4448 = vmatprep.subr.bf16.mxu0 0
        %4449 = vmatpush1.bf16.msra.mxu0 %v4428
        %4450 = vmatprep.subr.bf16.mxu0 0
        %4451 = vmatpush1.bf16.msra.mxu0 %v4429
        %4452 = vmatprep.subr.bf16.mxu0 0
        %4453 = vmatpush1.bf16.msra.mxu0 %v4430
        %4454 = vmatprep.subr.bf16.mxu0 0
        %4455 = vmatpush1.bf16.msra.mxu0 %v4431
        %4456 = vmatprep.subr.bf16.mxu0 0
        %4457 = vmatpush1.bf16.msra.mxu0 0
        %4458 = vmatprep.subr.bf16.mxu0 0
        %4459 = vmatpush1.bf16.msra.mxu0 0
        %4460 = vmatprep.subr.bf16.mxu0 0
        %4461 = vmatpush1.bf16.msra.mxu0 0
        %4462 = vmatprep.subr.bf16.mxu0 0
        %4463 = vmatpush1.bf16.msra.mxu0 0
        %4464 = vmatprep.subr.bf16.mxu0 0
        %4465 = vmatpush1.bf16.msra.mxu0 0
        %4466 = vmatprep.subr.bf16.mxu0 0
        %4467 = vmatpush1.bf16.msra.mxu0 0
        %4468 = vmatprep.subr.bf16.mxu0 0
        %4469 = vmatpush1.bf16.msra.mxu0 0
        %4470 = vmatprep.subr.bf16.mxu0 0
        %4471 = vmatpush1.bf16.msra.mxu0 0
        %4472 = vmatprep.mubr.bf16.mxu0 0
        %4473 = vmatmul.mubr.bf16.gmra.mrb[0].mxu0 %v4361
        %v4474 = vpop.f32.mrb[0].mxu0
        %v4475 = vadd.f32 %v4390, %v4474
        %v4476 = vpop.f32.mrb[0].mxu0
        %v4477 = vpop.f32.mrb[0].mxu0
        %v4478 = vadd.f32 %v4390, %v4477
        %v4479 = vpop.f32.mrb[0].mxu0
        %4480 = vmatprep.mubr.bf16.mxu0 0
        %4481 = vmatmul.mubr.bf16.gmra.mrb[0].mxu0 %v4362
        %v4482 = vpop.f32.mrb[0].mxu0
        %v4483 = vadd.f32 %v4390, %v4482
        %v4484 = vpop.f32.mrb[0].mxu0
        %v4485 = vpop.f32.mrb[0].mxu0
        %v4486 = vadd.f32 %v4390, %v4485
        %v4487 = vpop.f32.mrb[0].mxu0
        %4488 = vmatprep.mubr.bf16.mxu0 0
        %4489 = vmatmul.mubr.bf16.gmra.mrb[0].mxu0 %v4363
        %v4490 = vpop.f32.mrb[0].mxu0
        %v4491 = vadd.f32 %v4390, %v4490
        %v4492 = vpop.f32.mrb[0].mxu0
        %v4493 = vpop.f32.mrb[0].mxu0
        %v4494 = vadd.f32 %v4390, %v4493
        %v4495 = vpop.f32.mrb[0].mxu0
        %4496 = vmatprep.mubr.bf16.mxu0 0
        %4497 = vmatmul.mubr.bf16.gmra.mrb[0].mxu0 %v4364
        %v4498 = vpop.f32.mrb[0].mxu0
        %v4499 = vadd.f32 %v4390, %v4498
        %v4500 = vpop.f32.mrb[0].mxu0
        %v4501 = vpop.f32.mrb[0].mxu0
        %v4502 = vadd.f32 %v4390, %v4501
        %v4503 = vpop.f32.mrb[0].mxu0
        %4504 = vmatprep.mubr.bf16.mxu0 0
        %4505 = vmatmul.mubr.bf16.gmra.mrb[0].mxu0 %v4365
        %v4506 = vpop.f32.mrb[0].mxu0
        %v4507 = vadd.f32 %v4390, %v4506
        %v4508 = vpop.f32.mrb[0].mxu0
        %v4509 = vpop.f32.mrb[0].mxu0
        %v4510 = vadd.f32 %v4390, %v4509
        %v4511 = vpop.f32.mrb[0].mxu0
        %4512 = vmatprep.mubr.bf16.mxu0 0
        %4513 = vmatmul.mubr.bf16.gmra.mrb[0].mxu0 %v4366
        %v4514 = vpop.f32.mrb[0].mxu0
        %v4515 = vadd.f32 %v4390, %v4514
        %v4516 = vpop.f32.mrb[0].mxu0
        %v4517 = vpop.f32.mrb[0].mxu0
        %v4518 = vadd.f32 %v4390, %v4517
        %v4519 = vpop.f32.mrb[0].mxu0
        %4520 = vmatprep.mubr.bf16.mxu0 0
        %4521 = vmatmul.mubr.bf16.gmra.mrb[0].mxu0 %v4367
        %v4522 = vpop.f32.mrb[0].mxu0
        %v4523 = vadd.f32 %v4390, %v4522
        %v4524 = vpop.f32.mrb[0].mxu0
        %v4525 = vpop.f32.mrb[0].mxu0
        %v4526 = vadd.f32 %v4390, %v4525
        %v4527 = vpop.f32.mrb[0].mxu0
        %4528 = vmatprep.mubr.bf16.mxu0 0
        %4529 = vmatmul.mubr.bf16.gmra.mrb[0].mxu0 %v4368
        %v4530 = vpop.f32.mrb[0].mxu0
        %v4531 = vadd.f32 %v4390, %v4530
        %v4532 = vpop.f32.mrb[0].mxu0
        %v4533 = vpop.f32.mrb[0].mxu0
        %v4534 = vadd.f32 %v4390, %v4533
        %v4535 = vpop.f32.mrb[0].mxu0
        %4536 = vdwg.mxu0
        %4537 = vst [vmem:[%s557] sm:$0xff] %v4475
        %4538 = vst [vmem:[%s557 + $0x8] sm:$0xff] %v4478
        %4539 = vst [vmem:[%s557 + $0x10] sm:$0xff] %v4483
        %4540 = vst [vmem:[%s557 + $0x18] sm:$0xff] %v4486
        %4541 = vst [vmem:[%s557 + $0x20] sm:$0xff] %v4491
        %4542 = vst [vmem:[%s557 + $0x28] sm:$0xff] %v4494
        %4543 = vst [vmem:[%s557 + $0x30] sm:$0xff] %v4499
        %4544 = vst [vmem:[%s557 + $0x38] sm:$0xff] %v4502
        %4545 = vst [vmem:[%s557 + $0x40] sm:$0xff] %v4507
        %4546 = vst [vmem:[%s557 + $0x48] sm:$0xff] %v4510
        %4547 = vst [vmem:[%s557 + $0x50] sm:$0xff] %v4515
        %4548 = vst [vmem:[%s557 + $0x58] sm:$0xff] %v4518
        %4549 = vst [vmem:[%s557 + $0x60] sm:$0xff] %v4523
        %4550 = vst [vmem:[%s557 + $0x68] sm:$0xff] %v4526
        %4551 = vst [vmem:[%s557 + $0x70] sm:$0xff] %v4531
        %4552 = vst [vmem:[%s557 + $0x78] sm:$0xff] %v4534
        %s4553 = sand.u32 %s303, 1
        %s4554 = scalar_lea.sflag [#allocation7], %s4553
        %s4555 = sand.u32 %s303, 1
        %s4556 = smul.addr %s4555, 128
        %s4557 = scalar_lea.vmem [#allocation17], %s4556
        // Predicated region
        $region97: #{tpu_custom_call.1} parent=63 // pred_check
          %p4558 = pneg %p313
        $region98: #{tpu_custom_call.1} parent=63 // pred_check_branch
          %4560 = sbr.rel (%p4558) target = $region100
        $region99: #{tpu_custom_call.1} parent=63 // pred_region
          %s4561 = smul.u32 16, %s38
          %s4563 = ssub.s32 2048, 2048
          %4564 = vsyncadd %s4554, %s4563
          %s4565 = smul.addr %s37, 32
          %s4566 = sadd.s32 %s4561, %s4565
          %s4567 = smul.addr %s4566, 128
          %s4568 = scalar_lea.hbm %s11, %s4567
          %s4569 = sshll.u32 %s4557, 4
          %s4570 = int_to_ptr.vmem [resolvable:$true] %s4569
          %4575 = dma.vmem_to_hbm [thread:$0]  %s4570, 2048, %s4568, %s4554, 128, 128, 8
        $region100: #{tpu_custom_call.1} parent=63 // pred_fallthru
          _
      $region64: #{tpu_custom_call.1} parent=5 // pred_fallthru
        _
      %p4576 = scmp.le.s32.totalorder 2, %s28
      // Predicated region
      $region101: #{tpu_custom_call.1} parent=5 // pred_check
        %p4577 = pneg %p4576
      $region102: #{tpu_custom_call.1} parent=5 // pred_check_branch
        %4579 = sbr.rel (%p4577) target = $region104
      $region103: #{tpu_custom_call.1} parent=5 // pred_region
        %s4580 = ssub.s32 %s28, 2
        // Predicated region
        $region105: #{tpu_custom_call.1} parent=103 // pred_check
          %p4581 = pneg %p319
        $region106: #{tpu_custom_call.1} parent=103 // pred_check_branch
          %4583 = sbr.rel (%p4581) target = $region108
        $region107: #{tpu_custom_call.1} parent=103 // pred_region
          %s4584 = sand.u32 %s304, 1
          %s4585 = scalar_lea.sflag [#allocation7], %s4584
          %s4586 = sand.u32 %s304, 1
          %s4587 = smul.addr %s4586, 128
          %s4588 = scalar_lea.vmem [#allocation17], %s4587
          %4589 = dma.done %s4585, 2048
        $region108: #{tpu_custom_call.1} parent=103 // pred_fallthru
          _
      $region104: #{tpu_custom_call.1} parent=5 // pred_fallthru
        _
    $region6: #{tpu_custom_call.1} parent=1 // loop_footer
      %s32 = sadd.s32 1, %s28
    $region7: #{tpu_custom_call.1} parent=1 // loop_footer_branch
      %27 = sbr.rel target = $region3
    $region8: #{tpu_custom_call.1} parent=1 // loop_exit
      _
    %4590 = vsyncpa [#allocation6], 1
    %s4591 = scalar_lea.sflag [#allocation6], 1
    %4592 = vsyncpa %s4591, 1
    %4593 = vsyncpa [#allocation9], 1
    %s4594 = scalar_lea.sflag [#allocation9], 1
    %4595 = vsyncpa %s4594, 1
    %4596 = vsyncpa [#allocation12], 1
    %4597 = vsyncpa [#allocation15], 1
    %4598 = vsyncpa [#allocation7], 1
    %s4599 = scalar_lea.sflag [#allocation7], 1
    %4600 = vsyncpa %s4599, 1

</llo_original>
